<compile_context>
chip_gen: v7x
topology: tpu7x:2x2x1
jax: 0.10.0
libtpu: 0.0.40
codegen_flags: <defaults>
</compile_context>

<pallas_src>
import functools

import jax
import jax.numpy as jnp
import numpy as np
from jax import lax
from jax.experimental import pallas as pl
from jax.experimental.pallas import tpu as pltpu


def _stacked_sru_kernel(*refs, hidden, L, TB, layer_dims):
    """All SRU layers for one batch tile, fully VMEM-resident.

    refs = (x_ref, [w_ref, b_ref, wc_ref] * n_layers, out_ref, h_ref, u_ref, hf_ref, hb_ref)

    x_ref  : (L, TB, D0)       f32   time-major input tile
    w_ref  : (D_i, 2*k_i*H)    bf16  columns ordered [dir, gate, hidden]
    b_ref  : (2, 2, H)         f32   [dir, (forget, reset) bias, hidden]
    wc_ref : (2, 2, H)         f32   [dir, (forget, reset) c-gate weight, hidden]
    out_ref: (L, TB, 2H)       f32   last layer's [fwd | bwd] hidden states
    h_ref  : (L, TB, 2H)       f32   VMEM: current layer's input (layers >= 1)
    u_ref  : (2, 4, L, TB, H)  f32   VMEM: dir/gate-major projected inputs (+ residual slot)
    hf_ref : (L, TB, H)        f32   VMEM: forward-direction states of current layer
    hb_ref : (L, TB, H)        f32   VMEM: backward-direction states of current layer
    """
    n_layers = len(layer_dims)
    H = hidden
    x_ref = refs[0]
    layer_refs = refs[1:1 + 3 * n_layers]
    out_ref = refs[1 + 3 * n_layers]
    h_ref, u_ref, hf_ref, hb_ref = refs[2 + 3 * n_layers:]

    for li, (d_in, k) in enumerate(layer_dims):
        w_ref, b_ref, wc_ref = layer_refs[3 * li:3 * li + 3]

        xin = x_ref[...] if li == 0 else h_ref[...]            # (L, TB, d_in) f32

        # --- hot path 1: input projection on the MXU (bf16 operands, f32 accumulation) ---
        u = jnp.dot(xin.reshape(L * TB, d_in).astype(jnp.bfloat16),
                    w_ref[...], preferred_element_type=jnp.float32)   # (L*TB, 2*k*H) f32

        # Scatter once per layer into dir/gate-major layout so the serial time loop below
        # only does leading-axis indexing (no per-step lane slicing / shuffles).
        for d in range(2):
            for g in range(k):
                col = (d * k + g) * H
                u_ref[d, g] = u[:, col:col + H].reshape(L, TB, H)
            if k == 3:
                # input width == 2*H: highway residual is the raw (f32) input slice.
                u_ref[d, 3] = xin[:, :, d * H:(d + 1) * H]

        # Hoist gate-parameter broadcasts out of the serial loop (JAX does not CSE them).
        b = b_ref[...]
        wc = wc_ref[...]
        bf = [jnp.broadcast_to(b[d, 0][None, :], (TB, H)) for d in range(2)]
        br = [jnp.broadcast_to(b[d, 1][None, :], (TB, H)) for d in range(2)]
        vf = [jnp.broadcast_to(wc[d, 0][None, :], (TB, H)) for d in range(2)]
        vr = [jnp.broadcast_to(wc[d, 1][None, :], (TB, H)) for d in range(2)]

        # --- hot path 2: serial elementwise recurrence (both directions each step, f32) ---
        def step(s, carry, bf=bf, br=br, vf=vf, vr=vr):
            c_f, c_b = carry
            t_b = L - 1 - s
            # forward direction (d = 0), time s
            f = jax.nn.sigmoid(u_ref[0, 1, s] + vf[0] * c_f + bf[0])
            r = jax.nn.sigmoid(u_ref[0, 2, s] + vr[0] * c_f + br[0])
            c_f = f * c_f + (1.0 - f) * u_ref[0, 0, s]
            hf_ref[s] = r * c_f + (1.0 - r) * u_ref[0, 3, s]   # use_tanh=0 -> identity on c
            # backward direction (d = 1), time L-1-s
            fb = jax.nn.sigmoid(u_ref[1, 1, t_b] + vf[1] * c_b + bf[1])
            rb = jax.nn.sigmoid(u_ref[1, 2, t_b] + vr[1] * c_b + br[1])
            c_b = fb * c_b + (1.0 - fb) * u_ref[1, 0, t_b]
            hb_ref[t_b] = rb * c_b + (1.0 - rb) * u_ref[1, 3, t_b]
            return (c_f, c_b)

        c0 = jnp.zeros((TB, H), jnp.float32)
        lax.fori_loop(0, L, step, (c0, c0), unroll=min(L, 8))

        # Lane-dense (L, TB, 2H) layer output assembled in VMEM (input to next layer).
        h_ref[...] = jnp.concatenate([hf_ref[...], hb_ref[...]], axis=-1)

    out_ref[...] = h_ref[...]


def _pick_batch_tile(B, L, d_in, hidden):
    """Largest batch tile (multiple of 8 when actually tiling) whose per-tile VMEM working
    set stays under ~24 MiB (safe for v7x's 64 MiB/TC with double-buffered I/O blocks)."""
    H = hidden
    f32 = 4

    def est(tb):
        scratch = (2 * H + 8 * H + 2 * H) * L * tb * f32            # h + u + hf + hb
        io = 2 * (L * tb * d_in + L * tb * 2 * H) * f32             # double-buffered x / out
        return scratch + io

    budget = 24 << 20
    if B % 8 != 0:
        return B          # can't tile the batch without violating the (8,128) sublane rule
    cands = [t for t in range(8, B + 1, 8) if B % t == 0 and est(t) <= budget]
    if not cands:
        return 8
    multi = [t for t in cands if t < B]   # prefer >=2 grid steps so v7x's 2 TCs both work
    return max(multi) if multi else max(cands)


def stacked_brnn_forward(x, x_mask, params, hidden, concat_layers=False):
    """x: (B, L, D_in), x_mask: (B, L) (ignored, exactly as in _forward_unpadded)."""
    del x_mask
    if concat_layers:
        # TODO(synk): concat_layers=True needs one output ref per layer; the module's
        # default configuration (concat_layers=False) is what is implemented here.
        raise NotImplementedError("concat_layers=True not implemented")

    B, L, d_in = x.shape
    H = hidden
    x_t = jnp.transpose(x, (1, 0, 2)).astype(jnp.float32)     # (L, B, D), like x.transpose(0, 1)

    layer_dims = []
    flat_args = [x_t]
    d = d_in
    for (W, b, wc) in params:
        k = W.shape[1] // (2 * H)
        layer_dims.append((d, k))
        flat_args.extend([W.astype(jnp.bfloat16),             # MXU operand: bf16
                          b.astype(jnp.float32),
                          wc.astype(jnp.float32)])
        d = 2 * H

    TB = _pick_batch_tile(B, L, d_in, H)
    grid = (B // TB,)

    in_specs = [pl.BlockSpec((L, TB, d_in), lambda bi: (0, bi, 0))]
    for (D_i, k_i) in layer_dims:
        in_specs.append(pl.BlockSpec((D_i, 2 * k_i * H), lambda bi: (0, 0)))
        in_specs.append(pl.BlockSpec((2, 2, H), lambda bi: (0, 0, 0)))
        in_specs.append(pl.BlockSpec((2, 2, H), lambda bi: (0, 0, 0)))
    out_spec = pl.BlockSpec((L, TB, 2 * H), lambda bi: (0, bi, 0))

    scratch_shapes = [
        pltpu.VMEM((L, TB, 2 * H), jnp.float32),       # h_ref  (layer-to-layer activations)
        pltpu.VMEM((2, 4, L, TB, H), jnp.float32),     # u_ref  (dir/gate-major projections)
        pltpu.VMEM((L, TB, H), jnp.float32),           # hf_ref
        pltpu.VMEM((L, TB, H), jnp.float32),           # hb_ref
    ]

    # Explicit VMEM budget: double-buffered I/O blocks + weights + scratch, with headroom.
    f32, bf16 = 4, 2
    vmem_est = (2 * (L * TB * d_in + L * TB * 2 * H) * f32
                + 2 * sum(D_i * 2 * k_i * H * bf16 + 2 * (2 * 2 * H) * f32
                          for (D_i, k_i) in layer_dims)
                + (12 * H) * L * TB * f32)
    vmem_limit = int(min(max(2 * vmem_est, 8 << 20), 64 << 20))

    kernel = functools.partial(_stacked_sru_kernel, hidden=H, L=L, TB=TB,
                               layer_dims=tuple(layer_dims))
    out = pl.pallas_call(
        kernel,
        out_shape=jax.ShapeDtypeStruct((L, B, 2 * H), jnp.float32),
        grid=grid,
        in_specs=in_specs,
        out_specs=out_spec,
        scratch_shapes=scratch_shapes,
        compiler_params=pltpu.CompilerParams(
            dimension_semantics=("parallel",),
            vmem_limit_bytes=vmem_limit),
    )(*flat_args)
    return jnp.transpose(out, (1, 0, 2))                      # back to (B, L, 2*hidden)


# ---------------- pure-JAX reference (correctness check) ----------------
# Mirrors the kernel numerics (bf16 matmul operands, f32 accumulation, f32 recurrence).
# Deviation from a full-f32 reference would be ~1e-2 purely from the bf16 MXU operands.
def _sru_layer_ref(x_lbd, W, b, wc, hidden):
    L, B, D = x_lbd.shape
    k = W.shape[1] // (2 * hidden)
    u = jnp.einsum('lbd,de->lbe',
                   x_lbd.astype(jnp.bfloat16), W.astype(jnp.bfloat16),
                   preferred_element_type=jnp.float32)

    def run_dir(d, time_order):
        def scan_fn(c, t):
            urow = u[t]
            base = d * k * hidden
            u0 = urow[:, base:base + hidden]
            u1 = urow[:, base + hidden:base + 2 * hidden]
            u2 = urow[:, base + 2 * hidden:base + 3 * hidden]
            f = jax.nn.sigmoid(u1 + wc[d, 0] * c + b[d, 0])
            r = jax.nn.sigmoid(u2 + wc[d, 1] * c + b[d, 1])
            c_new = f * c + (1.0 - f) * u0
            if k == 4:
                res = urow[:, base + 3 * hidden:base + 4 * hidden]
            else:
                res = x_lbd[t][:, d * hidden:(d + 1) * hidden]
            h = r * c_new + (1.0 - r) * res
            return c_new, h

        c0 = jnp.zeros((B, hidden), jnp.float32)
        _, hs = lax.scan(scan_fn, c0, time_order)
        return hs

    hf = run_dir(0, jnp.arange(L))
    hb = run_dir(1, jnp.arange(L - 1, -1, -1))[::-1]
    return jnp.concatenate([hf, hb], axis=-1)


def stacked_brnn_ref(x, params, hidden):
    h = jnp.transpose(x, (1, 0, 2))
    for (W, b, wc) in params:
        h = _sru_layer_ref(h, W, b, wc, hidden)
    return jnp.transpose(h, (1, 0, 2))


def init_params(key, input_size, hidden, num_layers):
    params = []
    in_size = input_size
    for _ in range(num_layers):
        k = 4 if in_size != 2 * hidden else 3
        key, kw, kc = jax.random.split(key, 3)
        bound = (3.0 / in_size) ** 0.5
        W = jax.random.uniform(kw, (in_size, 2 * k * hidden), jnp.float32, -bound, bound)
        wc = jax.random.uniform(kc, (2, 2, hidden), jnp.float32, -0.5, 0.5)
        b = jnp.zeros((2, 2, hidden), jnp.float32)
        params.append((W, b, wc))
        in_size = 2 * hidden
    return params


if __name__ == "__main__":
    B, L, D_in, H, NUM_LAYERS = 2, 8, 48, 32, 2   # layer0: k=4, layer1: k=3

    key = jax.random.PRNGKey(0)
    kx, kp = jax.random.split(key)
    x = jax.random.normal(kx, (B, L, D_in), jnp.float32)
    x_mask = jnp.zeros((B, L), jnp.float32)       # no padding -> _forward_unpadded path
    params = init_params(kp, D_in, H, NUM_LAYERS)

    out = stacked_brnn_forward(x, x_mask, params, H, concat_layers=False)
    out = jax.block_until_ready(out)
    assert out.shape == (B, L, 2 * H), out.shape

    ref = jax.block_until_ready(stacked_brnn_ref(x, params, H))
    np.testing.assert_allclose(np.asarray(out), np.asarray(ref), atol=5e-3, rtol=5e-3)

    print("KERNEL_OK")
</pallas_src>

<mosaic_0001>
module attributes {stable_mosaic.version = 11 : i64} {
  func.func @_stacked_sru_kernel(%arg0: i32, %arg1: memref<8x2x48xf32, #tpu.memory_space<vmem>>, %arg2: memref<48x256xbf16, #tpu.memory_space<vmem>>, %arg3: memref<2x2x32xf32, #tpu.memory_space<vmem>>, %arg4: memref<2x2x32xf32, #tpu.memory_space<vmem>>, %arg5: memref<64x192xbf16, #tpu.memory_space<vmem>>, %arg6: memref<2x2x32xf32, #tpu.memory_space<vmem>>, %arg7: memref<2x2x32xf32, #tpu.memory_space<vmem>>, %arg8: memref<8x2x64xf32, #tpu.memory_space<vmem>>, %arg9: memref<8x2x64xf32, #tpu.memory_space<vmem>>, %arg10: memref<2x4x8x2x32xf32, #tpu.memory_space<vmem>>, %arg11: memref<8x2x32xf32, #tpu.memory_space<vmem>>, %arg12: memref<8x2x32xf32, #tpu.memory_space<vmem>>) attributes {dimension_semantics = [#tpu.dimension_semantics<parallel>], iteration_bounds = array<i64: 1>, scalar_prefetch = 0 : i64, scratch_operands = 4 : i64, tpu.core_type = #tpu.core_type<tc>, window_params = [{transform_indices = @transform_0, window_bounds = array<i64: 8, 2, 48>}, {pipeline_mode = #tpu.pipeline_mode<synchronous>, transform_indices = @transform_1, window_bounds = array<i64: 48, 256>}, {pipeline_mode = #tpu.pipeline_mode<synchronous>, transform_indices = @transform_2, window_bounds = array<i64: 2, 2, 32>}, {pipeline_mode = #tpu.pipeline_mode<synchronous>, transform_indices = @transform_3, window_bounds = array<i64: 2, 2, 32>}, {pipeline_mode = #tpu.pipeline_mode<synchronous>, transform_indices = @transform_4, window_bounds = array<i64: 64, 192>}, {pipeline_mode = #tpu.pipeline_mode<synchronous>, transform_indices = @transform_5, window_bounds = array<i64: 2, 2, 32>}, {pipeline_mode = #tpu.pipeline_mode<synchronous>, transform_indices = @transform_6, window_bounds = array<i64: 2, 2, 32>}, {transform_indices = @transform_7, window_bounds = array<i64: 8, 2, 64>}]} {
    %c0 = arith.constant 0 : index
    %c0_0 = arith.constant 0 : index
    %c0_1 = arith.constant 0 : index
    %0 = vector.load %arg1[%c0, %c0_0, %c0_1] : memref<8x2x48xf32, #tpu.memory_space<vmem>>, vector<8x2x48xf32>
    %1 = vector.shape_cast %0 : vector<8x2x48xf32> to vector<16x48xf32>
    %2 = arith.truncf %1 : vector<16x48xf32> to vector<16x48xbf16>
    %c0_2 = arith.constant 0 : index
    %c0_3 = arith.constant 0 : index
    %3 = vector.load %arg2[%c0_2, %c0_3] : memref<48x256xbf16, #tpu.memory_space<vmem>>, vector<48x256xbf16>
    %cst = arith.constant dense<0.000000e+00> : vector<16x256xf32>
    %4 = tpu.matmul %2, %3, %cst {dimension_numbers = #tpu.dot_dimension_numbers<[1], [0], [0], [1], [0, 0, 1, 1], [], []>} : vector<16x48xbf16>, vector<48x256xbf16>, vector<16x256xf32> -> vector<16x256xf32>
    %5 = vector.extract_strided_slice %4 {offsets = [0, 0], sizes = [16, 32], strides = [1, 1]} : vector<16x256xf32> to vector<16x32xf32>
    %6 = vector.shape_cast %5 : vector<16x32xf32> to vector<8x2x32xf32>
    %c0_4 = arith.constant 0 : index
    %c0_5 = arith.constant 0 : index
    %c0_6 = arith.constant 0 : index
    %c0_7 = arith.constant 0 : index
    %c0_8 = arith.constant 0 : index
    %7 = vector.load %arg10[%c0_4, %c0_5, %c0_6, %c0_7, %c0_8] : memref<2x4x8x2x32xf32, #tpu.memory_space<vmem>>, vector<1x1x8x2x32xf32>
    %8 = vector.shape_cast %7 : vector<1x1x8x2x32xf32> to vector<8x2x32xf32>
    %9 = vector.shape_cast %6 : vector<8x2x32xf32> to vector<1x1x8x2x32xf32>
    tpu.vector_store %arg10[%c0_4, %c0_5, %c0_6, %c0_7, %c0_8], %9 {strides = array<i32>} : memref<2x4x8x2x32xf32, #tpu.memory_space<vmem>>, vector<1x1x8x2x32xf32>,
    %10 = vector.extract_strided_slice %4 {offsets = [0, 32], sizes = [16, 32], strides = [1, 1]} : vector<16x256xf32> to vector<16x32xf32>
    %11 = vector.shape_cast %10 : vector<16x32xf32> to vector<8x2x32xf32>
    %c0_9 = arith.constant 0 : index
    %c1 = arith.constant 1 : index
    %c0_10 = arith.constant 0 : index
    %c0_11 = arith.constant 0 : index
    %c0_12 = arith.constant 0 : index
    %12 = vector.load %arg10[%c0_9, %c1, %c0_10, %c0_11, %c0_12] : memref<2x4x8x2x32xf32, #tpu.memory_space<vmem>>, vector<1x1x8x2x32xf32>
    %13 = vector.shape_cast %12 : vector<1x1x8x2x32xf32> to vector<8x2x32xf32>
    %14 = vector.shape_cast %11 : vector<8x2x32xf32> to vector<1x1x8x2x32xf32>
    tpu.vector_store %arg10[%c0_9, %c1, %c0_10, %c0_11, %c0_12], %14 {strides = array<i32>} : memref<2x4x8x2x32xf32, #tpu.memory_space<vmem>>, vector<1x1x8x2x32xf32>,
    %15 = vector.extract_strided_slice %4 {offsets = [0, 64], sizes = [16, 32], strides = [1, 1]} : vector<16x256xf32> to vector<16x32xf32>
    %16 = vector.shape_cast %15 : vector<16x32xf32> to vector<8x2x32xf32>
    %c0_13 = arith.constant 0 : index
    %c2 = arith.constant 2 : index
    %c0_14 = arith.constant 0 : index
    %c0_15 = arith.constant 0 : index
    %c0_16 = arith.constant 0 : index
    %17 = vector.load %arg10[%c0_13, %c2, %c0_14, %c0_15, %c0_16] : memref<2x4x8x2x32xf32, #tpu.memory_space<vmem>>, vector<1x1x8x2x32xf32>
    %18 = vector.shape_cast %17 : vector<1x1x8x2x32xf32> to vector<8x2x32xf32>
    %19 = vector.shape_cast %16 : vector<8x2x32xf32> to vector<1x1x8x2x32xf32>
    tpu.vector_store %arg10[%c0_13, %c2, %c0_14, %c0_15, %c0_16], %19 {strides = array<i32>} : memref<2x4x8x2x32xf32, #tpu.memory_space<vmem>>, vector<1x1x8x2x32xf32>,
    %20 = vector.extract_strided_slice %4 {offsets = [0, 96], sizes = [16, 32], strides = [1, 1]} : vector<16x256xf32> to vector<16x32xf32>
    %21 = vector.shape_cast %20 : vector<16x32xf32> to vector<8x2x32xf32>
    %c0_17 = arith.constant 0 : index
    %c3 = arith.constant 3 : index
    %c0_18 = arith.constant 0 : index
    %c0_19 = arith.constant 0 : index
    %c0_20 = arith.constant 0 : index
    %22 = vector.load %arg10[%c0_17, %c3, %c0_18, %c0_19, %c0_20] : memref<2x4x8x2x32xf32, #tpu.memory_space<vmem>>, vector<1x1x8x2x32xf32>
    %23 = vector.shape_cast %22 : vector<1x1x8x2x32xf32> to vector<8x2x32xf32>
    %24 = vector.shape_cast %21 : vector<8x2x32xf32> to vector<1x1x8x2x32xf32>
    tpu.vector_store %arg10[%c0_17, %c3, %c0_18, %c0_19, %c0_20], %24 {strides = array<i32>} : memref<2x4x8x2x32xf32, #tpu.memory_space<vmem>>, vector<1x1x8x2x32xf32>,
    %25 = vector.extract_strided_slice %4 {offsets = [0, 128], sizes = [16, 32], strides = [1, 1]} : vector<16x256xf32> to vector<16x32xf32>
    %26 = vector.shape_cast %25 : vector<16x32xf32> to vector<8x2x32xf32>
    %c1_21 = arith.constant 1 : index
    %c0_22 = arith.constant 0 : index
    %c0_23 = arith.constant 0 : index
    %c0_24 = arith.constant 0 : index
    %c0_25 = arith.constant 0 : index
    %27 = vector.load %arg10[%c1_21, %c0_22, %c0_23, %c0_24, %c0_25] : memref<2x4x8x2x32xf32, #tpu.memory_space<vmem>>, vector<1x1x8x2x32xf32>
    %28 = vector.shape_cast %27 : vector<1x1x8x2x32xf32> to vector<8x2x32xf32>
    %29 = vector.shape_cast %26 : vector<8x2x32xf32> to vector<1x1x8x2x32xf32>
    tpu.vector_store %arg10[%c1_21, %c0_22, %c0_23, %c0_24, %c0_25], %29 {strides = array<i32>} : memref<2x4x8x2x32xf32, #tpu.memory_space<vmem>>, vector<1x1x8x2x32xf32>,
    %30 = vector.extract_strided_slice %4 {offsets = [0, 160], sizes = [16, 32], strides = [1, 1]} : vector<16x256xf32> to vector<16x32xf32>
    %31 = vector.shape_cast %30 : vector<16x32xf32> to vector<8x2x32xf32>
    %c1_26 = arith.constant 1 : index
    %c1_27 = arith.constant 1 : index
    %c0_28 = arith.constant 0 : index
    %c0_29 = arith.constant 0 : index
    %c0_30 = arith.constant 0 : index
    %32 = vector.load %arg10[%c1_26, %c1_27, %c0_28, %c0_29, %c0_30] : memref<2x4x8x2x32xf32, #tpu.memory_space<vmem>>, vector<1x1x8x2x32xf32>
    %33 = vector.shape_cast %32 : vector<1x1x8x2x32xf32> to vector<8x2x32xf32>
    %34 = vector.shape_cast %31 : vector<8x2x32xf32> to vector<1x1x8x2x32xf32>
    tpu.vector_store %arg10[%c1_26, %c1_27, %c0_28, %c0_29, %c0_30], %34 {strides = array<i32>} : memref<2x4x8x2x32xf32, #tpu.memory_space<vmem>>, vector<1x1x8x2x32xf32>,
    %35 = vector.extract_strided_slice %4 {offsets = [0, 192], sizes = [16, 32], strides = [1, 1]} : vector<16x256xf32> to vector<16x32xf32>
    %36 = vector.shape_cast %35 : vector<16x32xf32> to vector<8x2x32xf32>
    %c1_31 = arith.constant 1 : index
    %c2_32 = arith.constant 2 : index
    %c0_33 = arith.constant 0 : index
    %c0_34 = arith.constant 0 : index
    %c0_35 = arith.constant 0 : index
    %37 = vector.load %arg10[%c1_31, %c2_32, %c0_33, %c0_34, %c0_35] : memref<2x4x8x2x32xf32, #tpu.memory_space<vmem>>, vector<1x1x8x2x32xf32>
    %38 = vector.shape_cast %37 : vector<1x1x8x2x32xf32> to vector<8x2x32xf32>
    %39 = vector.shape_cast %36 : vector<8x2x32xf32> to vector<1x1x8x2x32xf32>
    tpu.vector_store %arg10[%c1_31, %c2_32, %c0_33, %c0_34, %c0_35], %39 {strides = array<i32>} : memref<2x4x8x2x32xf32, #tpu.memory_space<vmem>>, vector<1x1x8x2x32xf32>,
    %40 = vector.extract_strided_slice %4 {offsets = [0, 224], sizes = [16, 32], strides = [1, 1]} : vector<16x256xf32> to vector<16x32xf32>
    %41 = vector.shape_cast %40 : vector<16x32xf32> to vector<8x2x32xf32>
    %c1_36 = arith.constant 1 : index
    %c3_37 = arith.constant 3 : index
    %c0_38 = arith.constant 0 : index
    %c0_39 = arith.constant 0 : index
    %c0_40 = arith.constant 0 : index
    %42 = vector.load %arg10[%c1_36, %c3_37, %c0_38, %c0_39, %c0_40] : memref<2x4x8x2x32xf32, #tpu.memory_space<vmem>>, vector<1x1x8x2x32xf32>
    %43 = vector.shape_cast %42 : vector<1x1x8x2x32xf32> to vector<8x2x32xf32>
    %44 = vector.shape_cast %41 : vector<8x2x32xf32> to vector<1x1x8x2x32xf32>
    tpu.vector_store %arg10[%c1_36, %c3_37, %c0_38, %c0_39, %c0_40], %44 {strides = array<i32>} : memref<2x4x8x2x32xf32, #tpu.memory_space<vmem>>, vector<1x1x8x2x32xf32>,
    %c0_41 = arith.constant 0 : index
    %c0_42 = arith.constant 0 : index
    %c0_43 = arith.constant 0 : index
    %45 = vector.load %arg3[%c0_41, %c0_42, %c0_43] : memref<2x2x32xf32, #tpu.memory_space<vmem>>, vector<2x2x32xf32>
    %c0_44 = arith.constant 0 : index
    %c0_45 = arith.constant 0 : index
    %c0_46 = arith.constant 0 : index
    %46 = vector.load %arg4[%c0_44, %c0_45, %c0_46] : memref<2x2x32xf32, #tpu.memory_space<vmem>>, vector<2x2x32xf32>
    %47 = vector.extract_strided_slice %45 {offsets = [0, 0, 0], sizes = [1, 1, 32], strides = [1, 1, 1]} : vector<2x2x32xf32> to vector<1x1x32xf32>
    %48 = vector.shape_cast %47 : vector<1x1x32xf32> to vector<32xf32>
    %49 = vector.shape_cast %48 : vector<32xf32> to vector<1x32xf32>
    %50 = vector.shape_cast %49 : vector<1x32xf32> to vector<1x32xf32>
    %51 = vector.broadcast %50 : vector<1x32xf32> to vector<2x32xf32>
    %52 = vector.extract_strided_slice %45 {offsets = [1, 0, 0], sizes = [1, 1, 32], strides = [1, 1, 1]} : vector<2x2x32xf32> to vector<1x1x32xf32>
    %53 = vector.shape_cast %52 : vector<1x1x32xf32> to vector<32xf32>
    %54 = vector.shape_cast %53 : vector<32xf32> to vector<1x32xf32>
    %55 = vector.shape_cast %54 : vector<1x32xf32> to vector<1x32xf32>
    %56 = vector.broadcast %55 : vector<1x32xf32> to vector<2x32xf32>
    %57 = vector.extract_strided_slice %45 {offsets = [0, 1, 0], sizes = [1, 1, 32], strides = [1, 1, 1]} : vector<2x2x32xf32> to vector<1x1x32xf32>
    %58 = vector.shape_cast %57 : vector<1x1x32xf32> to vector<32xf32>
    %59 = vector.shape_cast %58 : vector<32xf32> to vector<1x32xf32>
    %60 = vector.shape_cast %59 : vector<1x32xf32> to vector<1x32xf32>
    %61 = vector.broadcast %60 : vector<1x32xf32> to vector<2x32xf32>
    %62 = vector.extract_strided_slice %45 {offsets = [1, 1, 0], sizes = [1, 1, 32], strides = [1, 1, 1]} : vector<2x2x32xf32> to vector<1x1x32xf32>
    %63 = vector.shape_cast %62 : vector<1x1x32xf32> to vector<32xf32>
    %64 = vector.shape_cast %63 : vector<32xf32> to vector<1x32xf32>
    %65 = vector.shape_cast %64 : vector<1x32xf32> to vector<1x32xf32>
    %66 = vector.broadcast %65 : vector<1x32xf32> to vector<2x32xf32>
    %67 = vector.extract_strided_slice %46 {offsets = [0, 0, 0], sizes = [1, 1, 32], strides = [1, 1, 1]} : vector<2x2x32xf32> to vector<1x1x32xf32>
    %68 = vector.shape_cast %67 : vector<1x1x32xf32> to vector<32xf32>
    %69 = vector.shape_cast %68 : vector<32xf32> to vector<1x32xf32>
    %70 = vector.shape_cast %69 : vector<1x32xf32> to vector<1x32xf32>
    %71 = vector.broadcast %70 : vector<1x32xf32> to vector<2x32xf32>
    %72 = vector.extract_strided_slice %46 {offsets = [1, 0, 0], sizes = [1, 1, 32], strides = [1, 1, 1]} : vector<2x2x32xf32> to vector<1x1x32xf32>
    %73 = vector.shape_cast %72 : vector<1x1x32xf32> to vector<32xf32>
    %74 = vector.shape_cast %73 : vector<32xf32> to vector<1x32xf32>
    %75 = vector.shape_cast %74 : vector<1x32xf32> to vector<1x32xf32>
    %76 = vector.broadcast %75 : vector<1x32xf32> to vector<2x32xf32>
    %77 = vector.extract_strided_slice %46 {offsets = [0, 1, 0], sizes = [1, 1, 32], strides = [1, 1, 1]} : vector<2x2x32xf32> to vector<1x1x32xf32>
    %78 = vector.shape_cast %77 : vector<1x1x32xf32> to vector<32xf32>
    %79 = vector.shape_cast %78 : vector<32xf32> to vector<1x32xf32>
    %80 = vector.shape_cast %79 : vector<1x32xf32> to vector<1x32xf32>
    %81 = vector.broadcast %80 : vector<1x32xf32> to vector<2x32xf32>
    %82 = vector.extract_strided_slice %46 {offsets = [1, 1, 0], sizes = [1, 1, 32], strides = [1, 1, 1]} : vector<2x2x32xf32> to vector<1x1x32xf32>
    %83 = vector.shape_cast %82 : vector<1x1x32xf32> to vector<32xf32>
    %84 = vector.shape_cast %83 : vector<32xf32> to vector<1x32xf32>
    %85 = vector.shape_cast %84 : vector<1x32xf32> to vector<1x32xf32>
    %86 = vector.broadcast %85 : vector<1x32xf32> to vector<2x32xf32>
    %cst_47 = arith.constant 0.000000e+00 : f32
    %87 = vector.broadcast %cst_47 : f32 to vector<2x32xf32>
    %c0_i32 = arith.constant 0 : i32
    %c7_i32 = arith.constant 7 : i32
    %88 = arith.subi %c7_i32, %c0_i32 : i32
    %c0_48 = arith.constant 0 : index
    %c1_49 = arith.constant 1 : index
    %89 = arith.index_cast %c0_i32 : i32 to index
    %c0_50 = arith.constant 0 : index
    %c0_51 = arith.constant 0 : index
    %90 = vector.load %arg10[%c0_48, %c1_49, %89, %c0_50, %c0_51] : memref<2x4x8x2x32xf32, #tpu.memory_space<vmem>>, vector<1x1x1x2x32xf32>
    %91 = vector.shape_cast %90 : vector<1x1x1x2x32xf32> to vector<2x32xf32>
    %92 = arith.mulf %71, %87 : vector<2x32xf32>
    %93 = arith.addf %91, %92 : vector<2x32xf32>
    %94 = arith.addf %93, %51 : vector<2x32xf32>
    %95 = arith.negf %94 : vector<2x32xf32>
    %96 = math.exp %95 : vector<2x32xf32>
    %cst_52 = arith.constant 1.000000e+00 : f32
    %97 = vector.broadcast %cst_52 : f32 to vector<2x32xf32>
    %98 = arith.addf %97, %96 : vector<2x32xf32>
    %99 = arith.divf %97, %98 : vector<2x32xf32>
    %c0_53 = arith.constant 0 : index
    %c2_54 = arith.constant 2 : index
    %100 = arith.index_cast %c0_i32 : i32 to index
    %c0_55 = arith.constant 0 : index
    %c0_56 = arith.constant 0 : index
    %101 = vector.load %arg10[%c0_53, %c2_54, %100, %c0_55, %c0_56] : memref<2x4x8x2x32xf32, #tpu.memory_space<vmem>>, vector<1x1x1x2x32xf32>
    %102 = vector.shape_cast %101 : vector<1x1x1x2x32xf32> to vector<2x32xf32>
    %103 = arith.mulf %81, %87 : vector<2x32xf32>
    %104 = arith.addf %102, %103 : vector<2x32xf32>
    %105 = arith.addf %104, %61 : vector<2x32xf32>
    %106 = arith.negf %105 : vector<2x32xf32>
    %107 = math.exp %106 : vector<2x32xf32>
    %cst_57 = arith.constant 1.000000e+00 : f32
    %108 = vector.broadcast %cst_57 : f32 to vector<2x32xf32>
    %109 = arith.addf %108, %107 : vector<2x32xf32>
    %110 = arith.divf %108, %109 : vector<2x32xf32>
    %111 = arith.mulf %99, %87 : vector<2x32xf32>
    %cst_58 = arith.constant 1.000000e+00 : f32
    %112 = vector.broadcast %cst_58 : f32 to vector<2x32xf32>
    %113 = arith.subf %112, %99 : vector<2x32xf32>
    %c0_59 = arith.constant 0 : index
    %c0_60 = arith.constant 0 : index
    %114 = arith.index_cast %c0_i32 : i32 to index
    %c0_61 = arith.constant 0 : index
    %c0_62 = arith.constant 0 : index
    %115 = vector.load %arg10[%c0_59, %c0_60, %114, %c0_61, %c0_62] : memref<2x4x8x2x32xf32, #tpu.memory_space<vmem>>, vector<1x1x1x2x32xf32>
    %116 = vector.shape_cast %115 : vector<1x1x1x2x32xf32> to vector<2x32xf32>
    %117 = arith.mulf %113, %116 : vector<2x32xf32>
    %118 = arith.addf %111, %117 : vector<2x32xf32>
    %119 = arith.mulf %110, %118 : vector<2x32xf32>
    %cst_63 = arith.constant 1.000000e+00 : f32
    %120 = vector.broadcast %cst_63 : f32 to vector<2x32xf32>
    %121 = arith.subf %120, %110 : vector<2x32xf32>
    %c0_64 = arith.constant 0 : index
    %c3_65 = arith.constant 3 : index
    %122 = arith.index_cast %c0_i32 : i32 to index
    %c0_66 = arith.constant 0 : index
    %c0_67 = arith.constant 0 : index
    %123 = vector.load %arg10[%c0_64, %c3_65, %122, %c0_66, %c0_67] : memref<2x4x8x2x32xf32, #tpu.memory_space<vmem>>, vector<1x1x1x2x32xf32>
    %124 = vector.shape_cast %123 : vector<1x1x1x2x32xf32> to vector<2x32xf32>
    %125 = arith.mulf %121, %124 : vector<2x32xf32>
    %126 = arith.addf %119, %125 : vector<2x32xf32>
    %127 = arith.index_cast %c0_i32 : i32 to index
    %c0_68 = arith.constant 0 : index
    %c0_69 = arith.constant 0 : index
    %128 = vector.load %arg11[%127, %c0_68, %c0_69] : memref<8x2x32xf32, #tpu.memory_space<vmem>>, vector<1x2x32xf32>
    %129 = vector.shape_cast %128 : vector<1x2x32xf32> to vector<2x32xf32>
    %130 = vector.shape_cast %126 : vector<2x32xf32> to vector<1x2x32xf32>
    tpu.vector_store %arg11[%127, %c0_68, %c0_69], %130 {strides = array<i32>} : memref<8x2x32xf32, #tpu.memory_space<vmem>>, vector<1x2x32xf32>,
    %c1_70 = arith.constant 1 : index
    %c1_71 = arith.constant 1 : index
    %131 = arith.index_cast %88 : i32 to index
    %c0_72 = arith.constant 0 : index
    %c0_73 = arith.constant 0 : index
    %132 = vector.load %arg10[%c1_70, %c1_71, %131, %c0_72, %c0_73] : memref<2x4x8x2x32xf32, #tpu.memory_space<vmem>>, vector<1x1x1x2x32xf32>
    %133 = vector.shape_cast %132 : vector<1x1x1x2x32xf32> to vector<2x32xf32>
    %134 = arith.mulf %76, %87 : vector<2x32xf32>
    %135 = arith.addf %133, %134 : vector<2x32xf32>
    %136 = arith.addf %135, %56 : vector<2x32xf32>
    %137 = arith.negf %136 : vector<2x32xf32>
    %138 = math.exp %137 : vector<2x32xf32>
    %cst_74 = arith.constant 1.000000e+00 : f32
    %139 = vector.broadcast %cst_74 : f32 to vector<2x32xf32>
    %140 = arith.addf %139, %138 : vector<2x32xf32>
    %141 = arith.divf %139, %140 : vector<2x32xf32>
    %c1_75 = arith.constant 1 : index
    %c2_76 = arith.constant 2 : index
    %142 = arith.index_cast %88 : i32 to index
    %c0_77 = arith.constant 0 : index
    %c0_78 = arith.constant 0 : index
    %143 = vector.load %arg10[%c1_75, %c2_76, %142, %c0_77, %c0_78] : memref<2x4x8x2x32xf32, #tpu.memory_space<vmem>>, vector<1x1x1x2x32xf32>
    %144 = vector.shape_cast %143 : vector<1x1x1x2x32xf32> to vector<2x32xf32>
    %145 = arith.mulf %86, %87 : vector<2x32xf32>
    %146 = arith.addf %144, %145 : vector<2x32xf32>
    %147 = arith.addf %146, %66 : vector<2x32xf32>
    %148 = arith.negf %147 : vector<2x32xf32>
    %149 = math.exp %148 : vector<2x32xf32>
    %cst_79 = arith.constant 1.000000e+00 : f32
    %150 = vector.broadcast %cst_79 : f32 to vector<2x32xf32>
    %151 = arith.addf %150, %149 : vector<2x32xf32>
    %152 = arith.divf %150, %151 : vector<2x32xf32>
    %153 = arith.mulf %141, %87 : vector<2x32xf32>
    %cst_80 = arith.constant 1.000000e+00 : f32
    %154 = vector.broadcast %cst_80 : f32 to vector<2x32xf32>
    %155 = arith.subf %154, %141 : vector<2x32xf32>
    %c1_81 = arith.constant 1 : index
    %c0_82 = arith.constant 0 : index
    %156 = arith.index_cast %88 : i32 to index
    %c0_83 = arith.constant 0 : index
    %c0_84 = arith.constant 0 : index
    %157 = vector.load %arg10[%c1_81, %c0_82, %156, %c0_83, %c0_84] : memref<2x4x8x2x32xf32, #tpu.memory_space<vmem>>, vector<1x1x1x2x32xf32>
    %158 = vector.shape_cast %157 : vector<1x1x1x2x32xf32> to vector<2x32xf32>
    %159 = arith.mulf %155, %158 : vector<2x32xf32>
    %160 = arith.addf %153, %159 : vector<2x32xf32>
    %161 = arith.mulf %152, %160 : vector<2x32xf32>
    %cst_85 = arith.constant 1.000000e+00 : f32
    %162 = vector.broadcast %cst_85 : f32 to vector<2x32xf32>
    %163 = arith.subf %162, %152 : vector<2x32xf32>
    %c1_86 = arith.constant 1 : index
    %c3_87 = arith.constant 3 : index
    %164 = arith.index_cast %88 : i32 to index
    %c0_88 = arith.constant 0 : index
    %c0_89 = arith.constant 0 : index
    %165 = vector.load %arg10[%c1_86, %c3_87, %164, %c0_88, %c0_89] : memref<2x4x8x2x32xf32, #tpu.memory_space<vmem>>, vector<1x1x1x2x32xf32>
    %166 = vector.shape_cast %165 : vector<1x1x1x2x32xf32> to vector<2x32xf32>
    %167 = arith.mulf %163, %166 : vector<2x32xf32>
    %168 = arith.addf %161, %167 : vector<2x32xf32>
    %169 = arith.index_cast %88 : i32 to index
    %c0_90 = arith.constant 0 : index
    %c0_91 = arith.constant 0 : index
    %170 = vector.load %arg12[%169, %c0_90, %c0_91] : memref<8x2x32xf32, #tpu.memory_space<vmem>>, vector<1x2x32xf32>
    %171 = vector.shape_cast %170 : vector<1x2x32xf32> to vector<2x32xf32>
    %172 = vector.shape_cast %168 : vector<2x32xf32> to vector<1x2x32xf32>
    tpu.vector_store %arg12[%169, %c0_90, %c0_91], %172 {strides = array<i32>} : memref<8x2x32xf32, #tpu.memory_space<vmem>>, vector<1x2x32xf32>,
    %c1_i32 = arith.constant 1 : i32
    %c7_i32_92 = arith.constant 7 : i32
    %173 = arith.subi %c7_i32_92, %c1_i32 : i32
    %c0_93 = arith.constant 0 : index
    %c1_94 = arith.constant 1 : index
    %174 = arith.index_cast %c1_i32 : i32 to index
    %c0_95 = arith.constant 0 : index
    %c0_96 = arith.constant 0 : index
    %175 = vector.load %arg10[%c0_93, %c1_94, %174, %c0_95, %c0_96] : memref<2x4x8x2x32xf32, #tpu.memory_space<vmem>>, vector<1x1x1x2x32xf32>
    %176 = vector.shape_cast %175 : vector<1x1x1x2x32xf32> to vector<2x32xf32>
    %177 = arith.mulf %71, %118 : vector<2x32xf32>
    %178 = arith.addf %176, %177 : vector<2x32xf32>
    %179 = arith.addf %178, %51 : vector<2x32xf32>
    %180 = arith.negf %179 : vector<2x32xf32>
    %181 = math.exp %180 : vector<2x32xf32>
    %cst_97 = arith.constant 1.000000e+00 : f32
    %182 = vector.broadcast %cst_97 : f32 to vector<2x32xf32>
    %183 = arith.addf %182, %181 : vector<2x32xf32>
    %184 = arith.divf %182, %183 : vector<2x32xf32>
    %c0_98 = arith.constant 0 : index
    %c2_99 = arith.constant 2 : index
    %185 = arith.index_cast %c1_i32 : i32 to index
    %c0_100 = arith.constant 0 : index
    %c0_101 = arith.constant 0 : index
    %186 = vector.load %arg10[%c0_98, %c2_99, %185, %c0_100, %c0_101] : memref<2x4x8x2x32xf32, #tpu.memory_space<vmem>>, vector<1x1x1x2x32xf32>
    %187 = vector.shape_cast %186 : vector<1x1x1x2x32xf32> to vector<2x32xf32>
    %188 = arith.mulf %81, %118 : vector<2x32xf32>
    %189 = arith.addf %187, %188 : vector<2x32xf32>
    %190 = arith.addf %189, %61 : vector<2x32xf32>
    %191 = arith.negf %190 : vector<2x32xf32>
    %192 = math.exp %191 : vector<2x32xf32>
    %cst_102 = arith.constant 1.000000e+00 : f32
    %193 = vector.broadcast %cst_102 : f32 to vector<2x32xf32>
    %194 = arith.addf %193, %192 : vector<2x32xf32>
    %195 = arith.divf %193, %194 : vector<2x32xf32>
    %196 = arith.mulf %184, %118 : vector<2x32xf32>
    %cst_103 = arith.constant 1.000000e+00 : f32
    %197 = vector.broadcast %cst_103 : f32 to vector<2x32xf32>
    %198 = arith.subf %197, %184 : vector<2x32xf32>
    %c0_104 = arith.constant 0 : index
    %c0_105 = arith.constant 0 : index
    %199 = arith.index_cast %c1_i32 : i32 to index
    %c0_106 = arith.constant 0 : index
    %c0_107 = arith.constant 0 : index
    %200 = vector.load %arg10[%c0_104, %c0_105, %199, %c0_106, %c0_107] : memref<2x4x8x2x32xf32, #tpu.memory_space<vmem>>, vector<1x1x1x2x32xf32>
    %201 = vector.shape_cast %200 : vector<1x1x1x2x32xf32> to vector<2x32xf32>
    %202 = arith.mulf %198, %201 : vector<2x32xf32>
    %203 = arith.addf %196, %202 : vector<2x32xf32>
    %204 = arith.mulf %195, %203 : vector<2x32xf32>
    %cst_108 = arith.constant 1.000000e+00 : f32
    %205 = vector.broadcast %cst_108 : f32 to vector<2x32xf32>
    %206 = arith.subf %205, %195 : vector<2x32xf32>
    %c0_109 = arith.constant 0 : index
    %c3_110 = arith.constant 3 : index
    %207 = arith.index_cast %c1_i32 : i32 to index
    %c0_111 = arith.constant 0 : index
    %c0_112 = arith.constant 0 : index
    %208 = vector.load %arg10[%c0_109, %c3_110, %207, %c0_111, %c0_112] : memref<2x4x8x2x32xf32, #tpu.memory_space<vmem>>, vector<1x1x1x2x32xf32>
    %209 = vector.shape_cast %208 : vector<1x1x1x2x32xf32> to vector<2x32xf32>
    %210 = arith.mulf %206, %209 : vector<2x32xf32>
    %211 = arith.addf %204, %210 : vector<2x32xf32>
    %212 = arith.index_cast %c1_i32 : i32 to index
    %c0_113 = arith.constant 0 : index
    %c0_114 = arith.constant 0 : index
    %213 = vector.load %arg11[%212, %c0_113, %c0_114] : memref<8x2x32xf32, #tpu.memory_space<vmem>>, vector<1x2x32xf32>
    %214 = vector.shape_cast %213 : vector<1x2x32xf32> to vector<2x32xf32>
    %215 = vector.shape_cast %211 : vector<2x32xf32> to vector<1x2x32xf32>
    tpu.vector_store %arg11[%212, %c0_113, %c0_114], %215 {strides = array<i32>} : memref<8x2x32xf32, #tpu.memory_space<vmem>>, vector<1x2x32xf32>,
    %c1_115 = arith.constant 1 : index
    %c1_116 = arith.constant 1 : index
    %216 = arith.index_cast %173 : i32 to index
    %c0_117 = arith.constant 0 : index
    %c0_118 = arith.constant 0 : index
    %217 = vector.load %arg10[%c1_115, %c1_116, %216, %c0_117, %c0_118] : memref<2x4x8x2x32xf32, #tpu.memory_space<vmem>>, vector<1x1x1x2x32xf32>
    %218 = vector.shape_cast %217 : vector<1x1x1x2x32xf32> to vector<2x32xf32>
    %219 = arith.mulf %76, %160 : vector<2x32xf32>
    %220 = arith.addf %218, %219 : vector<2x32xf32>
    %221 = arith.addf %220, %56 : vector<2x32xf32>
    %222 = arith.negf %221 : vector<2x32xf32>
    %223 = math.exp %222 : vector<2x32xf32>
    %cst_119 = arith.constant 1.000000e+00 : f32
    %224 = vector.broadcast %cst_119 : f32 to vector<2x32xf32>
    %225 = arith.addf %224, %223 : vector<2x32xf32>
    %226 = arith.divf %224, %225 : vector<2x32xf32>
    %c1_120 = arith.constant 1 : index
    %c2_121 = arith.constant 2 : index
    %227 = arith.index_cast %173 : i32 to index
    %c0_122 = arith.constant 0 : index
    %c0_123 = arith.constant 0 : index
    %228 = vector.load %arg10[%c1_120, %c2_121, %227, %c0_122, %c0_123] : memref<2x4x8x2x32xf32, #tpu.memory_space<vmem>>, vector<1x1x1x2x32xf32>
    %229 = vector.shape_cast %228 : vector<1x1x1x2x32xf32> to vector<2x32xf32>
    %230 = arith.mulf %86, %160 : vector<2x32xf32>
    %231 = arith.addf %229, %230 : vector<2x32xf32>
    %232 = arith.addf %231, %66 : vector<2x32xf32>
    %233 = arith.negf %232 : vector<2x32xf32>
    %234 = math.exp %233 : vector<2x32xf32>
    %cst_124 = arith.constant 1.000000e+00 : f32
    %235 = vector.broadcast %cst_124 : f32 to vector<2x32xf32>
    %236 = arith.addf %235, %234 : vector<2x32xf32>
    %237 = arith.divf %235, %236 : vector<2x32xf32>
    %238 = arith.mulf %226, %160 : vector<2x32xf32>
    %cst_125 = arith.constant 1.000000e+00 : f32
    %239 = vector.broadcast %cst_125 : f32 to vector<2x32xf32>
    %240 = arith.subf %239, %226 : vector<2x32xf32>
    %c1_126 = arith.constant 1 : index
    %c0_127 = arith.constant 0 : index
    %241 = arith.index_cast %173 : i32 to index
    %c0_128 = arith.constant 0 : index
    %c0_129 = arith.constant 0 : index
    %242 = vector.load %arg10[%c1_126, %c0_127, %241, %c0_128, %c0_129] : memref<2x4x8x2x32xf32, #tpu.memory_space<vmem>>, vector<1x1x1x2x32xf32>
    %243 = vector.shape_cast %242 : vector<1x1x1x2x32xf32> to vector<2x32xf32>
    %244 = arith.mulf %240, %243 : vector<2x32xf32>
    %245 = arith.addf %238, %244 : vector<2x32xf32>
    %246 = arith.mulf %237, %245 : vector<2x32xf32>
    %cst_130 = arith.constant 1.000000e+00 : f32
    %247 = vector.broadcast %cst_130 : f32 to vector<2x32xf32>
    %248 = arith.subf %247, %237 : vector<2x32xf32>
    %c1_131 = arith.constant 1 : index
    %c3_132 = arith.constant 3 : index
    %249 = arith.index_cast %173 : i32 to index
    %c0_133 = arith.constant 0 : index
    %c0_134 = arith.constant 0 : index
    %250 = vector.load %arg10[%c1_131, %c3_132, %249, %c0_133, %c0_134] : memref<2x4x8x2x32xf32, #tpu.memory_space<vmem>>, vector<1x1x1x2x32xf32>
    %251 = vector.shape_cast %250 : vector<1x1x1x2x32xf32> to vector<2x32xf32>
    %252 = arith.mulf %248, %251 : vector<2x32xf32>
    %253 = arith.addf %246, %252 : vector<2x32xf32>
    %254 = arith.index_cast %173 : i32 to index
    %c0_135 = arith.constant 0 : index
    %c0_136 = arith.constant 0 : index
    %255 = vector.load %arg12[%254, %c0_135, %c0_136] : memref<8x2x32xf32, #tpu.memory_space<vmem>>, vector<1x2x32xf32>
    %256 = vector.shape_cast %255 : vector<1x2x32xf32> to vector<2x32xf32>
    %257 = vector.shape_cast %253 : vector<2x32xf32> to vector<1x2x32xf32>
    tpu.vector_store %arg12[%254, %c0_135, %c0_136], %257 {strides = array<i32>} : memref<8x2x32xf32, #tpu.memory_space<vmem>>, vector<1x2x32xf32>,
    %c2_i32 = arith.constant 2 : i32
    %c7_i32_137 = arith.constant 7 : i32
    %258 = arith.subi %c7_i32_137, %c2_i32 : i32
    %c0_138 = arith.constant 0 : index
    %c1_139 = arith.constant 1 : index
    %259 = arith.index_cast %c2_i32 : i32 to index
    %c0_140 = arith.constant 0 : index
    %c0_141 = arith.constant 0 : index
    %260 = vector.load %arg10[%c0_138, %c1_139, %259, %c0_140, %c0_141] : memref<2x4x8x2x32xf32, #tpu.memory_space<vmem>>, vector<1x1x1x2x32xf32>
    %261 = vector.shape_cast %260 : vector<1x1x1x2x32xf32> to vector<2x32xf32>
    %262 = arith.mulf %71, %203 : vector<2x32xf32>
    %263 = arith.addf %261, %262 : vector<2x32xf32>
    %264 = arith.addf %263, %51 : vector<2x32xf32>
    %265 = arith.negf %264 : vector<2x32xf32>
    %266 = math.exp %265 : vector<2x32xf32>
    %cst_142 = arith.constant 1.000000e+00 : f32
    %267 = vector.broadcast %cst_142 : f32 to vector<2x32xf32>
    %268 = arith.addf %267, %266 : vector<2x32xf32>
    %269 = arith.divf %267, %268 : vector<2x32xf32>
    %c0_143 = arith.constant 0 : index
    %c2_144 = arith.constant 2 : index
    %270 = arith.index_cast %c2_i32 : i32 to index
    %c0_145 = arith.constant 0 : index
    %c0_146 = arith.constant 0 : index
    %271 = vector.load %arg10[%c0_143, %c2_144, %270, %c0_145, %c0_146] : memref<2x4x8x2x32xf32, #tpu.memory_space<vmem>>, vector<1x1x1x2x32xf32>
    %272 = vector.shape_cast %271 : vector<1x1x1x2x32xf32> to vector<2x32xf32>
    %273 = arith.mulf %81, %203 : vector<2x32xf32>
    %274 = arith.addf %272, %273 : vector<2x32xf32>
    %275 = arith.addf %274, %61 : vector<2x32xf32>
    %276 = arith.negf %275 : vector<2x32xf32>
    %277 = math.exp %276 : vector<2x32xf32>
    %cst_147 = arith.constant 1.000000e+00 : f32
    %278 = vector.broadcast %cst_147 : f32 to vector<2x32xf32>
    %279 = arith.addf %278, %277 : vector<2x32xf32>
    %280 = arith.divf %278, %279 : vector<2x32xf32>
    %281 = arith.mulf %269, %203 : vector<2x32xf32>
    %cst_148 = arith.constant 1.000000e+00 : f32
    %282 = vector.broadcast %cst_148 : f32 to vector<2x32xf32>
    %283 = arith.subf %282, %269 : vector<2x32xf32>
    %c0_149 = arith.constant 0 : index
    %c0_150 = arith.constant 0 : index
    %284 = arith.index_cast %c2_i32 : i32 to index
    %c0_151 = arith.constant 0 : index
    %c0_152 = arith.constant 0 : index
    %285 = vector.load %arg10[%c0_149, %c0_150, %284, %c0_151, %c0_152] : memref<2x4x8x2x32xf32, #tpu.memory_space<vmem>>, vector<1x1x1x2x32xf32>
    %286 = vector.shape_cast %285 : vector<1x1x1x2x32xf32> to vector<2x32xf32>
    %287 = arith.mulf %283, %286 : vector<2x32xf32>
    %288 = arith.addf %281, %287 : vector<2x32xf32>
    %289 = arith.mulf %280, %288 : vector<2x32xf32>
    %cst_153 = arith.constant 1.000000e+00 : f32
    %290 = vector.broadcast %cst_153 : f32 to vector<2x32xf32>
    %291 = arith.subf %290, %280 : vector<2x32xf32>
    %c0_154 = arith.constant 0 : index
    %c3_155 = arith.constant 3 : index
    %292 = arith.index_cast %c2_i32 : i32 to index
    %c0_156 = arith.constant 0 : index
    %c0_157 = arith.constant 0 : index
    %293 = vector.load %arg10[%c0_154, %c3_155, %292, %c0_156, %c0_157] : memref<2x4x8x2x32xf32, #tpu.memory_space<vmem>>, vector<1x1x1x2x32xf32>
    %294 = vector.shape_cast %293 : vector<1x1x1x2x32xf32> to vector<2x32xf32>
    %295 = arith.mulf %291, %294 : vector<2x32xf32>
    %296 = arith.addf %289, %295 : vector<2x32xf32>
    %297 = arith.index_cast %c2_i32 : i32 to index
    %c0_158 = arith.constant 0 : index
    %c0_159 = arith.constant 0 : index
    %298 = vector.load %arg11[%297, %c0_158, %c0_159] : memref<8x2x32xf32, #tpu.memory_space<vmem>>, vector<1x2x32xf32>
    %299 = vector.shape_cast %298 : vector<1x2x32xf32> to vector<2x32xf32>
    %300 = vector.shape_cast %296 : vector<2x32xf32> to vector<1x2x32xf32>
    tpu.vector_store %arg11[%297, %c0_158, %c0_159], %300 {strides = array<i32>} : memref<8x2x32xf32, #tpu.memory_space<vmem>>, vector<1x2x32xf32>,
    %c1_160 = arith.constant 1 : index
    %c1_161 = arith.constant 1 : index
    %301 = arith.index_cast %258 : i32 to index
    %c0_162 = arith.constant 0 : index
    %c0_163 = arith.constant 0 : index
    %302 = vector.load %arg10[%c1_160, %c1_161, %301, %c0_162, %c0_163] : memref<2x4x8x2x32xf32, #tpu.memory_space<vmem>>, vector<1x1x1x2x32xf32>
    %303 = vector.shape_cast %302 : vector<1x1x1x2x32xf32> to vector<2x32xf32>
    %304 = arith.mulf %76, %245 : vector<2x32xf32>
    %305 = arith.addf %303, %304 : vector<2x32xf32>
    %306 = arith.addf %305, %56 : vector<2x32xf32>
    %307 = arith.negf %306 : vector<2x32xf32>
    %308 = math.exp %307 : vector<2x32xf32>
    %cst_164 = arith.constant 1.000000e+00 : f32
    %309 = vector.broadcast %cst_164 : f32 to vector<2x32xf32>
    %310 = arith.addf %309, %308 : vector<2x32xf32>
    %311 = arith.divf %309, %310 : vector<2x32xf32>
    %c1_165 = arith.constant 1 : index
    %c2_166 = arith.constant 2 : index
    %312 = arith.index_cast %258 : i32 to index
    %c0_167 = arith.constant 0 : index
    %c0_168 = arith.constant 0 : index
    %313 = vector.load %arg10[%c1_165, %c2_166, %312, %c0_167, %c0_168] : memref<2x4x8x2x32xf32, #tpu.memory_space<vmem>>, vector<1x1x1x2x32xf32>
    %314 = vector.shape_cast %313 : vector<1x1x1x2x32xf32> to vector<2x32xf32>
    %315 = arith.mulf %86, %245 : vector<2x32xf32>
    %316 = arith.addf %314, %315 : vector<2x32xf32>
    %317 = arith.addf %316, %66 : vector<2x32xf32>
    %318 = arith.negf %317 : vector<2x32xf32>
    %319 = math.exp %318 : vector<2x32xf32>
    %cst_169 = arith.constant 1.000000e+00 : f32
    %320 = vector.broadcast %cst_169 : f32 to vector<2x32xf32>
    %321 = arith.addf %320, %319 : vector<2x32xf32>
    %322 = arith.divf %320, %321 : vector<2x32xf32>
    %323 = arith.mulf %311, %245 : vector<2x32xf32>
    %cst_170 = arith.constant 1.000000e+00 : f32
    %324 = vector.broadcast %cst_170 : f32 to vector<2x32xf32>
    %325 = arith.subf %324, %311 : vector<2x32xf32>
    %c1_171 = arith.constant 1 : index
    %c0_172 = arith.constant 0 : index
    %326 = arith.index_cast %258 : i32 to index
    %c0_173 = arith.constant 0 : index
    %c0_174 = arith.constant 0 : index
    %327 = vector.load %arg10[%c1_171, %c0_172, %326, %c0_173, %c0_174] : memref<2x4x8x2x32xf32, #tpu.memory_space<vmem>>, vector<1x1x1x2x32xf32>
    %328 = vector.shape_cast %327 : vector<1x1x1x2x32xf32> to vector<2x32xf32>
    %329 = arith.mulf %325, %328 : vector<2x32xf32>
    %330 = arith.addf %323, %329 : vector<2x32xf32>
    %331 = arith.mulf %322, %330 : vector<2x32xf32>
    %cst_175 = arith.constant 1.000000e+00 : f32
    %332 = vector.broadcast %cst_175 : f32 to vector<2x32xf32>
    %333 = arith.subf %332, %322 : vector<2x32xf32>
    %c1_176 = arith.constant 1 : index
    %c3_177 = arith.constant 3 : index
    %334 = arith.index_cast %258 : i32 to index
    %c0_178 = arith.constant 0 : index
    %c0_179 = arith.constant 0 : index
    %335 = vector.load %arg10[%c1_176, %c3_177, %334, %c0_178, %c0_179] : memref<2x4x8x2x32xf32, #tpu.memory_space<vmem>>, vector<1x1x1x2x32xf32>
    %336 = vector.shape_cast %335 : vector<1x1x1x2x32xf32> to vector<2x32xf32>
    %337 = arith.mulf %333, %336 : vector<2x32xf32>
    %338 = arith.addf %331, %337 : vector<2x32xf32>
    %339 = arith.index_cast %258 : i32 to index
    %c0_180 = arith.constant 0 : index
    %c0_181 = arith.constant 0 : index
    %340 = vector.load %arg12[%339, %c0_180, %c0_181] : memref<8x2x32xf32, #tpu.memory_space<vmem>>, vector<1x2x32xf32>
    %341 = vector.shape_cast %340 : vector<1x2x32xf32> to vector<2x32xf32>
    %342 = vector.shape_cast %338 : vector<2x32xf32> to vector<1x2x32xf32>
    tpu.vector_store %arg12[%339, %c0_180, %c0_181], %342 {strides = array<i32>} : memref<8x2x32xf32, #tpu.memory_space<vmem>>, vector<1x2x32xf32>,
    %c3_i32 = arith.constant 3 : i32
    %c7_i32_182 = arith.constant 7 : i32
    %343 = arith.subi %c7_i32_182, %c3_i32 : i32
    %c0_183 = arith.constant 0 : index
    %c1_184 = arith.constant 1 : index
    %344 = arith.index_cast %c3_i32 : i32 to index
    %c0_185 = arith.constant 0 : index
    %c0_186 = arith.constant 0 : index
    %345 = vector.load %arg10[%c0_183, %c1_184, %344, %c0_185, %c0_186] : memref<2x4x8x2x32xf32, #tpu.memory_space<vmem>>, vector<1x1x1x2x32xf32>
    %346 = vector.shape_cast %345 : vector<1x1x1x2x32xf32> to vector<2x32xf32>
    %347 = arith.mulf %71, %288 : vector<2x32xf32>
    %348 = arith.addf %346, %347 : vector<2x32xf32>
    %349 = arith.addf %348, %51 : vector<2x32xf32>
    %350 = arith.negf %349 : vector<2x32xf32>
    %351 = math.exp %350 : vector<2x32xf32>
    %cst_187 = arith.constant 1.000000e+00 : f32
    %352 = vector.broadcast %cst_187 : f32 to vector<2x32xf32>
    %353 = arith.addf %352, %351 : vector<2x32xf32>
    %354 = arith.divf %352, %353 : vector<2x32xf32>
    %c0_188 = arith.constant 0 : index
    %c2_189 = arith.constant 2 : index
    %355 = arith.index_cast %c3_i32 : i32 to index
    %c0_190 = arith.constant 0 : index
    %c0_191 = arith.constant 0 : index
    %356 = vector.load %arg10[%c0_188, %c2_189, %355, %c0_190, %c0_191] : memref<2x4x8x2x32xf32, #tpu.memory_space<vmem>>, vector<1x1x1x2x32xf32>
    %357 = vector.shape_cast %356 : vector<1x1x1x2x32xf32> to vector<2x32xf32>
    %358 = arith.mulf %81, %288 : vector<2x32xf32>
    %359 = arith.addf %357, %358 : vector<2x32xf32>
    %360 = arith.addf %359, %61 : vector<2x32xf32>
    %361 = arith.negf %360 : vector<2x32xf32>
    %362 = math.exp %361 : vector<2x32xf32>
    %cst_192 = arith.constant 1.000000e+00 : f32
    %363 = vector.broadcast %cst_192 : f32 to vector<2x32xf32>
    %364 = arith.addf %363, %362 : vector<2x32xf32>
    %365 = arith.divf %363, %364 : vector<2x32xf32>
    %366 = arith.mulf %354, %288 : vector<2x32xf32>
    %cst_193 = arith.constant 1.000000e+00 : f32
    %367 = vector.broadcast %cst_193 : f32 to vector<2x32xf32>
    %368 = arith.subf %367, %354 : vector<2x32xf32>
    %c0_194 = arith.constant 0 : index
    %c0_195 = arith.constant 0 : index
    %369 = arith.index_cast %c3_i32 : i32 to index
    %c0_196 = arith.constant 0 : index
    %c0_197 = arith.constant 0 : index
    %370 = vector.load %arg10[%c0_194, %c0_195, %369, %c0_196, %c0_197] : memref<2x4x8x2x32xf32, #tpu.memory_space<vmem>>, vector<1x1x1x2x32xf32>
    %371 = vector.shape_cast %370 : vector<1x1x1x2x32xf32> to vector<2x32xf32>
    %372 = arith.mulf %368, %371 : vector<2x32xf32>
    %373 = arith.addf %366, %372 : vector<2x32xf32>
    %374 = arith.mulf %365, %373 : vector<2x32xf32>
    %cst_198 = arith.constant 1.000000e+00 : f32
    %375 = vector.broadcast %cst_198 : f32 to vector<2x32xf32>
    %376 = arith.subf %375, %365 : vector<2x32xf32>
    %c0_199 = arith.constant 0 : index
    %c3_200 = arith.constant 3 : index
    %377 = arith.index_cast %c3_i32 : i32 to index
    %c0_201 = arith.constant 0 : index
    %c0_202 = arith.constant 0 : index
    %378 = vector.load %arg10[%c0_199, %c3_200, %377, %c0_201, %c0_202] : memref<2x4x8x2x32xf32, #tpu.memory_space<vmem>>, vector<1x1x1x2x32xf32>
    %379 = vector.shape_cast %378 : vector<1x1x1x2x32xf32> to vector<2x32xf32>
    %380 = arith.mulf %376, %379 : vector<2x32xf32>
    %381 = arith.addf %374, %380 : vector<2x32xf32>
    %382 = arith.index_cast %c3_i32 : i32 to index
    %c0_203 = arith.constant 0 : index
    %c0_204 = arith.constant 0 : index
    %383 = vector.load %arg11[%382, %c0_203, %c0_204] : memref<8x2x32xf32, #tpu.memory_space<vmem>>, vector<1x2x32xf32>
    %384 = vector.shape_cast %383 : vector<1x2x32xf32> to vector<2x32xf32>
    %385 = vector.shape_cast %381 : vector<2x32xf32> to vector<1x2x32xf32>
    tpu.vector_store %arg11[%382, %c0_203, %c0_204], %385 {strides = array<i32>} : memref<8x2x32xf32, #tpu.memory_space<vmem>>, vector<1x2x32xf32>,
    %c1_205 = arith.constant 1 : index
    %c1_206 = arith.constant 1 : index
    %386 = arith.index_cast %343 : i32 to index
    %c0_207 = arith.constant 0 : index
    %c0_208 = arith.constant 0 : index
    %387 = vector.load %arg10[%c1_205, %c1_206, %386, %c0_207, %c0_208] : memref<2x4x8x2x32xf32, #tpu.memory_space<vmem>>, vector<1x1x1x2x32xf32>
    %388 = vector.shape_cast %387 : vector<1x1x1x2x32xf32> to vector<2x32xf32>
    %389 = arith.mulf %76, %330 : vector<2x32xf32>
    %390 = arith.addf %388, %389 : vector<2x32xf32>
    %391 = arith.addf %390, %56 : vector<2x32xf32>
    %392 = arith.negf %391 : vector<2x32xf32>
    %393 = math.exp %392 : vector<2x32xf32>
    %cst_209 = arith.constant 1.000000e+00 : f32
    %394 = vector.broadcast %cst_209 : f32 to vector<2x32xf32>
    %395 = arith.addf %394, %393 : vector<2x32xf32>
    %396 = arith.divf %394, %395 : vector<2x32xf32>
    %c1_210 = arith.constant 1 : index
    %c2_211 = arith.constant 2 : index
    %397 = arith.index_cast %343 : i32 to index
    %c0_212 = arith.constant 0 : index
    %c0_213 = arith.constant 0 : index
    %398 = vector.load %arg10[%c1_210, %c2_211, %397, %c0_212, %c0_213] : memref<2x4x8x2x32xf32, #tpu.memory_space<vmem>>, vector<1x1x1x2x32xf32>
    %399 = vector.shape_cast %398 : vector<1x1x1x2x32xf32> to vector<2x32xf32>
    %400 = arith.mulf %86, %330 : vector<2x32xf32>
    %401 = arith.addf %399, %400 : vector<2x32xf32>
    %402 = arith.addf %401, %66 : vector<2x32xf32>
    %403 = arith.negf %402 : vector<2x32xf32>
    %404 = math.exp %403 : vector<2x32xf32>
    %cst_214 = arith.constant 1.000000e+00 : f32
    %405 = vector.broadcast %cst_214 : f32 to vector<2x32xf32>
    %406 = arith.addf %405, %404 : vector<2x32xf32>
    %407 = arith.divf %405, %406 : vector<2x32xf32>
    %408 = arith.mulf %396, %330 : vector<2x32xf32>
    %cst_215 = arith.constant 1.000000e+00 : f32
    %409 = vector.broadcast %cst_215 : f32 to vector<2x32xf32>
    %410 = arith.subf %409, %396 : vector<2x32xf32>
    %c1_216 = arith.constant 1 : index
    %c0_217 = arith.constant 0 : index
    %411 = arith.index_cast %343 : i32 to index
    %c0_218 = arith.constant 0 : index
    %c0_219 = arith.constant 0 : index
    %412 = vector.load %arg10[%c1_216, %c0_217, %411, %c0_218, %c0_219] : memref<2x4x8x2x32xf32, #tpu.memory_space<vmem>>, vector<1x1x1x2x32xf32>
    %413 = vector.shape_cast %412 : vector<1x1x1x2x32xf32> to vector<2x32xf32>
    %414 = arith.mulf %410, %413 : vector<2x32xf32>
    %415 = arith.addf %408, %414 : vector<2x32xf32>
    %416 = arith.mulf %407, %415 : vector<2x32xf32>
    %cst_220 = arith.constant 1.000000e+00 : f32
    %417 = vector.broadcast %cst_220 : f32 to vector<2x32xf32>
    %418 = arith.subf %417, %407 : vector<2x32xf32>
    %c1_221 = arith.constant 1 : index
    %c3_222 = arith.constant 3 : index
    %419 = arith.index_cast %343 : i32 to index
    %c0_223 = arith.constant 0 : index
    %c0_224 = arith.constant 0 : index
    %420 = vector.load %arg10[%c1_221, %c3_222, %419, %c0_223, %c0_224] : memref<2x4x8x2x32xf32, #tpu.memory_space<vmem>>, vector<1x1x1x2x32xf32>
    %421 = vector.shape_cast %420 : vector<1x1x1x2x32xf32> to vector<2x32xf32>
    %422 = arith.mulf %418, %421 : vector<2x32xf32>
    %423 = arith.addf %416, %422 : vector<2x32xf32>
    %424 = arith.index_cast %343 : i32 to index
    %c0_225 = arith.constant 0 : index
    %c0_226 = arith.constant 0 : index
    %425 = vector.load %arg12[%424, %c0_225, %c0_226] : memref<8x2x32xf32, #tpu.memory_space<vmem>>, vector<1x2x32xf32>
    %426 = vector.shape_cast %425 : vector<1x2x32xf32> to vector<2x32xf32>
    %427 = vector.shape_cast %423 : vector<2x32xf32> to vector<1x2x32xf32>
    tpu.vector_store %arg12[%424, %c0_225, %c0_226], %427 {strides = array<i32>} : memref<8x2x32xf32, #tpu.memory_space<vmem>>, vector<1x2x32xf32>,
    %c4_i32 = arith.constant 4 : i32
    %c7_i32_227 = arith.constant 7 : i32
    %428 = arith.subi %c7_i32_227, %c4_i32 : i32
    %c0_228 = arith.constant 0 : index
    %c1_229 = arith.constant 1 : index
    %429 = arith.index_cast %c4_i32 : i32 to index
    %c0_230 = arith.constant 0 : index
    %c0_231 = arith.constant 0 : index
    %430 = vector.load %arg10[%c0_228, %c1_229, %429, %c0_230, %c0_231] : memref<2x4x8x2x32xf32, #tpu.memory_space<vmem>>, vector<1x1x1x2x32xf32>
    %431 = vector.shape_cast %430 : vector<1x1x1x2x32xf32> to vector<2x32xf32>
    %432 = arith.mulf %71, %373 : vector<2x32xf32>
    %433 = arith.addf %431, %432 : vector<2x32xf32>
    %434 = arith.addf %433, %51 : vector<2x32xf32>
    %435 = arith.negf %434 : vector<2x32xf32>
    %436 = math.exp %435 : vector<2x32xf32>
    %cst_232 = arith.constant 1.000000e+00 : f32
    %437 = vector.broadcast %cst_232 : f32 to vector<2x32xf32>
    %438 = arith.addf %437, %436 : vector<2x32xf32>
    %439 = arith.divf %437, %438 : vector<2x32xf32>
    %c0_233 = arith.constant 0 : index
    %c2_234 = arith.constant 2 : index
    %440 = arith.index_cast %c4_i32 : i32 to index
    %c0_235 = arith.constant 0 : index
    %c0_236 = arith.constant 0 : index
    %441 = vector.load %arg10[%c0_233, %c2_234, %440, %c0_235, %c0_236] : memref<2x4x8x2x32xf32, #tpu.memory_space<vmem>>, vector<1x1x1x2x32xf32>
    %442 = vector.shape_cast %441 : vector<1x1x1x2x32xf32> to vector<2x32xf32>
    %443 = arith.mulf %81, %373 : vector<2x32xf32>
    %444 = arith.addf %442, %443 : vector<2x32xf32>
    %445 = arith.addf %444, %61 : vector<2x32xf32>
    %446 = arith.negf %445 : vector<2x32xf32>
    %447 = math.exp %446 : vector<2x32xf32>
    %cst_237 = arith.constant 1.000000e+00 : f32
    %448 = vector.broadcast %cst_237 : f32 to vector<2x32xf32>
    %449 = arith.addf %448, %447 : vector<2x32xf32>
    %450 = arith.divf %448, %449 : vector<2x32xf32>
    %451 = arith.mulf %439, %373 : vector<2x32xf32>
    %cst_238 = arith.constant 1.000000e+00 : f32
    %452 = vector.broadcast %cst_238 : f32 to vector<2x32xf32>
    %453 = arith.subf %452, %439 : vector<2x32xf32>
    %c0_239 = arith.constant 0 : index
    %c0_240 = arith.constant 0 : index
    %454 = arith.index_cast %c4_i32 : i32 to index
    %c0_241 = arith.constant 0 : index
    %c0_242 = arith.constant 0 : index
    %455 = vector.load %arg10[%c0_239, %c0_240, %454, %c0_241, %c0_242] : memref<2x4x8x2x32xf32, #tpu.memory_space<vmem>>, vector<1x1x1x2x32xf32>
    %456 = vector.shape_cast %455 : vector<1x1x1x2x32xf32> to vector<2x32xf32>
    %457 = arith.mulf %453, %456 : vector<2x32xf32>
    %458 = arith.addf %451, %457 : vector<2x32xf32>
    %459 = arith.mulf %450, %458 : vector<2x32xf32>
    %cst_243 = arith.constant 1.000000e+00 : f32
    %460 = vector.broadcast %cst_243 : f32 to vector<2x32xf32>
    %461 = arith.subf %460, %450 : vector<2x32xf32>
    %c0_244 = arith.constant 0 : index
    %c3_245 = arith.constant 3 : index
    %462 = arith.index_cast %c4_i32 : i32 to index
    %c0_246 = arith.constant 0 : index
    %c0_247 = arith.constant 0 : index
    %463 = vector.load %arg10[%c0_244, %c3_245, %462, %c0_246, %c0_247] : memref<2x4x8x2x32xf32, #tpu.memory_space<vmem>>, vector<1x1x1x2x32xf32>
    %464 = vector.shape_cast %463 : vector<1x1x1x2x32xf32> to vector<2x32xf32>
    %465 = arith.mulf %461, %464 : vector<2x32xf32>
    %466 = arith.addf %459, %465 : vector<2x32xf32>
    %467 = arith.index_cast %c4_i32 : i32 to index
    %c0_248 = arith.constant 0 : index
    %c0_249 = arith.constant 0 : index
    %468 = vector.load %arg11[%467, %c0_248, %c0_249] : memref<8x2x32xf32, #tpu.memory_space<vmem>>, vector<1x2x32xf32>
    %469 = vector.shape_cast %468 : vector<1x2x32xf32> to vector<2x32xf32>
    %470 = vector.shape_cast %466 : vector<2x32xf32> to vector<1x2x32xf32>
    tpu.vector_store %arg11[%467, %c0_248, %c0_249], %470 {strides = array<i32>} : memref<8x2x32xf32, #tpu.memory_space<vmem>>, vector<1x2x32xf32>,
    %c1_250 = arith.constant 1 : index
    %c1_251 = arith.constant 1 : index
    %471 = arith.index_cast %428 : i32 to index
    %c0_252 = arith.constant 0 : index
    %c0_253 = arith.constant 0 : index
    %472 = vector.load %arg10[%c1_250, %c1_251, %471, %c0_252, %c0_253] : memref<2x4x8x2x32xf32, #tpu.memory_space<vmem>>, vector<1x1x1x2x32xf32>
    %473 = vector.shape_cast %472 : vector<1x1x1x2x32xf32> to vector<2x32xf32>
    %474 = arith.mulf %76, %415 : vector<2x32xf32>
    %475 = arith.addf %473, %474 : vector<2x32xf32>
    %476 = arith.addf %475, %56 : vector<2x32xf32>
    %477 = arith.negf %476 : vector<2x32xf32>
    %478 = math.exp %477 : vector<2x32xf32>
    %cst_254 = arith.constant 1.000000e+00 : f32
    %479 = vector.broadcast %cst_254 : f32 to vector<2x32xf32>
    %480 = arith.addf %479, %478 : vector<2x32xf32>
    %481 = arith.divf %479, %480 : vector<2x32xf32>
    %c1_255 = arith.constant 1 : index
    %c2_256 = arith.constant 2 : index
    %482 = arith.index_cast %428 : i32 to index
    %c0_257 = arith.constant 0 : index
    %c0_258 = arith.constant 0 : index
    %483 = vector.load %arg10[%c1_255, %c2_256, %482, %c0_257, %c0_258] : memref<2x4x8x2x32xf32, #tpu.memory_space<vmem>>, vector<1x1x1x2x32xf32>
    %484 = vector.shape_cast %483 : vector<1x1x1x2x32xf32> to vector<2x32xf32>
    %485 = arith.mulf %86, %415 : vector<2x32xf32>
    %486 = arith.addf %484, %485 : vector<2x32xf32>
    %487 = arith.addf %486, %66 : vector<2x32xf32>
    %488 = arith.negf %487 : vector<2x32xf32>
    %489 = math.exp %488 : vector<2x32xf32>
    %cst_259 = arith.constant 1.000000e+00 : f32
    %490 = vector.broadcast %cst_259 : f32 to vector<2x32xf32>
    %491 = arith.addf %490, %489 : vector<2x32xf32>
    %492 = arith.divf %490, %491 : vector<2x32xf32>
    %493 = arith.mulf %481, %415 : vector<2x32xf32>
    %cst_260 = arith.constant 1.000000e+00 : f32
    %494 = vector.broadcast %cst_260 : f32 to vector<2x32xf32>
    %495 = arith.subf %494, %481 : vector<2x32xf32>
    %c1_261 = arith.constant 1 : index
    %c0_262 = arith.constant 0 : index
    %496 = arith.index_cast %428 : i32 to index
    %c0_263 = arith.constant 0 : index
    %c0_264 = arith.constant 0 : index
    %497 = vector.load %arg10[%c1_261, %c0_262, %496, %c0_263, %c0_264] : memref<2x4x8x2x32xf32, #tpu.memory_space<vmem>>, vector<1x1x1x2x32xf32>
    %498 = vector.shape_cast %497 : vector<1x1x1x2x32xf32> to vector<2x32xf32>
    %499 = arith.mulf %495, %498 : vector<2x32xf32>
    %500 = arith.addf %493, %499 : vector<2x32xf32>
    %501 = arith.mulf %492, %500 : vector<2x32xf32>
    %cst_265 = arith.constant 1.000000e+00 : f32
    %502 = vector.broadcast %cst_265 : f32 to vector<2x32xf32>
    %503 = arith.subf %502, %492 : vector<2x32xf32>
    %c1_266 = arith.constant 1 : index
    %c3_267 = arith.constant 3 : index
    %504 = arith.index_cast %428 : i32 to index
    %c0_268 = arith.constant 0 : index
    %c0_269 = arith.constant 0 : index
    %505 = vector.load %arg10[%c1_266, %c3_267, %504, %c0_268, %c0_269] : memref<2x4x8x2x32xf32, #tpu.memory_space<vmem>>, vector<1x1x1x2x32xf32>
    %506 = vector.shape_cast %505 : vector<1x1x1x2x32xf32> to vector<2x32xf32>
    %507 = arith.mulf %503, %506 : vector<2x32xf32>
    %508 = arith.addf %501, %507 : vector<2x32xf32>
    %509 = arith.index_cast %428 : i32 to index
    %c0_270 = arith.constant 0 : index
    %c0_271 = arith.constant 0 : index
    %510 = vector.load %arg12[%509, %c0_270, %c0_271] : memref<8x2x32xf32, #tpu.memory_space<vmem>>, vector<1x2x32xf32>
    %511 = vector.shape_cast %510 : vector<1x2x32xf32> to vector<2x32xf32>
    %512 = vector.shape_cast %508 : vector<2x32xf32> to vector<1x2x32xf32>
    tpu.vector_store %arg12[%509, %c0_270, %c0_271], %512 {strides = array<i32>} : memref<8x2x32xf32, #tpu.memory_space<vmem>>, vector<1x2x32xf32>,
    %c5_i32 = arith.constant 5 : i32
    %c7_i32_272 = arith.constant 7 : i32
    %513 = arith.subi %c7_i32_272, %c5_i32 : i32
    %c0_273 = arith.constant 0 : index
    %c1_274 = arith.constant 1 : index
    %514 = arith.index_cast %c5_i32 : i32 to index
    %c0_275 = arith.constant 0 : index
    %c0_276 = arith.constant 0 : index
    %515 = vector.load %arg10[%c0_273, %c1_274, %514, %c0_275, %c0_276] : memref<2x4x8x2x32xf32, #tpu.memory_space<vmem>>, vector<1x1x1x2x32xf32>
    %516 = vector.shape_cast %515 : vector<1x1x1x2x32xf32> to vector<2x32xf32>
    %517 = arith.mulf %71, %458 : vector<2x32xf32>
    %518 = arith.addf %516, %517 : vector<2x32xf32>
    %519 = arith.addf %518, %51 : vector<2x32xf32>
    %520 = arith.negf %519 : vector<2x32xf32>
    %521 = math.exp %520 : vector<2x32xf32>
    %cst_277 = arith.constant 1.000000e+00 : f32
    %522 = vector.broadcast %cst_277 : f32 to vector<2x32xf32>
    %523 = arith.addf %522, %521 : vector<2x32xf32>
    %524 = arith.divf %522, %523 : vector<2x32xf32>
    %c0_278 = arith.constant 0 : index
    %c2_279 = arith.constant 2 : index
    %525 = arith.index_cast %c5_i32 : i32 to index
    %c0_280 = arith.constant 0 : index
    %c0_281 = arith.constant 0 : index
    %526 = vector.load %arg10[%c0_278, %c2_279, %525, %c0_280, %c0_281] : memref<2x4x8x2x32xf32, #tpu.memory_space<vmem>>, vector<1x1x1x2x32xf32>
    %527 = vector.shape_cast %526 : vector<1x1x1x2x32xf32> to vector<2x32xf32>
    %528 = arith.mulf %81, %458 : vector<2x32xf32>
    %529 = arith.addf %527, %528 : vector<2x32xf32>
    %530 = arith.addf %529, %61 : vector<2x32xf32>
    %531 = arith.negf %530 : vector<2x32xf32>
    %532 = math.exp %531 : vector<2x32xf32>
    %cst_282 = arith.constant 1.000000e+00 : f32
    %533 = vector.broadcast %cst_282 : f32 to vector<2x32xf32>
    %534 = arith.addf %533, %532 : vector<2x32xf32>
    %535 = arith.divf %533, %534 : vector<2x32xf32>
    %536 = arith.mulf %524, %458 : vector<2x32xf32>
    %cst_283 = arith.constant 1.000000e+00 : f32
    %537 = vector.broadcast %cst_283 : f32 to vector<2x32xf32>
    %538 = arith.subf %537, %524 : vector<2x32xf32>
    %c0_284 = arith.constant 0 : index
    %c0_285 = arith.constant 0 : index
    %539 = arith.index_cast %c5_i32 : i32 to index
    %c0_286 = arith.constant 0 : index
    %c0_287 = arith.constant 0 : index
    %540 = vector.load %arg10[%c0_284, %c0_285, %539, %c0_286, %c0_287] : memref<2x4x8x2x32xf32, #tpu.memory_space<vmem>>, vector<1x1x1x2x32xf32>
    %541 = vector.shape_cast %540 : vector<1x1x1x2x32xf32> to vector<2x32xf32>
    %542 = arith.mulf %538, %541 : vector<2x32xf32>
    %543 = arith.addf %536, %542 : vector<2x32xf32>
    %544 = arith.mulf %535, %543 : vector<2x32xf32>
    %cst_288 = arith.constant 1.000000e+00 : f32
    %545 = vector.broadcast %cst_288 : f32 to vector<2x32xf32>
    %546 = arith.subf %545, %535 : vector<2x32xf32>
    %c0_289 = arith.constant 0 : index
    %c3_290 = arith.constant 3 : index
    %547 = arith.index_cast %c5_i32 : i32 to index
    %c0_291 = arith.constant 0 : index
    %c0_292 = arith.constant 0 : index
    %548 = vector.load %arg10[%c0_289, %c3_290, %547, %c0_291, %c0_292] : memref<2x4x8x2x32xf32, #tpu.memory_space<vmem>>, vector<1x1x1x2x32xf32>
    %549 = vector.shape_cast %548 : vector<1x1x1x2x32xf32> to vector<2x32xf32>
    %550 = arith.mulf %546, %549 : vector<2x32xf32>
    %551 = arith.addf %544, %550 : vector<2x32xf32>
    %552 = arith.index_cast %c5_i32 : i32 to index
    %c0_293 = arith.constant 0 : index
    %c0_294 = arith.constant 0 : index
    %553 = vector.load %arg11[%552, %c0_293, %c0_294] : memref<8x2x32xf32, #tpu.memory_space<vmem>>, vector<1x2x32xf32>
    %554 = vector.shape_cast %553 : vector<1x2x32xf32> to vector<2x32xf32>
    %555 = vector.shape_cast %551 : vector<2x32xf32> to vector<1x2x32xf32>
    tpu.vector_store %arg11[%552, %c0_293, %c0_294], %555 {strides = array<i32>} : memref<8x2x32xf32, #tpu.memory_space<vmem>>, vector<1x2x32xf32>,
    %c1_295 = arith.constant 1 : index
    %c1_296 = arith.constant 1 : index
    %556 = arith.index_cast %513 : i32 to index
    %c0_297 = arith.constant 0 : index
    %c0_298 = arith.constant 0 : index
    %557 = vector.load %arg10[%c1_295, %c1_296, %556, %c0_297, %c0_298] : memref<2x4x8x2x32xf32, #tpu.memory_space<vmem>>, vector<1x1x1x2x32xf32>
    %558 = vector.shape_cast %557 : vector<1x1x1x2x32xf32> to vector<2x32xf32>
    %559 = arith.mulf %76, %500 : vector<2x32xf32>
    %560 = arith.addf %558, %559 : vector<2x32xf32>
    %561 = arith.addf %560, %56 : vector<2x32xf32>
    %562 = arith.negf %561 : vector<2x32xf32>
    %563 = math.exp %562 : vector<2x32xf32>
    %cst_299 = arith.constant 1.000000e+00 : f32
    %564 = vector.broadcast %cst_299 : f32 to vector<2x32xf32>
    %565 = arith.addf %564, %563 : vector<2x32xf32>
    %566 = arith.divf %564, %565 : vector<2x32xf32>
    %c1_300 = arith.constant 1 : index
    %c2_301 = arith.constant 2 : index
    %567 = arith.index_cast %513 : i32 to index
    %c0_302 = arith.constant 0 : index
    %c0_303 = arith.constant 0 : index
    %568 = vector.load %arg10[%c1_300, %c2_301, %567, %c0_302, %c0_303] : memref<2x4x8x2x32xf32, #tpu.memory_space<vmem>>, vector<1x1x1x2x32xf32>
    %569 = vector.shape_cast %568 : vector<1x1x1x2x32xf32> to vector<2x32xf32>
    %570 = arith.mulf %86, %500 : vector<2x32xf32>
    %571 = arith.addf %569, %570 : vector<2x32xf32>
    %572 = arith.addf %571, %66 : vector<2x32xf32>
    %573 = arith.negf %572 : vector<2x32xf32>
    %574 = math.exp %573 : vector<2x32xf32>
    %cst_304 = arith.constant 1.000000e+00 : f32
    %575 = vector.broadcast %cst_304 : f32 to vector<2x32xf32>
    %576 = arith.addf %575, %574 : vector<2x32xf32>
    %577 = arith.divf %575, %576 : vector<2x32xf32>
    %578 = arith.mulf %566, %500 : vector<2x32xf32>
    %cst_305 = arith.constant 1.000000e+00 : f32
    %579 = vector.broadcast %cst_305 : f32 to vector<2x32xf32>
    %580 = arith.subf %579, %566 : vector<2x32xf32>
    %c1_306 = arith.constant 1 : index
    %c0_307 = arith.constant 0 : index
    %581 = arith.index_cast %513 : i32 to index
    %c0_308 = arith.constant 0 : index
    %c0_309 = arith.constant 0 : index
    %582 = vector.load %arg10[%c1_306, %c0_307, %581, %c0_308, %c0_309] : memref<2x4x8x2x32xf32, #tpu.memory_space<vmem>>, vector<1x1x1x2x32xf32>
    %583 = vector.shape_cast %582 : vector<1x1x1x2x32xf32> to vector<2x32xf32>
    %584 = arith.mulf %580, %583 : vector<2x32xf32>
    %585 = arith.addf %578, %584 : vector<2x32xf32>
    %586 = arith.mulf %577, %585 : vector<2x32xf32>
    %cst_310 = arith.constant 1.000000e+00 : f32
    %587 = vector.broadcast %cst_310 : f32 to vector<2x32xf32>
    %588 = arith.subf %587, %577 : vector<2x32xf32>
    %c1_311 = arith.constant 1 : index
    %c3_312 = arith.constant 3 : index
    %589 = arith.index_cast %513 : i32 to index
    %c0_313 = arith.constant 0 : index
    %c0_314 = arith.constant 0 : index
    %590 = vector.load %arg10[%c1_311, %c3_312, %589, %c0_313, %c0_314] : memref<2x4x8x2x32xf32, #tpu.memory_space<vmem>>, vector<1x1x1x2x32xf32>
    %591 = vector.shape_cast %590 : vector<1x1x1x2x32xf32> to vector<2x32xf32>
    %592 = arith.mulf %588, %591 : vector<2x32xf32>
    %593 = arith.addf %586, %592 : vector<2x32xf32>
    %594 = arith.index_cast %513 : i32 to index
    %c0_315 = arith.constant 0 : index
    %c0_316 = arith.constant 0 : index
    %595 = vector.load %arg12[%594, %c0_315, %c0_316] : memref<8x2x32xf32, #tpu.memory_space<vmem>>, vector<1x2x32xf32>
    %596 = vector.shape_cast %595 : vector<1x2x32xf32> to vector<2x32xf32>
    %597 = vector.shape_cast %593 : vector<2x32xf32> to vector<1x2x32xf32>
    tpu.vector_store %arg12[%594, %c0_315, %c0_316], %597 {strides = array<i32>} : memref<8x2x32xf32, #tpu.memory_space<vmem>>, vector<1x2x32xf32>,
    %c6_i32 = arith.constant 6 : i32
    %c7_i32_317 = arith.constant 7 : i32
    %598 = arith.subi %c7_i32_317, %c6_i32 : i32
    %c0_318 = arith.constant 0 : index
    %c1_319 = arith.constant 1 : index
    %599 = arith.index_cast %c6_i32 : i32 to index
    %c0_320 = arith.constant 0 : index
    %c0_321 = arith.constant 0 : index
    %600 = vector.load %arg10[%c0_318, %c1_319, %599, %c0_320, %c0_321] : memref<2x4x8x2x32xf32, #tpu.memory_space<vmem>>, vector<1x1x1x2x32xf32>
    %601 = vector.shape_cast %600 : vector<1x1x1x2x32xf32> to vector<2x32xf32>
    %602 = arith.mulf %71, %543 : vector<2x32xf32>
    %603 = arith.addf %601, %602 : vector<2x32xf32>
    %604 = arith.addf %603, %51 : vector<2x32xf32>
    %605 = arith.negf %604 : vector<2x32xf32>
    %606 = math.exp %605 : vector<2x32xf32>
    %cst_322 = arith.constant 1.000000e+00 : f32
    %607 = vector.broadcast %cst_322 : f32 to vector<2x32xf32>
    %608 = arith.addf %607, %606 : vector<2x32xf32>
    %609 = arith.divf %607, %608 : vector<2x32xf32>
    %c0_323 = arith.constant 0 : index
    %c2_324 = arith.constant 2 : index
    %610 = arith.index_cast %c6_i32 : i32 to index
    %c0_325 = arith.constant 0 : index
    %c0_326 = arith.constant 0 : index
    %611 = vector.load %arg10[%c0_323, %c2_324, %610, %c0_325, %c0_326] : memref<2x4x8x2x32xf32, #tpu.memory_space<vmem>>, vector<1x1x1x2x32xf32>
    %612 = vector.shape_cast %611 : vector<1x1x1x2x32xf32> to vector<2x32xf32>
    %613 = arith.mulf %81, %543 : vector<2x32xf32>
    %614 = arith.addf %612, %613 : vector<2x32xf32>
    %615 = arith.addf %614, %61 : vector<2x32xf32>
    %616 = arith.negf %615 : vector<2x32xf32>
    %617 = math.exp %616 : vector<2x32xf32>
    %cst_327 = arith.constant 1.000000e+00 : f32
    %618 = vector.broadcast %cst_327 : f32 to vector<2x32xf32>
    %619 = arith.addf %618, %617 : vector<2x32xf32>
    %620 = arith.divf %618, %619 : vector<2x32xf32>
    %621 = arith.mulf %609, %543 : vector<2x32xf32>
    %cst_328 = arith.constant 1.000000e+00 : f32
    %622 = vector.broadcast %cst_328 : f32 to vector<2x32xf32>
    %623 = arith.subf %622, %609 : vector<2x32xf32>
    %c0_329 = arith.constant 0 : index
    %c0_330 = arith.constant 0 : index
    %624 = arith.index_cast %c6_i32 : i32 to index
    %c0_331 = arith.constant 0 : index
    %c0_332 = arith.constant 0 : index
    %625 = vector.load %arg10[%c0_329, %c0_330, %624, %c0_331, %c0_332] : memref<2x4x8x2x32xf32, #tpu.memory_space<vmem>>, vector<1x1x1x2x32xf32>
    %626 = vector.shape_cast %625 : vector<1x1x1x2x32xf32> to vector<2x32xf32>
    %627 = arith.mulf %623, %626 : vector<2x32xf32>
    %628 = arith.addf %621, %627 : vector<2x32xf32>
    %629 = arith.mulf %620, %628 : vector<2x32xf32>
    %cst_333 = arith.constant 1.000000e+00 : f32
    %630 = vector.broadcast %cst_333 : f32 to vector<2x32xf32>
    %631 = arith.subf %630, %620 : vector<2x32xf32>
    %c0_334 = arith.constant 0 : index
    %c3_335 = arith.constant 3 : index
    %632 = arith.index_cast %c6_i32 : i32 to index
    %c0_336 = arith.constant 0 : index
    %c0_337 = arith.constant 0 : index
    %633 = vector.load %arg10[%c0_334, %c3_335, %632, %c0_336, %c0_337] : memref<2x4x8x2x32xf32, #tpu.memory_space<vmem>>, vector<1x1x1x2x32xf32>
    %634 = vector.shape_cast %633 : vector<1x1x1x2x32xf32> to vector<2x32xf32>
    %635 = arith.mulf %631, %634 : vector<2x32xf32>
    %636 = arith.addf %629, %635 : vector<2x32xf32>
    %637 = arith.index_cast %c6_i32 : i32 to index
    %c0_338 = arith.constant 0 : index
    %c0_339 = arith.constant 0 : index
    %638 = vector.load %arg11[%637, %c0_338, %c0_339] : memref<8x2x32xf32, #tpu.memory_space<vmem>>, vector<1x2x32xf32>
    %639 = vector.shape_cast %638 : vector<1x2x32xf32> to vector<2x32xf32>
    %640 = vector.shape_cast %636 : vector<2x32xf32> to vector<1x2x32xf32>
    tpu.vector_store %arg11[%637, %c0_338, %c0_339], %640 {strides = array<i32>} : memref<8x2x32xf32, #tpu.memory_space<vmem>>, vector<1x2x32xf32>,
    %c1_340 = arith.constant 1 : index
    %c1_341 = arith.constant 1 : index
    %641 = arith.index_cast %598 : i32 to index
    %c0_342 = arith.constant 0 : index
    %c0_343 = arith.constant 0 : index
    %642 = vector.load %arg10[%c1_340, %c1_341, %641, %c0_342, %c0_343] : memref<2x4x8x2x32xf32, #tpu.memory_space<vmem>>, vector<1x1x1x2x32xf32>
    %643 = vector.shape_cast %642 : vector<1x1x1x2x32xf32> to vector<2x32xf32>
    %644 = arith.mulf %76, %585 : vector<2x32xf32>
    %645 = arith.addf %643, %644 : vector<2x32xf32>
    %646 = arith.addf %645, %56 : vector<2x32xf32>
    %647 = arith.negf %646 : vector<2x32xf32>
    %648 = math.exp %647 : vector<2x32xf32>
    %cst_344 = arith.constant 1.000000e+00 : f32
    %649 = vector.broadcast %cst_344 : f32 to vector<2x32xf32>
    %650 = arith.addf %649, %648 : vector<2x32xf32>
    %651 = arith.divf %649, %650 : vector<2x32xf32>
    %c1_345 = arith.constant 1 : index
    %c2_346 = arith.constant 2 : index
    %652 = arith.index_cast %598 : i32 to index
    %c0_347 = arith.constant 0 : index
    %c0_348 = arith.constant 0 : index
    %653 = vector.load %arg10[%c1_345, %c2_346, %652, %c0_347, %c0_348] : memref<2x4x8x2x32xf32, #tpu.memory_space<vmem>>, vector<1x1x1x2x32xf32>
    %654 = vector.shape_cast %653 : vector<1x1x1x2x32xf32> to vector<2x32xf32>
    %655 = arith.mulf %86, %585 : vector<2x32xf32>
    %656 = arith.addf %654, %655 : vector<2x32xf32>
    %657 = arith.addf %656, %66 : vector<2x32xf32>
    %658 = arith.negf %657 : vector<2x32xf32>
    %659 = math.exp %658 : vector<2x32xf32>
    %cst_349 = arith.constant 1.000000e+00 : f32
    %660 = vector.broadcast %cst_349 : f32 to vector<2x32xf32>
    %661 = arith.addf %660, %659 : vector<2x32xf32>
    %662 = arith.divf %660, %661 : vector<2x32xf32>
    %663 = arith.mulf %651, %585 : vector<2x32xf32>
    %cst_350 = arith.constant 1.000000e+00 : f32
    %664 = vector.broadcast %cst_350 : f32 to vector<2x32xf32>
    %665 = arith.subf %664, %651 : vector<2x32xf32>
    %c1_351 = arith.constant 1 : index
    %c0_352 = arith.constant 0 : index
    %666 = arith.index_cast %598 : i32 to index
    %c0_353 = arith.constant 0 : index
    %c0_354 = arith.constant 0 : index
    %667 = vector.load %arg10[%c1_351, %c0_352, %666, %c0_353, %c0_354] : memref<2x4x8x2x32xf32, #tpu.memory_space<vmem>>, vector<1x1x1x2x32xf32>
    %668 = vector.shape_cast %667 : vector<1x1x1x2x32xf32> to vector<2x32xf32>
    %669 = arith.mulf %665, %668 : vector<2x32xf32>
    %670 = arith.addf %663, %669 : vector<2x32xf32>
    %671 = arith.mulf %662, %670 : vector<2x32xf32>
    %cst_355 = arith.constant 1.000000e+00 : f32
    %672 = vector.broadcast %cst_355 : f32 to vector<2x32xf32>
    %673 = arith.subf %672, %662 : vector<2x32xf32>
    %c1_356 = arith.constant 1 : index
    %c3_357 = arith.constant 3 : index
    %674 = arith.index_cast %598 : i32 to index
    %c0_358 = arith.constant 0 : index
    %c0_359 = arith.constant 0 : index
    %675 = vector.load %arg10[%c1_356, %c3_357, %674, %c0_358, %c0_359] : memref<2x4x8x2x32xf32, #tpu.memory_space<vmem>>, vector<1x1x1x2x32xf32>
    %676 = vector.shape_cast %675 : vector<1x1x1x2x32xf32> to vector<2x32xf32>
    %677 = arith.mulf %673, %676 : vector<2x32xf32>
    %678 = arith.addf %671, %677 : vector<2x32xf32>
    %679 = arith.index_cast %598 : i32 to index
    %c0_360 = arith.constant 0 : index
    %c0_361 = arith.constant 0 : index
    %680 = vector.load %arg12[%679, %c0_360, %c0_361] : memref<8x2x32xf32, #tpu.memory_space<vmem>>, vector<1x2x32xf32>
    %681 = vector.shape_cast %680 : vector<1x2x32xf32> to vector<2x32xf32>
    %682 = vector.shape_cast %678 : vector<2x32xf32> to vector<1x2x32xf32>
    tpu.vector_store %arg12[%679, %c0_360, %c0_361], %682 {strides = array<i32>} : memref<8x2x32xf32, #tpu.memory_space<vmem>>, vector<1x2x32xf32>,
    %c7_i32_362 = arith.constant 7 : i32
    %c7_i32_363 = arith.constant 7 : i32
    %683 = arith.subi %c7_i32_363, %c7_i32_362 : i32
    %c0_364 = arith.constant 0 : index
    %c1_365 = arith.constant 1 : index
    %684 = arith.index_cast %c7_i32_362 : i32 to index
    %c0_366 = arith.constant 0 : index
    %c0_367 = arith.constant 0 : index
    %685 = vector.load %arg10[%c0_364, %c1_365, %684, %c0_366, %c0_367] : memref<2x4x8x2x32xf32, #tpu.memory_space<vmem>>, vector<1x1x1x2x32xf32>
    %686 = vector.shape_cast %685 : vector<1x1x1x2x32xf32> to vector<2x32xf32>
    %687 = arith.mulf %71, %628 : vector<2x32xf32>
    %688 = arith.addf %686, %687 : vector<2x32xf32>
    %689 = arith.addf %688, %51 : vector<2x32xf32>
    %690 = arith.negf %689 : vector<2x32xf32>
    %691 = math.exp %690 : vector<2x32xf32>
    %cst_368 = arith.constant 1.000000e+00 : f32
    %692 = vector.broadcast %cst_368 : f32 to vector<2x32xf32>
    %693 = arith.addf %692, %691 : vector<2x32xf32>
    %694 = arith.divf %692, %693 : vector<2x32xf32>
    %c0_369 = arith.constant 0 : index
    %c2_370 = arith.constant 2 : index
    %695 = arith.index_cast %c7_i32_362 : i32 to index
    %c0_371 = arith.constant 0 : index
    %c0_372 = arith.constant 0 : index
    %696 = vector.load %arg10[%c0_369, %c2_370, %695, %c0_371, %c0_372] : memref<2x4x8x2x32xf32, #tpu.memory_space<vmem>>, vector<1x1x1x2x32xf32>
    %697 = vector.shape_cast %696 : vector<1x1x1x2x32xf32> to vector<2x32xf32>
    %698 = arith.mulf %81, %628 : vector<2x32xf32>
    %699 = arith.addf %697, %698 : vector<2x32xf32>
    %700 = arith.addf %699, %61 : vector<2x32xf32>
    %701 = arith.negf %700 : vector<2x32xf32>
    %702 = math.exp %701 : vector<2x32xf32>
    %cst_373 = arith.constant 1.000000e+00 : f32
    %703 = vector.broadcast %cst_373 : f32 to vector<2x32xf32>
    %704 = arith.addf %703, %702 : vector<2x32xf32>
    %705 = arith.divf %703, %704 : vector<2x32xf32>
    %706 = arith.mulf %694, %628 : vector<2x32xf32>
    %cst_374 = arith.constant 1.000000e+00 : f32
    %707 = vector.broadcast %cst_374 : f32 to vector<2x32xf32>
    %708 = arith.subf %707, %694 : vector<2x32xf32>
    %c0_375 = arith.constant 0 : index
    %c0_376 = arith.constant 0 : index
    %709 = arith.index_cast %c7_i32_362 : i32 to index
    %c0_377 = arith.constant 0 : index
    %c0_378 = arith.constant 0 : index
    %710 = vector.load %arg10[%c0_375, %c0_376, %709, %c0_377, %c0_378] : memref<2x4x8x2x32xf32, #tpu.memory_space<vmem>>, vector<1x1x1x2x32xf32>
    %711 = vector.shape_cast %710 : vector<1x1x1x2x32xf32> to vector<2x32xf32>
    %712 = arith.mulf %708, %711 : vector<2x32xf32>
    %713 = arith.addf %706, %712 : vector<2x32xf32>
    %714 = arith.mulf %705, %713 : vector<2x32xf32>
    %cst_379 = arith.constant 1.000000e+00 : f32
    %715 = vector.broadcast %cst_379 : f32 to vector<2x32xf32>
    %716 = arith.subf %715, %705 : vector<2x32xf32>
    %c0_380 = arith.constant 0 : index
    %c3_381 = arith.constant 3 : index
    %717 = arith.index_cast %c7_i32_362 : i32 to index
    %c0_382 = arith.constant 0 : index
    %c0_383 = arith.constant 0 : index
    %718 = vector.load %arg10[%c0_380, %c3_381, %717, %c0_382, %c0_383] : memref<2x4x8x2x32xf32, #tpu.memory_space<vmem>>, vector<1x1x1x2x32xf32>
    %719 = vector.shape_cast %718 : vector<1x1x1x2x32xf32> to vector<2x32xf32>
    %720 = arith.mulf %716, %719 : vector<2x32xf32>
    %721 = arith.addf %714, %720 : vector<2x32xf32>
    %722 = arith.index_cast %c7_i32_362 : i32 to index
    %c0_384 = arith.constant 0 : index
    %c0_385 = arith.constant 0 : index
    %723 = vector.load %arg11[%722, %c0_384, %c0_385] : memref<8x2x32xf32, #tpu.memory_space<vmem>>, vector<1x2x32xf32>
    %724 = vector.shape_cast %723 : vector<1x2x32xf32> to vector<2x32xf32>
    %725 = vector.shape_cast %721 : vector<2x32xf32> to vector<1x2x32xf32>
    tpu.vector_store %arg11[%722, %c0_384, %c0_385], %725 {strides = array<i32>} : memref<8x2x32xf32, #tpu.memory_space<vmem>>, vector<1x2x32xf32>,
    %c1_386 = arith.constant 1 : index
    %c1_387 = arith.constant 1 : index
    %726 = arith.index_cast %683 : i32 to index
    %c0_388 = arith.constant 0 : index
    %c0_389 = arith.constant 0 : index
    %727 = vector.load %arg10[%c1_386, %c1_387, %726, %c0_388, %c0_389] : memref<2x4x8x2x32xf32, #tpu.memory_space<vmem>>, vector<1x1x1x2x32xf32>
    %728 = vector.shape_cast %727 : vector<1x1x1x2x32xf32> to vector<2x32xf32>
    %729 = arith.mulf %76, %670 : vector<2x32xf32>
    %730 = arith.addf %728, %729 : vector<2x32xf32>
    %731 = arith.addf %730, %56 : vector<2x32xf32>
    %732 = arith.negf %731 : vector<2x32xf32>
    %733 = math.exp %732 : vector<2x32xf32>
    %cst_390 = arith.constant 1.000000e+00 : f32
    %734 = vector.broadcast %cst_390 : f32 to vector<2x32xf32>
    %735 = arith.addf %734, %733 : vector<2x32xf32>
    %736 = arith.divf %734, %735 : vector<2x32xf32>
    %c1_391 = arith.constant 1 : index
    %c2_392 = arith.constant 2 : index
    %737 = arith.index_cast %683 : i32 to index
    %c0_393 = arith.constant 0 : index
    %c0_394 = arith.constant 0 : index
    %738 = vector.load %arg10[%c1_391, %c2_392, %737, %c0_393, %c0_394] : memref<2x4x8x2x32xf32, #tpu.memory_space<vmem>>, vector<1x1x1x2x32xf32>
    %739 = vector.shape_cast %738 : vector<1x1x1x2x32xf32> to vector<2x32xf32>
    %740 = arith.mulf %86, %670 : vector<2x32xf32>
    %741 = arith.addf %739, %740 : vector<2x32xf32>
    %742 = arith.addf %741, %66 : vector<2x32xf32>
    %743 = arith.negf %742 : vector<2x32xf32>
    %744 = math.exp %743 : vector<2x32xf32>
    %cst_395 = arith.constant 1.000000e+00 : f32
    %745 = vector.broadcast %cst_395 : f32 to vector<2x32xf32>
    %746 = arith.addf %745, %744 : vector<2x32xf32>
    %747 = arith.divf %745, %746 : vector<2x32xf32>
    %748 = arith.mulf %736, %670 : vector<2x32xf32>
    %cst_396 = arith.constant 1.000000e+00 : f32
    %749 = vector.broadcast %cst_396 : f32 to vector<2x32xf32>
    %750 = arith.subf %749, %736 : vector<2x32xf32>
    %c1_397 = arith.constant 1 : index
    %c0_398 = arith.constant 0 : index
    %751 = arith.index_cast %683 : i32 to index
    %c0_399 = arith.constant 0 : index
    %c0_400 = arith.constant 0 : index
    %752 = vector.load %arg10[%c1_397, %c0_398, %751, %c0_399, %c0_400] : memref<2x4x8x2x32xf32, #tpu.memory_space<vmem>>, vector<1x1x1x2x32xf32>
    %753 = vector.shape_cast %752 : vector<1x1x1x2x32xf32> to vector<2x32xf32>
    %754 = arith.mulf %750, %753 : vector<2x32xf32>
    %755 = arith.addf %748, %754 : vector<2x32xf32>
    %756 = arith.mulf %747, %755 : vector<2x32xf32>
    %cst_401 = arith.constant 1.000000e+00 : f32
    %757 = vector.broadcast %cst_401 : f32 to vector<2x32xf32>
    %758 = arith.subf %757, %747 : vector<2x32xf32>
    %c1_402 = arith.constant 1 : index
    %c3_403 = arith.constant 3 : index
    %759 = arith.index_cast %683 : i32 to index
    %c0_404 = arith.constant 0 : index
    %c0_405 = arith.constant 0 : index
    %760 = vector.load %arg10[%c1_402, %c3_403, %759, %c0_404, %c0_405] : memref<2x4x8x2x32xf32, #tpu.memory_space<vmem>>, vector<1x1x1x2x32xf32>
    %761 = vector.shape_cast %760 : vector<1x1x1x2x32xf32> to vector<2x32xf32>
    %762 = arith.mulf %758, %761 : vector<2x32xf32>
    %763 = arith.addf %756, %762 : vector<2x32xf32>
    %764 = arith.index_cast %683 : i32 to index
    %c0_406 = arith.constant 0 : index
    %c0_407 = arith.constant 0 : index
    %765 = vector.load %arg12[%764, %c0_406, %c0_407] : memref<8x2x32xf32, #tpu.memory_space<vmem>>, vector<1x2x32xf32>
    %766 = vector.shape_cast %765 : vector<1x2x32xf32> to vector<2x32xf32>
    %767 = vector.shape_cast %763 : vector<2x32xf32> to vector<1x2x32xf32>
    tpu.vector_store %arg12[%764, %c0_406, %c0_407], %767 {strides = array<i32>} : memref<8x2x32xf32, #tpu.memory_space<vmem>>, vector<1x2x32xf32>,
    %c8_i32 = arith.constant 8 : i32
    %c0_408 = arith.constant 0 : index
    %c0_409 = arith.constant 0 : index
    %c0_410 = arith.constant 0 : index
    %768 = vector.load %arg11[%c0_408, %c0_409, %c0_410] : memref<8x2x32xf32, #tpu.memory_space<vmem>>, vector<8x2x32xf32>
    %c0_411 = arith.constant 0 : index
    %c0_412 = arith.constant 0 : index
    %c0_413 = arith.constant 0 : index
    %769 = vector.load %arg12[%c0_411, %c0_412, %c0_413] : memref<8x2x32xf32, #tpu.memory_space<vmem>>, vector<8x2x32xf32>
    %770 = tpu.concatenate %768, %769 in 2 : vector<8x2x32xf32>, vector<8x2x32xf32> -> vector<8x2x64xf32>
    %c0_414 = arith.constant 0 : index
    %c0_415 = arith.constant 0 : index
    %c0_416 = arith.constant 0 : index
    %771 = vector.load %arg9[%c0_414, %c0_415, %c0_416] : memref<8x2x64xf32, #tpu.memory_space<vmem>>, vector<8x2x64xf32>
    tpu.vector_store %arg9[%c0_414, %c0_415, %c0_416], %770 {strides = array<i32>} : memref<8x2x64xf32, #tpu.memory_space<vmem>>, vector<8x2x64xf32>,
    %c0_417 = arith.constant 0 : index
    %c0_418 = arith.constant 0 : index
    %c0_419 = arith.constant 0 : index
    %772 = vector.load %arg9[%c0_417, %c0_418, %c0_419] : memref<8x2x64xf32, #tpu.memory_space<vmem>>, vector<8x2x64xf32>
    %773 = vector.shape_cast %772 : vector<8x2x64xf32> to vector<16x64xf32>
    %774 = arith.truncf %773 : vector<16x64xf32> to vector<16x64xbf16>
    %c0_420 = arith.constant 0 : index
    %c0_421 = arith.constant 0 : index
    %775 = vector.load %arg5[%c0_420, %c0_421] : memref<64x192xbf16, #tpu.memory_space<vmem>>, vector<64x192xbf16>
    %cst_422 = arith.constant dense<0.000000e+00> : vector<16x192xf32>
    %776 = tpu.matmul %774, %775, %cst_422 {dimension_numbers = #tpu.dot_dimension_numbers<[1], [0], [0], [1], [0, 0, 1, 1], [], []>} : vector<16x64xbf16>, vector<64x192xbf16>, vector<16x192xf32> -> vector<16x192xf32>
    %777 = vector.extract_strided_slice %776 {offsets = [0, 0], sizes = [16, 32], strides = [1, 1]} : vector<16x192xf32> to vector<16x32xf32>
    %778 = vector.shape_cast %777 : vector<16x32xf32> to vector<8x2x32xf32>
    %c0_423 = arith.constant 0 : index
    %c0_424 = arith.constant 0 : index
    %c0_425 = arith.constant 0 : index
    %c0_426 = arith.constant 0 : index
    %c0_427 = arith.constant 0 : index
    %779 = vector.load %arg10[%c0_423, %c0_424, %c0_425, %c0_426, %c0_427] : memref<2x4x8x2x32xf32, #tpu.memory_space<vmem>>, vector<1x1x8x2x32xf32>
    %780 = vector.shape_cast %779 : vector<1x1x8x2x32xf32> to vector<8x2x32xf32>
    %781 = vector.shape_cast %778 : vector<8x2x32xf32> to vector<1x1x8x2x32xf32>
    tpu.vector_store %arg10[%c0_423, %c0_424, %c0_425, %c0_426, %c0_427], %781 {strides = array<i32>} : memref<2x4x8x2x32xf32, #tpu.memory_space<vmem>>, vector<1x1x8x2x32xf32>,
    %782 = vector.extract_strided_slice %776 {offsets = [0, 32], sizes = [16, 32], strides = [1, 1]} : vector<16x192xf32> to vector<16x32xf32>
    %783 = vector.shape_cast %782 : vector<16x32xf32> to vector<8x2x32xf32>
    %c0_428 = arith.constant 0 : index
    %c1_429 = arith.constant 1 : index
    %c0_430 = arith.constant 0 : index
    %c0_431 = arith.constant 0 : index
    %c0_432 = arith.constant 0 : index
    %784 = vector.load %arg10[%c0_428, %c1_429, %c0_430, %c0_431, %c0_432] : memref<2x4x8x2x32xf32, #tpu.memory_space<vmem>>, vector<1x1x8x2x32xf32>
    %785 = vector.shape_cast %784 : vector<1x1x8x2x32xf32> to vector<8x2x32xf32>
    %786 = vector.shape_cast %783 : vector<8x2x32xf32> to vector<1x1x8x2x32xf32>
    tpu.vector_store %arg10[%c0_428, %c1_429, %c0_430, %c0_431, %c0_432], %786 {strides = array<i32>} : memref<2x4x8x2x32xf32, #tpu.memory_space<vmem>>, vector<1x1x8x2x32xf32>,
    %787 = vector.extract_strided_slice %776 {offsets = [0, 64], sizes = [16, 32], strides = [1, 1]} : vector<16x192xf32> to vector<16x32xf32>
    %788 = vector.shape_cast %787 : vector<16x32xf32> to vector<8x2x32xf32>
    %c0_433 = arith.constant 0 : index
    %c2_434 = arith.constant 2 : index
    %c0_435 = arith.constant 0 : index
    %c0_436 = arith.constant 0 : index
    %c0_437 = arith.constant 0 : index
    %789 = vector.load %arg10[%c0_433, %c2_434, %c0_435, %c0_436, %c0_437] : memref<2x4x8x2x32xf32, #tpu.memory_space<vmem>>, vector<1x1x8x2x32xf32>
    %790 = vector.shape_cast %789 : vector<1x1x8x2x32xf32> to vector<8x2x32xf32>
    %791 = vector.shape_cast %788 : vector<8x2x32xf32> to vector<1x1x8x2x32xf32>
    tpu.vector_store %arg10[%c0_433, %c2_434, %c0_435, %c0_436, %c0_437], %791 {strides = array<i32>} : memref<2x4x8x2x32xf32, #tpu.memory_space<vmem>>, vector<1x1x8x2x32xf32>,
    %792 = vector.extract_strided_slice %772 {offsets = [0, 0, 0], sizes = [8, 2, 32], strides = [1, 1, 1]} : vector<8x2x64xf32> to vector<8x2x32xf32>
    %c0_438 = arith.constant 0 : index
    %c3_439 = arith.constant 3 : index
    %c0_440 = arith.constant 0 : index
    %c0_441 = arith.constant 0 : index
    %c0_442 = arith.constant 0 : index
    %793 = vector.load %arg10[%c0_438, %c3_439, %c0_440, %c0_441, %c0_442] : memref<2x4x8x2x32xf32, #tpu.memory_space<vmem>>, vector<1x1x8x2x32xf32>
    %794 = vector.shape_cast %793 : vector<1x1x8x2x32xf32> to vector<8x2x32xf32>
    %795 = vector.shape_cast %792 : vector<8x2x32xf32> to vector<1x1x8x2x32xf32>
    tpu.vector_store %arg10[%c0_438, %c3_439, %c0_440, %c0_441, %c0_442], %795 {strides = array<i32>} : memref<2x4x8x2x32xf32, #tpu.memory_space<vmem>>, vector<1x1x8x2x32xf32>,
    %796 = vector.extract_strided_slice %776 {offsets = [0, 96], sizes = [16, 32], strides = [1, 1]} : vector<16x192xf32> to vector<16x32xf32>
    %797 = vector.shape_cast %796 : vector<16x32xf32> to vector<8x2x32xf32>
    %c1_443 = arith.constant 1 : index
    %c0_444 = arith.constant 0 : index
    %c0_445 = arith.constant 0 : index
    %c0_446 = arith.constant 0 : index
    %c0_447 = arith.constant 0 : index
    %798 = vector.load %arg10[%c1_443, %c0_444, %c0_445, %c0_446, %c0_447] : memref<2x4x8x2x32xf32, #tpu.memory_space<vmem>>, vector<1x1x8x2x32xf32>
    %799 = vector.shape_cast %798 : vector<1x1x8x2x32xf32> to vector<8x2x32xf32>
    %800 = vector.shape_cast %797 : vector<8x2x32xf32> to vector<1x1x8x2x32xf32>
    tpu.vector_store %arg10[%c1_443, %c0_444, %c0_445, %c0_446, %c0_447], %800 {strides = array<i32>} : memref<2x4x8x2x32xf32, #tpu.memory_space<vmem>>, vector<1x1x8x2x32xf32>,
    %801 = vector.extract_strided_slice %776 {offsets = [0, 128], sizes = [16, 32], strides = [1, 1]} : vector<16x192xf32> to vector<16x32xf32>
    %802 = vector.shape_cast %801 : vector<16x32xf32> to vector<8x2x32xf32>
    %c1_448 = arith.constant 1 : index
    %c1_449 = arith.constant 1 : index
    %c0_450 = arith.constant 0 : index
    %c0_451 = arith.constant 0 : index
    %c0_452 = arith.constant 0 : index
    %803 = vector.load %arg10[%c1_448, %c1_449, %c0_450, %c0_451, %c0_452] : memref<2x4x8x2x32xf32, #tpu.memory_space<vmem>>, vector<1x1x8x2x32xf32>
    %804 = vector.shape_cast %803 : vector<1x1x8x2x32xf32> to vector<8x2x32xf32>
    %805 = vector.shape_cast %802 : vector<8x2x32xf32> to vector<1x1x8x2x32xf32>
    tpu.vector_store %arg10[%c1_448, %c1_449, %c0_450, %c0_451, %c0_452], %805 {strides = array<i32>} : memref<2x4x8x2x32xf32, #tpu.memory_space<vmem>>, vector<1x1x8x2x32xf32>,
    %806 = vector.extract_strided_slice %776 {offsets = [0, 160], sizes = [16, 32], strides = [1, 1]} : vector<16x192xf32> to vector<16x32xf32>
    %807 = vector.shape_cast %806 : vector<16x32xf32> to vector<8x2x32xf32>
    %c1_453 = arith.constant 1 : index
    %c2_454 = arith.constant 2 : index
    %c0_455 = arith.constant 0 : index
    %c0_456 = arith.constant 0 : index
    %c0_457 = arith.constant 0 : index
    %808 = vector.load %arg10[%c1_453, %c2_454, %c0_455, %c0_456, %c0_457] : memref<2x4x8x2x32xf32, #tpu.memory_space<vmem>>, vector<1x1x8x2x32xf32>
    %809 = vector.shape_cast %808 : vector<1x1x8x2x32xf32> to vector<8x2x32xf32>
    %810 = vector.shape_cast %807 : vector<8x2x32xf32> to vector<1x1x8x2x32xf32>
    tpu.vector_store %arg10[%c1_453, %c2_454, %c0_455, %c0_456, %c0_457], %810 {strides = array<i32>} : memref<2x4x8x2x32xf32, #tpu.memory_space<vmem>>, vector<1x1x8x2x32xf32>,
    %811 = vector.extract_strided_slice %772 {offsets = [0, 0, 32], sizes = [8, 2, 32], strides = [1, 1, 1]} : vector<8x2x64xf32> to vector<8x2x32xf32>
    %c1_458 = arith.constant 1 : index
    %c3_459 = arith.constant 3 : index
    %c0_460 = arith.constant 0 : index
    %c0_461 = arith.constant 0 : index
    %c0_462 = arith.constant 0 : index
    %812 = vector.load %arg10[%c1_458, %c3_459, %c0_460, %c0_461, %c0_462] : memref<2x4x8x2x32xf32, #tpu.memory_space<vmem>>, vector<1x1x8x2x32xf32>
    %813 = vector.shape_cast %812 : vector<1x1x8x2x32xf32> to vector<8x2x32xf32>
    %814 = vector.shape_cast %811 : vector<8x2x32xf32> to vector<1x1x8x2x32xf32>
    tpu.vector_store %arg10[%c1_458, %c3_459, %c0_460, %c0_461, %c0_462], %814 {strides = array<i32>} : memref<2x4x8x2x32xf32, #tpu.memory_space<vmem>>, vector<1x1x8x2x32xf32>,
    %c0_463 = arith.constant 0 : index
    %c0_464 = arith.constant 0 : index
    %c0_465 = arith.constant 0 : index
    %815 = vector.load %arg6[%c0_463, %c0_464, %c0_465] : memref<2x2x32xf32, #tpu.memory_space<vmem>>, vector<2x2x32xf32>
    %c0_466 = arith.constant 0 : index
    %c0_467 = arith.constant 0 : index
    %c0_468 = arith.constant 0 : index
    %816 = vector.load %arg7[%c0_466, %c0_467, %c0_468] : memref<2x2x32xf32, #tpu.memory_space<vmem>>, vector<2x2x32xf32>
    %817 = vector.extract_strided_slice %815 {offsets = [0, 0, 0], sizes = [1, 1, 32], strides = [1, 1, 1]} : vector<2x2x32xf32> to vector<1x1x32xf32>
    %818 = vector.shape_cast %817 : vector<1x1x32xf32> to vector<32xf32>
    %819 = vector.shape_cast %818 : vector<32xf32> to vector<1x32xf32>
    %820 = vector.shape_cast %819 : vector<1x32xf32> to vector<1x32xf32>
    %821 = vector.broadcast %820 : vector<1x32xf32> to vector<2x32xf32>
    %822 = vector.extract_strided_slice %815 {offsets = [1, 0, 0], sizes = [1, 1, 32], strides = [1, 1, 1]} : vector<2x2x32xf32> to vector<1x1x32xf32>
    %823 = vector.shape_cast %822 : vector<1x1x32xf32> to vector<32xf32>
    %824 = vector.shape_cast %823 : vector<32xf32> to vector<1x32xf32>
    %825 = vector.shape_cast %824 : vector<1x32xf32> to vector<1x32xf32>
    %826 = vector.broadcast %825 : vector<1x32xf32> to vector<2x32xf32>
    %827 = vector.extract_strided_slice %815 {offsets = [0, 1, 0], sizes = [1, 1, 32], strides = [1, 1, 1]} : vector<2x2x32xf32> to vector<1x1x32xf32>
    %828 = vector.shape_cast %827 : vector<1x1x32xf32> to vector<32xf32>
    %829 = vector.shape_cast %828 : vector<32xf32> to vector<1x32xf32>
    %830 = vector.shape_cast %829 : vector<1x32xf32> to vector<1x32xf32>
    %831 = vector.broadcast %830 : vector<1x32xf32> to vector<2x32xf32>
    %832 = vector.extract_strided_slice %815 {offsets = [1, 1, 0], sizes = [1, 1, 32], strides = [1, 1, 1]} : vector<2x2x32xf32> to vector<1x1x32xf32>
    %833 = vector.shape_cast %832 : vector<1x1x32xf32> to vector<32xf32>
    %834 = vector.shape_cast %833 : vector<32xf32> to vector<1x32xf32>
    %835 = vector.shape_cast %834 : vector<1x32xf32> to vector<1x32xf32>
    %836 = vector.broadcast %835 : vector<1x32xf32> to vector<2x32xf32>
    %837 = vector.extract_strided_slice %816 {offsets = [0, 0, 0], sizes = [1, 1, 32], strides = [1, 1, 1]} : vector<2x2x32xf32> to vector<1x1x32xf32>
    %838 = vector.shape_cast %837 : vector<1x1x32xf32> to vector<32xf32>
    %839 = vector.shape_cast %838 : vector<32xf32> to vector<1x32xf32>
    %840 = vector.shape_cast %839 : vector<1x32xf32> to vector<1x32xf32>
    %841 = vector.broadcast %840 : vector<1x32xf32> to vector<2x32xf32>
    %842 = vector.extract_strided_slice %816 {offsets = [1, 0, 0], sizes = [1, 1, 32], strides = [1, 1, 1]} : vector<2x2x32xf32> to vector<1x1x32xf32>
    %843 = vector.shape_cast %842 : vector<1x1x32xf32> to vector<32xf32>
    %844 = vector.shape_cast %843 : vector<32xf32> to vector<1x32xf32>
    %845 = vector.shape_cast %844 : vector<1x32xf32> to vector<1x32xf32>
    %846 = vector.broadcast %845 : vector<1x32xf32> to vector<2x32xf32>
    %847 = vector.extract_strided_slice %816 {offsets = [0, 1, 0], sizes = [1, 1, 32], strides = [1, 1, 1]} : vector<2x2x32xf32> to vector<1x1x32xf32>
    %848 = vector.shape_cast %847 : vector<1x1x32xf32> to vector<32xf32>
    %849 = vector.shape_cast %848 : vector<32xf32> to vector<1x32xf32>
    %850 = vector.shape_cast %849 : vector<1x32xf32> to vector<1x32xf32>
    %851 = vector.broadcast %850 : vector<1x32xf32> to vector<2x32xf32>
    %852 = vector.extract_strided_slice %816 {offsets = [1, 1, 0], sizes = [1, 1, 32], strides = [1, 1, 1]} : vector<2x2x32xf32> to vector<1x1x32xf32>
    %853 = vector.shape_cast %852 : vector<1x1x32xf32> to vector<32xf32>
    %854 = vector.shape_cast %853 : vector<32xf32> to vector<1x32xf32>
    %855 = vector.shape_cast %854 : vector<1x32xf32> to vector<1x32xf32>
    %856 = vector.broadcast %855 : vector<1x32xf32> to vector<2x32xf32>
    %cst_469 = arith.constant 0.000000e+00 : f32
    %857 = vector.broadcast %cst_469 : f32 to vector<2x32xf32>
    %c0_i32_470 = arith.constant 0 : i32
    %c7_i32_471 = arith.constant 7 : i32
    %858 = arith.subi %c7_i32_471, %c0_i32_470 : i32
    %c0_472 = arith.constant 0 : index
    %c1_473 = arith.constant 1 : index
    %859 = arith.index_cast %c0_i32_470 : i32 to index
    %c0_474 = arith.constant 0 : index
    %c0_475 = arith.constant 0 : index
    %860 = vector.load %arg10[%c0_472, %c1_473, %859, %c0_474, %c0_475] : memref<2x4x8x2x32xf32, #tpu.memory_space<vmem>>, vector<1x1x1x2x32xf32>
    %861 = vector.shape_cast %860 : vector<1x1x1x2x32xf32> to vector<2x32xf32>
    %862 = arith.mulf %841, %857 : vector<2x32xf32>
    %863 = arith.addf %861, %862 : vector<2x32xf32>
    %864 = arith.addf %863, %821 : vector<2x32xf32>
    %865 = arith.negf %864 : vector<2x32xf32>
    %866 = math.exp %865 : vector<2x32xf32>
    %cst_476 = arith.constant 1.000000e+00 : f32
    %867 = vector.broadcast %cst_476 : f32 to vector<2x32xf32>
    %868 = arith.addf %867, %866 : vector<2x32xf32>
    %869 = arith.divf %867, %868 : vector<2x32xf32>
    %c0_477 = arith.constant 0 : index
    %c2_478 = arith.constant 2 : index
    %870 = arith.index_cast %c0_i32_470 : i32 to index
    %c0_479 = arith.constant 0 : index
    %c0_480 = arith.constant 0 : index
    %871 = vector.load %arg10[%c0_477, %c2_478, %870, %c0_479, %c0_480] : memref<2x4x8x2x32xf32, #tpu.memory_space<vmem>>, vector<1x1x1x2x32xf32>
    %872 = vector.shape_cast %871 : vector<1x1x1x2x32xf32> to vector<2x32xf32>
    %873 = arith.mulf %851, %857 : vector<2x32xf32>
    %874 = arith.addf %872, %873 : vector<2x32xf32>
    %875 = arith.addf %874, %831 : vector<2x32xf32>
    %876 = arith.negf %875 : vector<2x32xf32>
    %877 = math.exp %876 : vector<2x32xf32>
    %cst_481 = arith.constant 1.000000e+00 : f32
    %878 = vector.broadcast %cst_481 : f32 to vector<2x32xf32>
    %879 = arith.addf %878, %877 : vector<2x32xf32>
    %880 = arith.divf %878, %879 : vector<2x32xf32>
    %881 = arith.mulf %869, %857 : vector<2x32xf32>
    %cst_482 = arith.constant 1.000000e+00 : f32
    %882 = vector.broadcast %cst_482 : f32 to vector<2x32xf32>
    %883 = arith.subf %882, %869 : vector<2x32xf32>
    %c0_483 = arith.constant 0 : index
    %c0_484 = arith.constant 0 : index
    %884 = arith.index_cast %c0_i32_470 : i32 to index
    %c0_485 = arith.constant 0 : index
    %c0_486 = arith.constant 0 : index
    %885 = vector.load %arg10[%c0_483, %c0_484, %884, %c0_485, %c0_486] : memref<2x4x8x2x32xf32, #tpu.memory_space<vmem>>, vector<1x1x1x2x32xf32>
    %886 = vector.shape_cast %885 : vector<1x1x1x2x32xf32> to vector<2x32xf32>
    %887 = arith.mulf %883, %886 : vector<2x32xf32>
    %888 = arith.addf %881, %887 : vector<2x32xf32>
    %889 = arith.mulf %880, %888 : vector<2x32xf32>
    %cst_487 = arith.constant 1.000000e+00 : f32
    %890 = vector.broadcast %cst_487 : f32 to vector<2x32xf32>
    %891 = arith.subf %890, %880 : vector<2x32xf32>
    %c0_488 = arith.constant 0 : index
    %c3_489 = arith.constant 3 : index
    %892 = arith.index_cast %c0_i32_470 : i32 to index
    %c0_490 = arith.constant 0 : index
    %c0_491 = arith.constant 0 : index
    %893 = vector.load %arg10[%c0_488, %c3_489, %892, %c0_490, %c0_491] : memref<2x4x8x2x32xf32, #tpu.memory_space<vmem>>, vector<1x1x1x2x32xf32>
    %894 = vector.shape_cast %893 : vector<1x1x1x2x32xf32> to vector<2x32xf32>
    %895 = arith.mulf %891, %894 : vector<2x32xf32>
    %896 = arith.addf %889, %895 : vector<2x32xf32>
    %897 = arith.index_cast %c0_i32_470 : i32 to index
    %c0_492 = arith.constant 0 : index
    %c0_493 = arith.constant 0 : index
    %898 = vector.load %arg11[%897, %c0_492, %c0_493] : memref<8x2x32xf32, #tpu.memory_space<vmem>>, vector<1x2x32xf32>
    %899 = vector.shape_cast %898 : vector<1x2x32xf32> to vector<2x32xf32>
    %900 = vector.shape_cast %896 : vector<2x32xf32> to vector<1x2x32xf32>
    tpu.vector_store %arg11[%897, %c0_492, %c0_493], %900 {strides = array<i32>} : memref<8x2x32xf32, #tpu.memory_space<vmem>>, vector<1x2x32xf32>,
    %c1_494 = arith.constant 1 : index
    %c1_495 = arith.constant 1 : index
    %901 = arith.index_cast %858 : i32 to index
    %c0_496 = arith.constant 0 : index
    %c0_497 = arith.constant 0 : index
    %902 = vector.load %arg10[%c1_494, %c1_495, %901, %c0_496, %c0_497] : memref<2x4x8x2x32xf32, #tpu.memory_space<vmem>>, vector<1x1x1x2x32xf32>
    %903 = vector.shape_cast %902 : vector<1x1x1x2x32xf32> to vector<2x32xf32>
    %904 = arith.mulf %846, %857 : vector<2x32xf32>
    %905 = arith.addf %903, %904 : vector<2x32xf32>
    %906 = arith.addf %905, %826 : vector<2x32xf32>
    %907 = arith.negf %906 : vector<2x32xf32>
    %908 = math.exp %907 : vector<2x32xf32>
    %cst_498 = arith.constant 1.000000e+00 : f32
    %909 = vector.broadcast %cst_498 : f32 to vector<2x32xf32>
    %910 = arith.addf %909, %908 : vector<2x32xf32>
    %911 = arith.divf %909, %910 : vector<2x32xf32>
    %c1_499 = arith.constant 1 : index
    %c2_500 = arith.constant 2 : index
    %912 = arith.index_cast %858 : i32 to index
    %c0_501 = arith.constant 0 : index
    %c0_502 = arith.constant 0 : index
    %913 = vector.load %arg10[%c1_499, %c2_500, %912, %c0_501, %c0_502] : memref<2x4x8x2x32xf32, #tpu.memory_space<vmem>>, vector<1x1x1x2x32xf32>
    %914 = vector.shape_cast %913 : vector<1x1x1x2x32xf32> to vector<2x32xf32>
    %915 = arith.mulf %856, %857 : vector<2x32xf32>
    %916 = arith.addf %914, %915 : vector<2x32xf32>
    %917 = arith.addf %916, %836 : vector<2x32xf32>
    %918 = arith.negf %917 : vector<2x32xf32>
    %919 = math.exp %918 : vector<2x32xf32>
    %cst_503 = arith.constant 1.000000e+00 : f32
    %920 = vector.broadcast %cst_503 : f32 to vector<2x32xf32>
    %921 = arith.addf %920, %919 : vector<2x32xf32>
    %922 = arith.divf %920, %921 : vector<2x32xf32>
    %923 = arith.mulf %911, %857 : vector<2x32xf32>
    %cst_504 = arith.constant 1.000000e+00 : f32
    %924 = vector.broadcast %cst_504 : f32 to vector<2x32xf32>
    %925 = arith.subf %924, %911 : vector<2x32xf32>
    %c1_505 = arith.constant 1 : index
    %c0_506 = arith.constant 0 : index
    %926 = arith.index_cast %858 : i32 to index
    %c0_507 = arith.constant 0 : index
    %c0_508 = arith.constant 0 : index
    %927 = vector.load %arg10[%c1_505, %c0_506, %926, %c0_507, %c0_508] : memref<2x4x8x2x32xf32, #tpu.memory_space<vmem>>, vector<1x1x1x2x32xf32>
    %928 = vector.shape_cast %927 : vector<1x1x1x2x32xf32> to vector<2x32xf32>
    %929 = arith.mulf %925, %928 : vector<2x32xf32>
    %930 = arith.addf %923, %929 : vector<2x32xf32>
    %931 = arith.mulf %922, %930 : vector<2x32xf32>
    %cst_509 = arith.constant 1.000000e+00 : f32
    %932 = vector.broadcast %cst_509 : f32 to vector<2x32xf32>
    %933 = arith.subf %932, %922 : vector<2x32xf32>
    %c1_510 = arith.constant 1 : index
    %c3_511 = arith.constant 3 : index
    %934 = arith.index_cast %858 : i32 to index
    %c0_512 = arith.constant 0 : index
    %c0_513 = arith.constant 0 : index
    %935 = vector.load %arg10[%c1_510, %c3_511, %934, %c0_512, %c0_513] : memref<2x4x8x2x32xf32, #tpu.memory_space<vmem>>, vector<1x1x1x2x32xf32>
    %936 = vector.shape_cast %935 : vector<1x1x1x2x32xf32> to vector<2x32xf32>
    %937 = arith.mulf %933, %936 : vector<2x32xf32>
    %938 = arith.addf %931, %937 : vector<2x32xf32>
    %939 = arith.index_cast %858 : i32 to index
    %c0_514 = arith.constant 0 : index
    %c0_515 = arith.constant 0 : index
    %940 = vector.load %arg12[%939, %c0_514, %c0_515] : memref<8x2x32xf32, #tpu.memory_space<vmem>>, vector<1x2x32xf32>
    %941 = vector.shape_cast %940 : vector<1x2x32xf32> to vector<2x32xf32>
    %942 = vector.shape_cast %938 : vector<2x32xf32> to vector<1x2x32xf32>
    tpu.vector_store %arg12[%939, %c0_514, %c0_515], %942 {strides = array<i32>} : memref<8x2x32xf32, #tpu.memory_space<vmem>>, vector<1x2x32xf32>,
    %c1_i32_516 = arith.constant 1 : i32
    %c7_i32_517 = arith.constant 7 : i32
    %943 = arith.subi %c7_i32_517, %c1_i32_516 : i32
    %c0_518 = arith.constant 0 : index
    %c1_519 = arith.constant 1 : index
    %944 = arith.index_cast %c1_i32_516 : i32 to index
    %c0_520 = arith.constant 0 : index
    %c0_521 = arith.constant 0 : index
    %945 = vector.load %arg10[%c0_518, %c1_519, %944, %c0_520, %c0_521] : memref<2x4x8x2x32xf32, #tpu.memory_space<vmem>>, vector<1x1x1x2x32xf32>
    %946 = vector.shape_cast %945 : vector<1x1x1x2x32xf32> to vector<2x32xf32>
    %947 = arith.mulf %841, %888 : vector<2x32xf32>
    %948 = arith.addf %946, %947 : vector<2x32xf32>
    %949 = arith.addf %948, %821 : vector<2x32xf32>
    %950 = arith.negf %949 : vector<2x32xf32>
    %951 = math.exp %950 : vector<2x32xf32>
    %cst_522 = arith.constant 1.000000e+00 : f32
    %952 = vector.broadcast %cst_522 : f32 to vector<2x32xf32>
    %953 = arith.addf %952, %951 : vector<2x32xf32>
    %954 = arith.divf %952, %953 : vector<2x32xf32>
    %c0_523 = arith.constant 0 : index
    %c2_524 = arith.constant 2 : index
    %955 = arith.index_cast %c1_i32_516 : i32 to index
    %c0_525 = arith.constant 0 : index
    %c0_526 = arith.constant 0 : index
    %956 = vector.load %arg10[%c0_523, %c2_524, %955, %c0_525, %c0_526] : memref<2x4x8x2x32xf32, #tpu.memory_space<vmem>>, vector<1x1x1x2x32xf32>
    %957 = vector.shape_cast %956 : vector<1x1x1x2x32xf32> to vector<2x32xf32>
    %958 = arith.mulf %851, %888 : vector<2x32xf32>
    %959 = arith.addf %957, %958 : vector<2x32xf32>
    %960 = arith.addf %959, %831 : vector<2x32xf32>
    %961 = arith.negf %960 : vector<2x32xf32>
    %962 = math.exp %961 : vector<2x32xf32>
    %cst_527 = arith.constant 1.000000e+00 : f32
    %963 = vector.broadcast %cst_527 : f32 to vector<2x32xf32>
    %964 = arith.addf %963, %962 : vector<2x32xf32>
    %965 = arith.divf %963, %964 : vector<2x32xf32>
    %966 = arith.mulf %954, %888 : vector<2x32xf32>
    %cst_528 = arith.constant 1.000000e+00 : f32
    %967 = vector.broadcast %cst_528 : f32 to vector<2x32xf32>
    %968 = arith.subf %967, %954 : vector<2x32xf32>
    %c0_529 = arith.constant 0 : index
    %c0_530 = arith.constant 0 : index
    %969 = arith.index_cast %c1_i32_516 : i32 to index
    %c0_531 = arith.constant 0 : index
    %c0_532 = arith.constant 0 : index
    %970 = vector.load %arg10[%c0_529, %c0_530, %969, %c0_531, %c0_532] : memref<2x4x8x2x32xf32, #tpu.memory_space<vmem>>, vector<1x1x1x2x32xf32>
    %971 = vector.shape_cast %970 : vector<1x1x1x2x32xf32> to vector<2x32xf32>
    %972 = arith.mulf %968, %971 : vector<2x32xf32>
    %973 = arith.addf %966, %972 : vector<2x32xf32>
    %974 = arith.mulf %965, %973 : vector<2x32xf32>
    %cst_533 = arith.constant 1.000000e+00 : f32
    %975 = vector.broadcast %cst_533 : f32 to vector<2x32xf32>
    %976 = arith.subf %975, %965 : vector<2x32xf32>
    %c0_534 = arith.constant 0 : index
    %c3_535 = arith.constant 3 : index
    %977 = arith.index_cast %c1_i32_516 : i32 to index
    %c0_536 = arith.constant 0 : index
    %c0_537 = arith.constant 0 : index
    %978 = vector.load %arg10[%c0_534, %c3_535, %977, %c0_536, %c0_537] : memref<2x4x8x2x32xf32, #tpu.memory_space<vmem>>, vector<1x1x1x2x32xf32>
    %979 = vector.shape_cast %978 : vector<1x1x1x2x32xf32> to vector<2x32xf32>
    %980 = arith.mulf %976, %979 : vector<2x32xf32>
    %981 = arith.addf %974, %980 : vector<2x32xf32>
    %982 = arith.index_cast %c1_i32_516 : i32 to index
    %c0_538 = arith.constant 0 : index
    %c0_539 = arith.constant 0 : index
    %983 = vector.load %arg11[%982, %c0_538, %c0_539] : memref<8x2x32xf32, #tpu.memory_space<vmem>>, vector<1x2x32xf32>
    %984 = vector.shape_cast %983 : vector<1x2x32xf32> to vector<2x32xf32>
    %985 = vector.shape_cast %981 : vector<2x32xf32> to vector<1x2x32xf32>
    tpu.vector_store %arg11[%982, %c0_538, %c0_539], %985 {strides = array<i32>} : memref<8x2x32xf32, #tpu.memory_space<vmem>>, vector<1x2x32xf32>,
    %c1_540 = arith.constant 1 : index
    %c1_541 = arith.constant 1 : index
    %986 = arith.index_cast %943 : i32 to index
    %c0_542 = arith.constant 0 : index
    %c0_543 = arith.constant 0 : index
    %987 = vector.load %arg10[%c1_540, %c1_541, %986, %c0_542, %c0_543] : memref<2x4x8x2x32xf32, #tpu.memory_space<vmem>>, vector<1x1x1x2x32xf32>
    %988 = vector.shape_cast %987 : vector<1x1x1x2x32xf32> to vector<2x32xf32>
    %989 = arith.mulf %846, %930 : vector<2x32xf32>
    %990 = arith.addf %988, %989 : vector<2x32xf32>
    %991 = arith.addf %990, %826 : vector<2x32xf32>
    %992 = arith.negf %991 : vector<2x32xf32>
    %993 = math.exp %992 : vector<2x32xf32>
    %cst_544 = arith.constant 1.000000e+00 : f32
    %994 = vector.broadcast %cst_544 : f32 to vector<2x32xf32>
    %995 = arith.addf %994, %993 : vector<2x32xf32>
    %996 = arith.divf %994, %995 : vector<2x32xf32>
    %c1_545 = arith.constant 1 : index
    %c2_546 = arith.constant 2 : index
    %997 = arith.index_cast %943 : i32 to index
    %c0_547 = arith.constant 0 : index
    %c0_548 = arith.constant 0 : index
    %998 = vector.load %arg10[%c1_545, %c2_546, %997, %c0_547, %c0_548] : memref<2x4x8x2x32xf32, #tpu.memory_space<vmem>>, vector<1x1x1x2x32xf32>
    %999 = vector.shape_cast %998 : vector<1x1x1x2x32xf32> to vector<2x32xf32>
    %1000 = arith.mulf %856, %930 : vector<2x32xf32>
    %1001 = arith.addf %999, %1000 : vector<2x32xf32>
    %1002 = arith.addf %1001, %836 : vector<2x32xf32>
    %1003 = arith.negf %1002 : vector<2x32xf32>
    %1004 = math.exp %1003 : vector<2x32xf32>
    %cst_549 = arith.constant 1.000000e+00 : f32
    %1005 = vector.broadcast %cst_549 : f32 to vector<2x32xf32>
    %1006 = arith.addf %1005, %1004 : vector<2x32xf32>
    %1007 = arith.divf %1005, %1006 : vector<2x32xf32>
    %1008 = arith.mulf %996, %930 : vector<2x32xf32>
    %cst_550 = arith.constant 1.000000e+00 : f32
    %1009 = vector.broadcast %cst_550 : f32 to vector<2x32xf32>
    %1010 = arith.subf %1009, %996 : vector<2x32xf32>
    %c1_551 = arith.constant 1 : index
    %c0_552 = arith.constant 0 : index
    %1011 = arith.index_cast %943 : i32 to index
    %c0_553 = arith.constant 0 : index
    %c0_554 = arith.constant 0 : index
    %1012 = vector.load %arg10[%c1_551, %c0_552, %1011, %c0_553, %c0_554] : memref<2x4x8x2x32xf32, #tpu.memory_space<vmem>>, vector<1x1x1x2x32xf32>
    %1013 = vector.shape_cast %1012 : vector<1x1x1x2x32xf32> to vector<2x32xf32>
    %1014 = arith.mulf %1010, %1013 : vector<2x32xf32>
    %1015 = arith.addf %1008, %1014 : vector<2x32xf32>
    %1016 = arith.mulf %1007, %1015 : vector<2x32xf32>
    %cst_555 = arith.constant 1.000000e+00 : f32
    %1017 = vector.broadcast %cst_555 : f32 to vector<2x32xf32>
    %1018 = arith.subf %1017, %1007 : vector<2x32xf32>
    %c1_556 = arith.constant 1 : index
    %c3_557 = arith.constant 3 : index
    %1019 = arith.index_cast %943 : i32 to index
    %c0_558 = arith.constant 0 : index
    %c0_559 = arith.constant 0 : index
    %1020 = vector.load %arg10[%c1_556, %c3_557, %1019, %c0_558, %c0_559] : memref<2x4x8x2x32xf32, #tpu.memory_space<vmem>>, vector<1x1x1x2x32xf32>
    %1021 = vector.shape_cast %1020 : vector<1x1x1x2x32xf32> to vector<2x32xf32>
    %1022 = arith.mulf %1018, %1021 : vector<2x32xf32>
    %1023 = arith.addf %1016, %1022 : vector<2x32xf32>
    %1024 = arith.index_cast %943 : i32 to index
    %c0_560 = arith.constant 0 : index
    %c0_561 = arith.constant 0 : index
    %1025 = vector.load %arg12[%1024, %c0_560, %c0_561] : memref<8x2x32xf32, #tpu.memory_space<vmem>>, vector<1x2x32xf32>
    %1026 = vector.shape_cast %1025 : vector<1x2x32xf32> to vector<2x32xf32>
    %1027 = vector.shape_cast %1023 : vector<2x32xf32> to vector<1x2x32xf32>
    tpu.vector_store %arg12[%1024, %c0_560, %c0_561], %1027 {strides = array<i32>} : memref<8x2x32xf32, #tpu.memory_space<vmem>>, vector<1x2x32xf32>,
    %c2_i32_562 = arith.constant 2 : i32
    %c7_i32_563 = arith.constant 7 : i32
    %1028 = arith.subi %c7_i32_563, %c2_i32_562 : i32
    %c0_564 = arith.constant 0 : index
    %c1_565 = arith.constant 1 : index
    %1029 = arith.index_cast %c2_i32_562 : i32 to index
    %c0_566 = arith.constant 0 : index
    %c0_567 = arith.constant 0 : index
    %1030 = vector.load %arg10[%c0_564, %c1_565, %1029, %c0_566, %c0_567] : memref<2x4x8x2x32xf32, #tpu.memory_space<vmem>>, vector<1x1x1x2x32xf32>
    %1031 = vector.shape_cast %1030 : vector<1x1x1x2x32xf32> to vector<2x32xf32>
    %1032 = arith.mulf %841, %973 : vector<2x32xf32>
    %1033 = arith.addf %1031, %1032 : vector<2x32xf32>
    %1034 = arith.addf %1033, %821 : vector<2x32xf32>
    %1035 = arith.negf %1034 : vector<2x32xf32>
    %1036 = math.exp %1035 : vector<2x32xf32>
    %cst_568 = arith.constant 1.000000e+00 : f32
    %1037 = vector.broadcast %cst_568 : f32 to vector<2x32xf32>
    %1038 = arith.addf %1037, %1036 : vector<2x32xf32>
    %1039 = arith.divf %1037, %1038 : vector<2x32xf32>
    %c0_569 = arith.constant 0 : index
    %c2_570 = arith.constant 2 : index
    %1040 = arith.index_cast %c2_i32_562 : i32 to index
    %c0_571 = arith.constant 0 : index
    %c0_572 = arith.constant 0 : index
    %1041 = vector.load %arg10[%c0_569, %c2_570, %1040, %c0_571, %c0_572] : memref<2x4x8x2x32xf32, #tpu.memory_space<vmem>>, vector<1x1x1x2x32xf32>
    %1042 = vector.shape_cast %1041 : vector<1x1x1x2x32xf32> to vector<2x32xf32>
    %1043 = arith.mulf %851, %973 : vector<2x32xf32>
    %1044 = arith.addf %1042, %1043 : vector<2x32xf32>
    %1045 = arith.addf %1044, %831 : vector<2x32xf32>
    %1046 = arith.negf %1045 : vector<2x32xf32>
    %1047 = math.exp %1046 : vector<2x32xf32>
    %cst_573 = arith.constant 1.000000e+00 : f32
    %1048 = vector.broadcast %cst_573 : f32 to vector<2x32xf32>
    %1049 = arith.addf %1048, %1047 : vector<2x32xf32>
    %1050 = arith.divf %1048, %1049 : vector<2x32xf32>
    %1051 = arith.mulf %1039, %973 : vector<2x32xf32>
    %cst_574 = arith.constant 1.000000e+00 : f32
    %1052 = vector.broadcast %cst_574 : f32 to vector<2x32xf32>
    %1053 = arith.subf %1052, %1039 : vector<2x32xf32>
    %c0_575 = arith.constant 0 : index
    %c0_576 = arith.constant 0 : index
    %1054 = arith.index_cast %c2_i32_562 : i32 to index
    %c0_577 = arith.constant 0 : index
    %c0_578 = arith.constant 0 : index
    %1055 = vector.load %arg10[%c0_575, %c0_576, %1054, %c0_577, %c0_578] : memref<2x4x8x2x32xf32, #tpu.memory_space<vmem>>, vector<1x1x1x2x32xf32>
    %1056 = vector.shape_cast %1055 : vector<1x1x1x2x32xf32> to vector<2x32xf32>
    %1057 = arith.mulf %1053, %1056 : vector<2x32xf32>
    %1058 = arith.addf %1051, %1057 : vector<2x32xf32>
    %1059 = arith.mulf %1050, %1058 : vector<2x32xf32>
    %cst_579 = arith.constant 1.000000e+00 : f32
    %1060 = vector.broadcast %cst_579 : f32 to vector<2x32xf32>
    %1061 = arith.subf %1060, %1050 : vector<2x32xf32>
    %c0_580 = arith.constant 0 : index
    %c3_581 = arith.constant 3 : index
    %1062 = arith.index_cast %c2_i32_562 : i32 to index
    %c0_582 = arith.constant 0 : index
    %c0_583 = arith.constant 0 : index
    %1063 = vector.load %arg10[%c0_580, %c3_581, %1062, %c0_582, %c0_583] : memref<2x4x8x2x32xf32, #tpu.memory_space<vmem>>, vector<1x1x1x2x32xf32>
    %1064 = vector.shape_cast %1063 : vector<1x1x1x2x32xf32> to vector<2x32xf32>
    %1065 = arith.mulf %1061, %1064 : vector<2x32xf32>
    %1066 = arith.addf %1059, %1065 : vector<2x32xf32>
    %1067 = arith.index_cast %c2_i32_562 : i32 to index
    %c0_584 = arith.constant 0 : index
    %c0_585 = arith.constant 0 : index
    %1068 = vector.load %arg11[%1067, %c0_584, %c0_585] : memref<8x2x32xf32, #tpu.memory_space<vmem>>, vector<1x2x32xf32>
    %1069 = vector.shape_cast %1068 : vector<1x2x32xf32> to vector<2x32xf32>
    %1070 = vector.shape_cast %1066 : vector<2x32xf32> to vector<1x2x32xf32>
    tpu.vector_store %arg11[%1067, %c0_584, %c0_585], %1070 {strides = array<i32>} : memref<8x2x32xf32, #tpu.memory_space<vmem>>, vector<1x2x32xf32>,
    %c1_586 = arith.constant 1 : index
    %c1_587 = arith.constant 1 : index
    %1071 = arith.index_cast %1028 : i32 to index
    %c0_588 = arith.constant 0 : index
    %c0_589 = arith.constant 0 : index
    %1072 = vector.load %arg10[%c1_586, %c1_587, %1071, %c0_588, %c0_589] : memref<2x4x8x2x32xf32, #tpu.memory_space<vmem>>, vector<1x1x1x2x32xf32>
    %1073 = vector.shape_cast %1072 : vector<1x1x1x2x32xf32> to vector<2x32xf32>
    %1074 = arith.mulf %846, %1015 : vector<2x32xf32>
    %1075 = arith.addf %1073, %1074 : vector<2x32xf32>
    %1076 = arith.addf %1075, %826 : vector<2x32xf32>
    %1077 = arith.negf %1076 : vector<2x32xf32>
    %1078 = math.exp %1077 : vector<2x32xf32>
    %cst_590 = arith.constant 1.000000e+00 : f32
    %1079 = vector.broadcast %cst_590 : f32 to vector<2x32xf32>
    %1080 = arith.addf %1079, %1078 : vector<2x32xf32>
    %1081 = arith.divf %1079, %1080 : vector<2x32xf32>
    %c1_591 = arith.constant 1 : index
    %c2_592 = arith.constant 2 : index
    %1082 = arith.index_cast %1028 : i32 to index
    %c0_593 = arith.constant 0 : index
    %c0_594 = arith.constant 0 : index
    %1083 = vector.load %arg10[%c1_591, %c2_592, %1082, %c0_593, %c0_594] : memref<2x4x8x2x32xf32, #tpu.memory_space<vmem>>, vector<1x1x1x2x32xf32>
    %1084 = vector.shape_cast %1083 : vector<1x1x1x2x32xf32> to vector<2x32xf32>
    %1085 = arith.mulf %856, %1015 : vector<2x32xf32>
    %1086 = arith.addf %1084, %1085 : vector<2x32xf32>
    %1087 = arith.addf %1086, %836 : vector<2x32xf32>
    %1088 = arith.negf %1087 : vector<2x32xf32>
    %1089 = math.exp %1088 : vector<2x32xf32>
    %cst_595 = arith.constant 1.000000e+00 : f32
    %1090 = vector.broadcast %cst_595 : f32 to vector<2x32xf32>
    %1091 = arith.addf %1090, %1089 : vector<2x32xf32>
    %1092 = arith.divf %1090, %1091 : vector<2x32xf32>
    %1093 = arith.mulf %1081, %1015 : vector<2x32xf32>
    %cst_596 = arith.constant 1.000000e+00 : f32
    %1094 = vector.broadcast %cst_596 : f32 to vector<2x32xf32>
    %1095 = arith.subf %1094, %1081 : vector<2x32xf32>
    %c1_597 = arith.constant 1 : index
    %c0_598 = arith.constant 0 : index
    %1096 = arith.index_cast %1028 : i32 to index
    %c0_599 = arith.constant 0 : index
    %c0_600 = arith.constant 0 : index
    %1097 = vector.load %arg10[%c1_597, %c0_598, %1096, %c0_599, %c0_600] : memref<2x4x8x2x32xf32, #tpu.memory_space<vmem>>, vector<1x1x1x2x32xf32>
    %1098 = vector.shape_cast %1097 : vector<1x1x1x2x32xf32> to vector<2x32xf32>
    %1099 = arith.mulf %1095, %1098 : vector<2x32xf32>
    %1100 = arith.addf %1093, %1099 : vector<2x32xf32>
    %1101 = arith.mulf %1092, %1100 : vector<2x32xf32>
    %cst_601 = arith.constant 1.000000e+00 : f32
    %1102 = vector.broadcast %cst_601 : f32 to vector<2x32xf32>
    %1103 = arith.subf %1102, %1092 : vector<2x32xf32>
    %c1_602 = arith.constant 1 : index
    %c3_603 = arith.constant 3 : index
    %1104 = arith.index_cast %1028 : i32 to index
    %c0_604 = arith.constant 0 : index
    %c0_605 = arith.constant 0 : index
    %1105 = vector.load %arg10[%c1_602, %c3_603, %1104, %c0_604, %c0_605] : memref<2x4x8x2x32xf32, #tpu.memory_space<vmem>>, vector<1x1x1x2x32xf32>
    %1106 = vector.shape_cast %1105 : vector<1x1x1x2x32xf32> to vector<2x32xf32>
    %1107 = arith.mulf %1103, %1106 : vector<2x32xf32>
    %1108 = arith.addf %1101, %1107 : vector<2x32xf32>
    %1109 = arith.index_cast %1028 : i32 to index
    %c0_606 = arith.constant 0 : index
    %c0_607 = arith.constant 0 : index
    %1110 = vector.load %arg12[%1109, %c0_606, %c0_607] : memref<8x2x32xf32, #tpu.memory_space<vmem>>, vector<1x2x32xf32>
    %1111 = vector.shape_cast %1110 : vector<1x2x32xf32> to vector<2x32xf32>
    %1112 = vector.shape_cast %1108 : vector<2x32xf32> to vector<1x2x32xf32>
    tpu.vector_store %arg12[%1109, %c0_606, %c0_607], %1112 {strides = array<i32>} : memref<8x2x32xf32, #tpu.memory_space<vmem>>, vector<1x2x32xf32>,
    %c3_i32_608 = arith.constant 3 : i32
    %c7_i32_609 = arith.constant 7 : i32
    %1113 = arith.subi %c7_i32_609, %c3_i32_608 : i32
    %c0_610 = arith.constant 0 : index
    %c1_611 = arith.constant 1 : index
    %1114 = arith.index_cast %c3_i32_608 : i32 to index
    %c0_612 = arith.constant 0 : index
    %c0_613 = arith.constant 0 : index
    %1115 = vector.load %arg10[%c0_610, %c1_611, %1114, %c0_612, %c0_613] : memref<2x4x8x2x32xf32, #tpu.memory_space<vmem>>, vector<1x1x1x2x32xf32>
    %1116 = vector.shape_cast %1115 : vector<1x1x1x2x32xf32> to vector<2x32xf32>
    %1117 = arith.mulf %841, %1058 : vector<2x32xf32>
    %1118 = arith.addf %1116, %1117 : vector<2x32xf32>
    %1119 = arith.addf %1118, %821 : vector<2x32xf32>
    %1120 = arith.negf %1119 : vector<2x32xf32>
    %1121 = math.exp %1120 : vector<2x32xf32>
    %cst_614 = arith.constant 1.000000e+00 : f32
    %1122 = vector.broadcast %cst_614 : f32 to vector<2x32xf32>
    %1123 = arith.addf %1122, %1121 : vector<2x32xf32>
    %1124 = arith.divf %1122, %1123 : vector<2x32xf32>
    %c0_615 = arith.constant 0 : index
    %c2_616 = arith.constant 2 : index
    %1125 = arith.index_cast %c3_i32_608 : i32 to index
    %c0_617 = arith.constant 0 : index
    %c0_618 = arith.constant 0 : index
    %1126 = vector.load %arg10[%c0_615, %c2_616, %1125, %c0_617, %c0_618] : memref<2x4x8x2x32xf32, #tpu.memory_space<vmem>>, vector<1x1x1x2x32xf32>
    %1127 = vector.shape_cast %1126 : vector<1x1x1x2x32xf32> to vector<2x32xf32>
    %1128 = arith.mulf %851, %1058 : vector<2x32xf32>
    %1129 = arith.addf %1127, %1128 : vector<2x32xf32>
    %1130 = arith.addf %1129, %831 : vector<2x32xf32>
    %1131 = arith.negf %1130 : vector<2x32xf32>
    %1132 = math.exp %1131 : vector<2x32xf32>
    %cst_619 = arith.constant 1.000000e+00 : f32
    %1133 = vector.broadcast %cst_619 : f32 to vector<2x32xf32>
    %1134 = arith.addf %1133, %1132 : vector<2x32xf32>
    %1135 = arith.divf %1133, %1134 : vector<2x32xf32>
    %1136 = arith.mulf %1124, %1058 : vector<2x32xf32>
    %cst_620 = arith.constant 1.000000e+00 : f32
    %1137 = vector.broadcast %cst_620 : f32 to vector<2x32xf32>
    %1138 = arith.subf %1137, %1124 : vector<2x32xf32>
    %c0_621 = arith.constant 0 : index
    %c0_622 = arith.constant 0 : index
    %1139 = arith.index_cast %c3_i32_608 : i32 to index
    %c0_623 = arith.constant 0 : index
    %c0_624 = arith.constant 0 : index
    %1140 = vector.load %arg10[%c0_621, %c0_622, %1139, %c0_623, %c0_624] : memref<2x4x8x2x32xf32, #tpu.memory_space<vmem>>, vector<1x1x1x2x32xf32>
    %1141 = vector.shape_cast %1140 : vector<1x1x1x2x32xf32> to vector<2x32xf32>
    %1142 = arith.mulf %1138, %1141 : vector<2x32xf32>
    %1143 = arith.addf %1136, %1142 : vector<2x32xf32>
    %1144 = arith.mulf %1135, %1143 : vector<2x32xf32>
    %cst_625 = arith.constant 1.000000e+00 : f32
    %1145 = vector.broadcast %cst_625 : f32 to vector<2x32xf32>
    %1146 = arith.subf %1145, %1135 : vector<2x32xf32>
    %c0_626 = arith.constant 0 : index
    %c3_627 = arith.constant 3 : index
    %1147 = arith.index_cast %c3_i32_608 : i32 to index
    %c0_628 = arith.constant 0 : index
    %c0_629 = arith.constant 0 : index
    %1148 = vector.load %arg10[%c0_626, %c3_627, %1147, %c0_628, %c0_629] : memref<2x4x8x2x32xf32, #tpu.memory_space<vmem>>, vector<1x1x1x2x32xf32>
    %1149 = vector.shape_cast %1148 : vector<1x1x1x2x32xf32> to vector<2x32xf32>
    %1150 = arith.mulf %1146, %1149 : vector<2x32xf32>
    %1151 = arith.addf %1144, %1150 : vector<2x32xf32>
    %1152 = arith.index_cast %c3_i32_608 : i32 to index
    %c0_630 = arith.constant 0 : index
    %c0_631 = arith.constant 0 : index
    %1153 = vector.load %arg11[%1152, %c0_630, %c0_631] : memref<8x2x32xf32, #tpu.memory_space<vmem>>, vector<1x2x32xf32>
    %1154 = vector.shape_cast %1153 : vector<1x2x32xf32> to vector<2x32xf32>
    %1155 = vector.shape_cast %1151 : vector<2x32xf32> to vector<1x2x32xf32>
    tpu.vector_store %arg11[%1152, %c0_630, %c0_631], %1155 {strides = array<i32>} : memref<8x2x32xf32, #tpu.memory_space<vmem>>, vector<1x2x32xf32>,
    %c1_632 = arith.constant 1 : index
    %c1_633 = arith.constant 1 : index
    %1156 = arith.index_cast %1113 : i32 to index
    %c0_634 = arith.constant 0 : index
    %c0_635 = arith.constant 0 : index
    %1157 = vector.load %arg10[%c1_632, %c1_633, %1156, %c0_634, %c0_635] : memref<2x4x8x2x32xf32, #tpu.memory_space<vmem>>, vector<1x1x1x2x32xf32>
    %1158 = vector.shape_cast %1157 : vector<1x1x1x2x32xf32> to vector<2x32xf32>
    %1159 = arith.mulf %846, %1100 : vector<2x32xf32>
    %1160 = arith.addf %1158, %1159 : vector<2x32xf32>
    %1161 = arith.addf %1160, %826 : vector<2x32xf32>
    %1162 = arith.negf %1161 : vector<2x32xf32>
    %1163 = math.exp %1162 : vector<2x32xf32>
    %cst_636 = arith.constant 1.000000e+00 : f32
    %1164 = vector.broadcast %cst_636 : f32 to vector<2x32xf32>
    %1165 = arith.addf %1164, %1163 : vector<2x32xf32>
    %1166 = arith.divf %1164, %1165 : vector<2x32xf32>
    %c1_637 = arith.constant 1 : index
    %c2_638 = arith.constant 2 : index
    %1167 = arith.index_cast %1113 : i32 to index
    %c0_639 = arith.constant 0 : index
    %c0_640 = arith.constant 0 : index
    %1168 = vector.load %arg10[%c1_637, %c2_638, %1167, %c0_639, %c0_640] : memref<2x4x8x2x32xf32, #tpu.memory_space<vmem>>, vector<1x1x1x2x32xf32>
    %1169 = vector.shape_cast %1168 : vector<1x1x1x2x32xf32> to vector<2x32xf32>
    %1170 = arith.mulf %856, %1100 : vector<2x32xf32>
    %1171 = arith.addf %1169, %1170 : vector<2x32xf32>
    %1172 = arith.addf %1171, %836 : vector<2x32xf32>
    %1173 = arith.negf %1172 : vector<2x32xf32>
    %1174 = math.exp %1173 : vector<2x32xf32>
    %cst_641 = arith.constant 1.000000e+00 : f32
    %1175 = vector.broadcast %cst_641 : f32 to vector<2x32xf32>
    %1176 = arith.addf %1175, %1174 : vector<2x32xf32>
    %1177 = arith.divf %1175, %1176 : vector<2x32xf32>
    %1178 = arith.mulf %1166, %1100 : vector<2x32xf32>
    %cst_642 = arith.constant 1.000000e+00 : f32
    %1179 = vector.broadcast %cst_642 : f32 to vector<2x32xf32>
    %1180 = arith.subf %1179, %1166 : vector<2x32xf32>
    %c1_643 = arith.constant 1 : index
    %c0_644 = arith.constant 0 : index
    %1181 = arith.index_cast %1113 : i32 to index
    %c0_645 = arith.constant 0 : index
    %c0_646 = arith.constant 0 : index
    %1182 = vector.load %arg10[%c1_643, %c0_644, %1181, %c0_645, %c0_646] : memref<2x4x8x2x32xf32, #tpu.memory_space<vmem>>, vector<1x1x1x2x32xf32>
    %1183 = vector.shape_cast %1182 : vector<1x1x1x2x32xf32> to vector<2x32xf32>
    %1184 = arith.mulf %1180, %1183 : vector<2x32xf32>
    %1185 = arith.addf %1178, %1184 : vector<2x32xf32>
    %1186 = arith.mulf %1177, %1185 : vector<2x32xf32>
    %cst_647 = arith.constant 1.000000e+00 : f32
    %1187 = vector.broadcast %cst_647 : f32 to vector<2x32xf32>
    %1188 = arith.subf %1187, %1177 : vector<2x32xf32>
    %c1_648 = arith.constant 1 : index
    %c3_649 = arith.constant 3 : index
    %1189 = arith.index_cast %1113 : i32 to index
    %c0_650 = arith.constant 0 : index
    %c0_651 = arith.constant 0 : index
    %1190 = vector.load %arg10[%c1_648, %c3_649, %1189, %c0_650, %c0_651] : memref<2x4x8x2x32xf32, #tpu.memory_space<vmem>>, vector<1x1x1x2x32xf32>
    %1191 = vector.shape_cast %1190 : vector<1x1x1x2x32xf32> to vector<2x32xf32>
    %1192 = arith.mulf %1188, %1191 : vector<2x32xf32>
    %1193 = arith.addf %1186, %1192 : vector<2x32xf32>
    %1194 = arith.index_cast %1113 : i32 to index
    %c0_652 = arith.constant 0 : index
    %c0_653 = arith.constant 0 : index
    %1195 = vector.load %arg12[%1194, %c0_652, %c0_653] : memref<8x2x32xf32, #tpu.memory_space<vmem>>, vector<1x2x32xf32>
    %1196 = vector.shape_cast %1195 : vector<1x2x32xf32> to vector<2x32xf32>
    %1197 = vector.shape_cast %1193 : vector<2x32xf32> to vector<1x2x32xf32>
    tpu.vector_store %arg12[%1194, %c0_652, %c0_653], %1197 {strides = array<i32>} : memref<8x2x32xf32, #tpu.memory_space<vmem>>, vector<1x2x32xf32>,
    %c4_i32_654 = arith.constant 4 : i32
    %c7_i32_655 = arith.constant 7 : i32
    %1198 = arith.subi %c7_i32_655, %c4_i32_654 : i32
    %c0_656 = arith.constant 0 : index
    %c1_657 = arith.constant 1 : index
    %1199 = arith.index_cast %c4_i32_654 : i32 to index
    %c0_658 = arith.constant 0 : index
    %c0_659 = arith.constant 0 : index
    %1200 = vector.load %arg10[%c0_656, %c1_657, %1199, %c0_658, %c0_659] : memref<2x4x8x2x32xf32, #tpu.memory_space<vmem>>, vector<1x1x1x2x32xf32>
    %1201 = vector.shape_cast %1200 : vector<1x1x1x2x32xf32> to vector<2x32xf32>
    %1202 = arith.mulf %841, %1143 : vector<2x32xf32>
    %1203 = arith.addf %1201, %1202 : vector<2x32xf32>
    %1204 = arith.addf %1203, %821 : vector<2x32xf32>
    %1205 = arith.negf %1204 : vector<2x32xf32>
    %1206 = math.exp %1205 : vector<2x32xf32>
    %cst_660 = arith.constant 1.000000e+00 : f32
    %1207 = vector.broadcast %cst_660 : f32 to vector<2x32xf32>
    %1208 = arith.addf %1207, %1206 : vector<2x32xf32>
    %1209 = arith.divf %1207, %1208 : vector<2x32xf32>
    %c0_661 = arith.constant 0 : index
    %c2_662 = arith.constant 2 : index
    %1210 = arith.index_cast %c4_i32_654 : i32 to index
    %c0_663 = arith.constant 0 : index
    %c0_664 = arith.constant 0 : index
    %1211 = vector.load %arg10[%c0_661, %c2_662, %1210, %c0_663, %c0_664] : memref<2x4x8x2x32xf32, #tpu.memory_space<vmem>>, vector<1x1x1x2x32xf32>
    %1212 = vector.shape_cast %1211 : vector<1x1x1x2x32xf32> to vector<2x32xf32>
    %1213 = arith.mulf %851, %1143 : vector<2x32xf32>
    %1214 = arith.addf %1212, %1213 : vector<2x32xf32>
    %1215 = arith.addf %1214, %831 : vector<2x32xf32>
    %1216 = arith.negf %1215 : vector<2x32xf32>
    %1217 = math.exp %1216 : vector<2x32xf32>
    %cst_665 = arith.constant 1.000000e+00 : f32
    %1218 = vector.broadcast %cst_665 : f32 to vector<2x32xf32>
    %1219 = arith.addf %1218, %1217 : vector<2x32xf32>
    %1220 = arith.divf %1218, %1219 : vector<2x32xf32>
    %1221 = arith.mulf %1209, %1143 : vector<2x32xf32>
    %cst_666 = arith.constant 1.000000e+00 : f32
    %1222 = vector.broadcast %cst_666 : f32 to vector<2x32xf32>
    %1223 = arith.subf %1222, %1209 : vector<2x32xf32>
    %c0_667 = arith.constant 0 : index
    %c0_668 = arith.constant 0 : index
    %1224 = arith.index_cast %c4_i32_654 : i32 to index
    %c0_669 = arith.constant 0 : index
    %c0_670 = arith.constant 0 : index
    %1225 = vector.load %arg10[%c0_667, %c0_668, %1224, %c0_669, %c0_670] : memref<2x4x8x2x32xf32, #tpu.memory_space<vmem>>, vector<1x1x1x2x32xf32>
    %1226 = vector.shape_cast %1225 : vector<1x1x1x2x32xf32> to vector<2x32xf32>
    %1227 = arith.mulf %1223, %1226 : vector<2x32xf32>
    %1228 = arith.addf %1221, %1227 : vector<2x32xf32>
    %1229 = arith.mulf %1220, %1228 : vector<2x32xf32>
    %cst_671 = arith.constant 1.000000e+00 : f32
    %1230 = vector.broadcast %cst_671 : f32 to vector<2x32xf32>
    %1231 = arith.subf %1230, %1220 : vector<2x32xf32>
    %c0_672 = arith.constant 0 : index
    %c3_673 = arith.constant 3 : index
    %1232 = arith.index_cast %c4_i32_654 : i32 to index
    %c0_674 = arith.constant 0 : index
    %c0_675 = arith.constant 0 : index
    %1233 = vector.load %arg10[%c0_672, %c3_673, %1232, %c0_674, %c0_675] : memref<2x4x8x2x32xf32, #tpu.memory_space<vmem>>, vector<1x1x1x2x32xf32>
    %1234 = vector.shape_cast %1233 : vector<1x1x1x2x32xf32> to vector<2x32xf32>
    %1235 = arith.mulf %1231, %1234 : vector<2x32xf32>
    %1236 = arith.addf %1229, %1235 : vector<2x32xf32>
    %1237 = arith.index_cast %c4_i32_654 : i32 to index
    %c0_676 = arith.constant 0 : index
    %c0_677 = arith.constant 0 : index
    %1238 = vector.load %arg11[%1237, %c0_676, %c0_677] : memref<8x2x32xf32, #tpu.memory_space<vmem>>, vector<1x2x32xf32>
    %1239 = vector.shape_cast %1238 : vector<1x2x32xf32> to vector<2x32xf32>
    %1240 = vector.shape_cast %1236 : vector<2x32xf32> to vector<1x2x32xf32>
    tpu.vector_store %arg11[%1237, %c0_676, %c0_677], %1240 {strides = array<i32>} : memref<8x2x32xf32, #tpu.memory_space<vmem>>, vector<1x2x32xf32>,
    %c1_678 = arith.constant 1 : index
    %c1_679 = arith.constant 1 : index
    %1241 = arith.index_cast %1198 : i32 to index
    %c0_680 = arith.constant 0 : index
    %c0_681 = arith.constant 0 : index
    %1242 = vector.load %arg10[%c1_678, %c1_679, %1241, %c0_680, %c0_681] : memref<2x4x8x2x32xf32, #tpu.memory_space<vmem>>, vector<1x1x1x2x32xf32>
    %1243 = vector.shape_cast %1242 : vector<1x1x1x2x32xf32> to vector<2x32xf32>
    %1244 = arith.mulf %846, %1185 : vector<2x32xf32>
    %1245 = arith.addf %1243, %1244 : vector<2x32xf32>
    %1246 = arith.addf %1245, %826 : vector<2x32xf32>
    %1247 = arith.negf %1246 : vector<2x32xf32>
    %1248 = math.exp %1247 : vector<2x32xf32>
    %cst_682 = arith.constant 1.000000e+00 : f32
    %1249 = vector.broadcast %cst_682 : f32 to vector<2x32xf32>
    %1250 = arith.addf %1249, %1248 : vector<2x32xf32>
    %1251 = arith.divf %1249, %1250 : vector<2x32xf32>
    %c1_683 = arith.constant 1 : index
    %c2_684 = arith.constant 2 : index
    %1252 = arith.index_cast %1198 : i32 to index
    %c0_685 = arith.constant 0 : index
    %c0_686 = arith.constant 0 : index
    %1253 = vector.load %arg10[%c1_683, %c2_684, %1252, %c0_685, %c0_686] : memref<2x4x8x2x32xf32, #tpu.memory_space<vmem>>, vector<1x1x1x2x32xf32>
    %1254 = vector.shape_cast %1253 : vector<1x1x1x2x32xf32> to vector<2x32xf32>
    %1255 = arith.mulf %856, %1185 : vector<2x32xf32>
    %1256 = arith.addf %1254, %1255 : vector<2x32xf32>
    %1257 = arith.addf %1256, %836 : vector<2x32xf32>
    %1258 = arith.negf %1257 : vector<2x32xf32>
    %1259 = math.exp %1258 : vector<2x32xf32>
    %cst_687 = arith.constant 1.000000e+00 : f32
    %1260 = vector.broadcast %cst_687 : f32 to vector<2x32xf32>
    %1261 = arith.addf %1260, %1259 : vector<2x32xf32>
    %1262 = arith.divf %1260, %1261 : vector<2x32xf32>
    %1263 = arith.mulf %1251, %1185 : vector<2x32xf32>
    %cst_688 = arith.constant 1.000000e+00 : f32
    %1264 = vector.broadcast %cst_688 : f32 to vector<2x32xf32>
    %1265 = arith.subf %1264, %1251 : vector<2x32xf32>
    %c1_689 = arith.constant 1 : index
    %c0_690 = arith.constant 0 : index
    %1266 = arith.index_cast %1198 : i32 to index
    %c0_691 = arith.constant 0 : index
    %c0_692 = arith.constant 0 : index
    %1267 = vector.load %arg10[%c1_689, %c0_690, %1266, %c0_691, %c0_692] : memref<2x4x8x2x32xf32, #tpu.memory_space<vmem>>, vector<1x1x1x2x32xf32>
    %1268 = vector.shape_cast %1267 : vector<1x1x1x2x32xf32> to vector<2x32xf32>
    %1269 = arith.mulf %1265, %1268 : vector<2x32xf32>
    %1270 = arith.addf %1263, %1269 : vector<2x32xf32>
    %1271 = arith.mulf %1262, %1270 : vector<2x32xf32>
    %cst_693 = arith.constant 1.000000e+00 : f32
    %1272 = vector.broadcast %cst_693 : f32 to vector<2x32xf32>
    %1273 = arith.subf %1272, %1262 : vector<2x32xf32>
    %c1_694 = arith.constant 1 : index
    %c3_695 = arith.constant 3 : index
    %1274 = arith.index_cast %1198 : i32 to index
    %c0_696 = arith.constant 0 : index
    %c0_697 = arith.constant 0 : index
    %1275 = vector.load %arg10[%c1_694, %c3_695, %1274, %c0_696, %c0_697] : memref<2x4x8x2x32xf32, #tpu.memory_space<vmem>>, vector<1x1x1x2x32xf32>
    %1276 = vector.shape_cast %1275 : vector<1x1x1x2x32xf32> to vector<2x32xf32>
    %1277 = arith.mulf %1273, %1276 : vector<2x32xf32>
    %1278 = arith.addf %1271, %1277 : vector<2x32xf32>
    %1279 = arith.index_cast %1198 : i32 to index
    %c0_698 = arith.constant 0 : index
    %c0_699 = arith.constant 0 : index
    %1280 = vector.load %arg12[%1279, %c0_698, %c0_699] : memref<8x2x32xf32, #tpu.memory_space<vmem>>, vector<1x2x32xf32>
    %1281 = vector.shape_cast %1280 : vector<1x2x32xf32> to vector<2x32xf32>
    %1282 = vector.shape_cast %1278 : vector<2x32xf32> to vector<1x2x32xf32>
    tpu.vector_store %arg12[%1279, %c0_698, %c0_699], %1282 {strides = array<i32>} : memref<8x2x32xf32, #tpu.memory_space<vmem>>, vector<1x2x32xf32>,
    %c5_i32_700 = arith.constant 5 : i32
    %c7_i32_701 = arith.constant 7 : i32
    %1283 = arith.subi %c7_i32_701, %c5_i32_700 : i32
    %c0_702 = arith.constant 0 : index
    %c1_703 = arith.constant 1 : index
    %1284 = arith.index_cast %c5_i32_700 : i32 to index
    %c0_704 = arith.constant 0 : index
    %c0_705 = arith.constant 0 : index
    %1285 = vector.load %arg10[%c0_702, %c1_703, %1284, %c0_704, %c0_705] : memref<2x4x8x2x32xf32, #tpu.memory_space<vmem>>, vector<1x1x1x2x32xf32>
    %1286 = vector.shape_cast %1285 : vector<1x1x1x2x32xf32> to vector<2x32xf32>
    %1287 = arith.mulf %841, %1228 : vector<2x32xf32>
    %1288 = arith.addf %1286, %1287 : vector<2x32xf32>
    %1289 = arith.addf %1288, %821 : vector<2x32xf32>
    %1290 = arith.negf %1289 : vector<2x32xf32>
    %1291 = math.exp %1290 : vector<2x32xf32>
    %cst_706 = arith.constant 1.000000e+00 : f32
    %1292 = vector.broadcast %cst_706 : f32 to vector<2x32xf32>
    %1293 = arith.addf %1292, %1291 : vector<2x32xf32>
    %1294 = arith.divf %1292, %1293 : vector<2x32xf32>
    %c0_707 = arith.constant 0 : index
    %c2_708 = arith.constant 2 : index
    %1295 = arith.index_cast %c5_i32_700 : i32 to index
    %c0_709 = arith.constant 0 : index
    %c0_710 = arith.constant 0 : index
    %1296 = vector.load %arg10[%c0_707, %c2_708, %1295, %c0_709, %c0_710] : memref<2x4x8x2x32xf32, #tpu.memory_space<vmem>>, vector<1x1x1x2x32xf32>
    %1297 = vector.shape_cast %1296 : vector<1x1x1x2x32xf32> to vector<2x32xf32>
    %1298 = arith.mulf %851, %1228 : vector<2x32xf32>
    %1299 = arith.addf %1297, %1298 : vector<2x32xf32>
    %1300 = arith.addf %1299, %831 : vector<2x32xf32>
    %1301 = arith.negf %1300 : vector<2x32xf32>
    %1302 = math.exp %1301 : vector<2x32xf32>
    %cst_711 = arith.constant 1.000000e+00 : f32
    %1303 = vector.broadcast %cst_711 : f32 to vector<2x32xf32>
    %1304 = arith.addf %1303, %1302 : vector<2x32xf32>
    %1305 = arith.divf %1303, %1304 : vector<2x32xf32>
    %1306 = arith.mulf %1294, %1228 : vector<2x32xf32>
    %cst_712 = arith.constant 1.000000e+00 : f32
    %1307 = vector.broadcast %cst_712 : f32 to vector<2x32xf32>
    %1308 = arith.subf %1307, %1294 : vector<2x32xf32>
    %c0_713 = arith.constant 0 : index
    %c0_714 = arith.constant 0 : index
    %1309 = arith.index_cast %c5_i32_700 : i32 to index
    %c0_715 = arith.constant 0 : index
    %c0_716 = arith.constant 0 : index
    %1310 = vector.load %arg10[%c0_713, %c0_714, %1309, %c0_715, %c0_716] : memref<2x4x8x2x32xf32, #tpu.memory_space<vmem>>, vector<1x1x1x2x32xf32>
    %1311 = vector.shape_cast %1310 : vector<1x1x1x2x32xf32> to vector<2x32xf32>
    %1312 = arith.mulf %1308, %1311 : vector<2x32xf32>
    %1313 = arith.addf %1306, %1312 : vector<2x32xf32>
    %1314 = arith.mulf %1305, %1313 : vector<2x32xf32>
    %cst_717 = arith.constant 1.000000e+00 : f32
    %1315 = vector.broadcast %cst_717 : f32 to vector<2x32xf32>
    %1316 = arith.subf %1315, %1305 : vector<2x32xf32>
    %c0_718 = arith.constant 0 : index
    %c3_719 = arith.constant 3 : index
    %1317 = arith.index_cast %c5_i32_700 : i32 to index
    %c0_720 = arith.constant 0 : index
    %c0_721 = arith.constant 0 : index
    %1318 = vector.load %arg10[%c0_718, %c3_719, %1317, %c0_720, %c0_721] : memref<2x4x8x2x32xf32, #tpu.memory_space<vmem>>, vector<1x1x1x2x32xf32>
    %1319 = vector.shape_cast %1318 : vector<1x1x1x2x32xf32> to vector<2x32xf32>
    %1320 = arith.mulf %1316, %1319 : vector<2x32xf32>
    %1321 = arith.addf %1314, %1320 : vector<2x32xf32>
    %1322 = arith.index_cast %c5_i32_700 : i32 to index
    %c0_722 = arith.constant 0 : index
    %c0_723 = arith.constant 0 : index
    %1323 = vector.load %arg11[%1322, %c0_722, %c0_723] : memref<8x2x32xf32, #tpu.memory_space<vmem>>, vector<1x2x32xf32>
    %1324 = vector.shape_cast %1323 : vector<1x2x32xf32> to vector<2x32xf32>
    %1325 = vector.shape_cast %1321 : vector<2x32xf32> to vector<1x2x32xf32>
    tpu.vector_store %arg11[%1322, %c0_722, %c0_723], %1325 {strides = array<i32>} : memref<8x2x32xf32, #tpu.memory_space<vmem>>, vector<1x2x32xf32>,
    %c1_724 = arith.constant 1 : index
    %c1_725 = arith.constant 1 : index
    %1326 = arith.index_cast %1283 : i32 to index
    %c0_726 = arith.constant 0 : index
    %c0_727 = arith.constant 0 : index
    %1327 = vector.load %arg10[%c1_724, %c1_725, %1326, %c0_726, %c0_727] : memref<2x4x8x2x32xf32, #tpu.memory_space<vmem>>, vector<1x1x1x2x32xf32>
    %1328 = vector.shape_cast %1327 : vector<1x1x1x2x32xf32> to vector<2x32xf32>
    %1329 = arith.mulf %846, %1270 : vector<2x32xf32>
    %1330 = arith.addf %1328, %1329 : vector<2x32xf32>
    %1331 = arith.addf %1330, %826 : vector<2x32xf32>
    %1332 = arith.negf %1331 : vector<2x32xf32>
    %1333 = math.exp %1332 : vector<2x32xf32>
    %cst_728 = arith.constant 1.000000e+00 : f32
    %1334 = vector.broadcast %cst_728 : f32 to vector<2x32xf32>
    %1335 = arith.addf %1334, %1333 : vector<2x32xf32>
    %1336 = arith.divf %1334, %1335 : vector<2x32xf32>
    %c1_729 = arith.constant 1 : index
    %c2_730 = arith.constant 2 : index
    %1337 = arith.index_cast %1283 : i32 to index
    %c0_731 = arith.constant 0 : index
    %c0_732 = arith.constant 0 : index
    %1338 = vector.load %arg10[%c1_729, %c2_730, %1337, %c0_731, %c0_732] : memref<2x4x8x2x32xf32, #tpu.memory_space<vmem>>, vector<1x1x1x2x32xf32>
    %1339 = vector.shape_cast %1338 : vector<1x1x1x2x32xf32> to vector<2x32xf32>
    %1340 = arith.mulf %856, %1270 : vector<2x32xf32>
    %1341 = arith.addf %1339, %1340 : vector<2x32xf32>
    %1342 = arith.addf %1341, %836 : vector<2x32xf32>
    %1343 = arith.negf %1342 : vector<2x32xf32>
    %1344 = math.exp %1343 : vector<2x32xf32>
    %cst_733 = arith.constant 1.000000e+00 : f32
    %1345 = vector.broadcast %cst_733 : f32 to vector<2x32xf32>
    %1346 = arith.addf %1345, %1344 : vector<2x32xf32>
    %1347 = arith.divf %1345, %1346 : vector<2x32xf32>
    %1348 = arith.mulf %1336, %1270 : vector<2x32xf32>
    %cst_734 = arith.constant 1.000000e+00 : f32
    %1349 = vector.broadcast %cst_734 : f32 to vector<2x32xf32>
    %1350 = arith.subf %1349, %1336 : vector<2x32xf32>
    %c1_735 = arith.constant 1 : index
    %c0_736 = arith.constant 0 : index
    %1351 = arith.index_cast %1283 : i32 to index
    %c0_737 = arith.constant 0 : index
    %c0_738 = arith.constant 0 : index
    %1352 = vector.load %arg10[%c1_735, %c0_736, %1351, %c0_737, %c0_738] : memref<2x4x8x2x32xf32, #tpu.memory_space<vmem>>, vector<1x1x1x2x32xf32>
    %1353 = vector.shape_cast %1352 : vector<1x1x1x2x32xf32> to vector<2x32xf32>
    %1354 = arith.mulf %1350, %1353 : vector<2x32xf32>
    %1355 = arith.addf %1348, %1354 : vector<2x32xf32>
    %1356 = arith.mulf %1347, %1355 : vector<2x32xf32>
    %cst_739 = arith.constant 1.000000e+00 : f32
    %1357 = vector.broadcast %cst_739 : f32 to vector<2x32xf32>
    %1358 = arith.subf %1357, %1347 : vector<2x32xf32>
    %c1_740 = arith.constant 1 : index
    %c3_741 = arith.constant 3 : index
    %1359 = arith.index_cast %1283 : i32 to index
    %c0_742 = arith.constant 0 : index
    %c0_743 = arith.constant 0 : index
    %1360 = vector.load %arg10[%c1_740, %c3_741, %1359, %c0_742, %c0_743] : memref<2x4x8x2x32xf32, #tpu.memory_space<vmem>>, vector<1x1x1x2x32xf32>
    %1361 = vector.shape_cast %1360 : vector<1x1x1x2x32xf32> to vector<2x32xf32>
    %1362 = arith.mulf %1358, %1361 : vector<2x32xf32>
    %1363 = arith.addf %1356, %1362 : vector<2x32xf32>
    %1364 = arith.index_cast %1283 : i32 to index
    %c0_744 = arith.constant 0 : index
    %c0_745 = arith.constant 0 : index
    %1365 = vector.load %arg12[%1364, %c0_744, %c0_745] : memref<8x2x32xf32, #tpu.memory_space<vmem>>, vector<1x2x32xf32>
    %1366 = vector.shape_cast %1365 : vector<1x2x32xf32> to vector<2x32xf32>
    %1367 = vector.shape_cast %1363 : vector<2x32xf32> to vector<1x2x32xf32>
    tpu.vector_store %arg12[%1364, %c0_744, %c0_745], %1367 {strides = array<i32>} : memref<8x2x32xf32, #tpu.memory_space<vmem>>, vector<1x2x32xf32>,
    %c6_i32_746 = arith.constant 6 : i32
    %c7_i32_747 = arith.constant 7 : i32
    %1368 = arith.subi %c7_i32_747, %c6_i32_746 : i32
    %c0_748 = arith.constant 0 : index
    %c1_749 = arith.constant 1 : index
    %1369 = arith.index_cast %c6_i32_746 : i32 to index
    %c0_750 = arith.constant 0 : index
    %c0_751 = arith.constant 0 : index
    %1370 = vector.load %arg10[%c0_748, %c1_749, %1369, %c0_750, %c0_751] : memref<2x4x8x2x32xf32, #tpu.memory_space<vmem>>, vector<1x1x1x2x32xf32>
    %1371 = vector.shape_cast %1370 : vector<1x1x1x2x32xf32> to vector<2x32xf32>
    %1372 = arith.mulf %841, %1313 : vector<2x32xf32>
    %1373 = arith.addf %1371, %1372 : vector<2x32xf32>
    %1374 = arith.addf %1373, %821 : vector<2x32xf32>
    %1375 = arith.negf %1374 : vector<2x32xf32>
    %1376 = math.exp %1375 : vector<2x32xf32>
    %cst_752 = arith.constant 1.000000e+00 : f32
    %1377 = vector.broadcast %cst_752 : f32 to vector<2x32xf32>
    %1378 = arith.addf %1377, %1376 : vector<2x32xf32>
    %1379 = arith.divf %1377, %1378 : vector<2x32xf32>
    %c0_753 = arith.constant 0 : index
    %c2_754 = arith.constant 2 : index
    %1380 = arith.index_cast %c6_i32_746 : i32 to index
    %c0_755 = arith.constant 0 : index
    %c0_756 = arith.constant 0 : index
    %1381 = vector.load %arg10[%c0_753, %c2_754, %1380, %c0_755, %c0_756] : memref<2x4x8x2x32xf32, #tpu.memory_space<vmem>>, vector<1x1x1x2x32xf32>
    %1382 = vector.shape_cast %1381 : vector<1x1x1x2x32xf32> to vector<2x32xf32>
    %1383 = arith.mulf %851, %1313 : vector<2x32xf32>
    %1384 = arith.addf %1382, %1383 : vector<2x32xf32>
    %1385 = arith.addf %1384, %831 : vector<2x32xf32>
    %1386 = arith.negf %1385 : vector<2x32xf32>
    %1387 = math.exp %1386 : vector<2x32xf32>
    %cst_757 = arith.constant 1.000000e+00 : f32
    %1388 = vector.broadcast %cst_757 : f32 to vector<2x32xf32>
    %1389 = arith.addf %1388, %1387 : vector<2x32xf32>
    %1390 = arith.divf %1388, %1389 : vector<2x32xf32>
    %1391 = arith.mulf %1379, %1313 : vector<2x32xf32>
    %cst_758 = arith.constant 1.000000e+00 : f32
    %1392 = vector.broadcast %cst_758 : f32 to vector<2x32xf32>
    %1393 = arith.subf %1392, %1379 : vector<2x32xf32>
    %c0_759 = arith.constant 0 : index
    %c0_760 = arith.constant 0 : index
    %1394 = arith.index_cast %c6_i32_746 : i32 to index
    %c0_761 = arith.constant 0 : index
    %c0_762 = arith.constant 0 : index
    %1395 = vector.load %arg10[%c0_759, %c0_760, %1394, %c0_761, %c0_762] : memref<2x4x8x2x32xf32, #tpu.memory_space<vmem>>, vector<1x1x1x2x32xf32>
    %1396 = vector.shape_cast %1395 : vector<1x1x1x2x32xf32> to vector<2x32xf32>
    %1397 = arith.mulf %1393, %1396 : vector<2x32xf32>
    %1398 = arith.addf %1391, %1397 : vector<2x32xf32>
    %1399 = arith.mulf %1390, %1398 : vector<2x32xf32>
    %cst_763 = arith.constant 1.000000e+00 : f32
    %1400 = vector.broadcast %cst_763 : f32 to vector<2x32xf32>
    %1401 = arith.subf %1400, %1390 : vector<2x32xf32>
    %c0_764 = arith.constant 0 : index
    %c3_765 = arith.constant 3 : index
    %1402 = arith.index_cast %c6_i32_746 : i32 to index
    %c0_766 = arith.constant 0 : index
    %c0_767 = arith.constant 0 : index
    %1403 = vector.load %arg10[%c0_764, %c3_765, %1402, %c0_766, %c0_767] : memref<2x4x8x2x32xf32, #tpu.memory_space<vmem>>, vector<1x1x1x2x32xf32>
    %1404 = vector.shape_cast %1403 : vector<1x1x1x2x32xf32> to vector<2x32xf32>
    %1405 = arith.mulf %1401, %1404 : vector<2x32xf32>
    %1406 = arith.addf %1399, %1405 : vector<2x32xf32>
    %1407 = arith.index_cast %c6_i32_746 : i32 to index
    %c0_768 = arith.constant 0 : index
    %c0_769 = arith.constant 0 : index
    %1408 = vector.load %arg11[%1407, %c0_768, %c0_769] : memref<8x2x32xf32, #tpu.memory_space<vmem>>, vector<1x2x32xf32>
    %1409 = vector.shape_cast %1408 : vector<1x2x32xf32> to vector<2x32xf32>
    %1410 = vector.shape_cast %1406 : vector<2x32xf32> to vector<1x2x32xf32>
    tpu.vector_store %arg11[%1407, %c0_768, %c0_769], %1410 {strides = array<i32>} : memref<8x2x32xf32, #tpu.memory_space<vmem>>, vector<1x2x32xf32>,
    %c1_770 = arith.constant 1 : index
    %c1_771 = arith.constant 1 : index
    %1411 = arith.index_cast %1368 : i32 to index
    %c0_772 = arith.constant 0 : index
    %c0_773 = arith.constant 0 : index
    %1412 = vector.load %arg10[%c1_770, %c1_771, %1411, %c0_772, %c0_773] : memref<2x4x8x2x32xf32, #tpu.memory_space<vmem>>, vector<1x1x1x2x32xf32>
    %1413 = vector.shape_cast %1412 : vector<1x1x1x2x32xf32> to vector<2x32xf32>
    %1414 = arith.mulf %846, %1355 : vector<2x32xf32>
    %1415 = arith.addf %1413, %1414 : vector<2x32xf32>
    %1416 = arith.addf %1415, %826 : vector<2x32xf32>
    %1417 = arith.negf %1416 : vector<2x32xf32>
    %1418 = math.exp %1417 : vector<2x32xf32>
    %cst_774 = arith.constant 1.000000e+00 : f32
    %1419 = vector.broadcast %cst_774 : f32 to vector<2x32xf32>
    %1420 = arith.addf %1419, %1418 : vector<2x32xf32>
    %1421 = arith.divf %1419, %1420 : vector<2x32xf32>
    %c1_775 = arith.constant 1 : index
    %c2_776 = arith.constant 2 : index
    %1422 = arith.index_cast %1368 : i32 to index
    %c0_777 = arith.constant 0 : index
    %c0_778 = arith.constant 0 : index
    %1423 = vector.load %arg10[%c1_775, %c2_776, %1422, %c0_777, %c0_778] : memref<2x4x8x2x32xf32, #tpu.memory_space<vmem>>, vector<1x1x1x2x32xf32>
    %1424 = vector.shape_cast %1423 : vector<1x1x1x2x32xf32> to vector<2x32xf32>
    %1425 = arith.mulf %856, %1355 : vector<2x32xf32>
    %1426 = arith.addf %1424, %1425 : vector<2x32xf32>
    %1427 = arith.addf %1426, %836 : vector<2x32xf32>
    %1428 = arith.negf %1427 : vector<2x32xf32>
    %1429 = math.exp %1428 : vector<2x32xf32>
    %cst_779 = arith.constant 1.000000e+00 : f32
    %1430 = vector.broadcast %cst_779 : f32 to vector<2x32xf32>
    %1431 = arith.addf %1430, %1429 : vector<2x32xf32>
    %1432 = arith.divf %1430, %1431 : vector<2x32xf32>
    %1433 = arith.mulf %1421, %1355 : vector<2x32xf32>
    %cst_780 = arith.constant 1.000000e+00 : f32
    %1434 = vector.broadcast %cst_780 : f32 to vector<2x32xf32>
    %1435 = arith.subf %1434, %1421 : vector<2x32xf32>
    %c1_781 = arith.constant 1 : index
    %c0_782 = arith.constant 0 : index
    %1436 = arith.index_cast %1368 : i32 to index
    %c0_783 = arith.constant 0 : index
    %c0_784 = arith.constant 0 : index
    %1437 = vector.load %arg10[%c1_781, %c0_782, %1436, %c0_783, %c0_784] : memref<2x4x8x2x32xf32, #tpu.memory_space<vmem>>, vector<1x1x1x2x32xf32>
    %1438 = vector.shape_cast %1437 : vector<1x1x1x2x32xf32> to vector<2x32xf32>
    %1439 = arith.mulf %1435, %1438 : vector<2x32xf32>
    %1440 = arith.addf %1433, %1439 : vector<2x32xf32>
    %1441 = arith.mulf %1432, %1440 : vector<2x32xf32>
    %cst_785 = arith.constant 1.000000e+00 : f32
    %1442 = vector.broadcast %cst_785 : f32 to vector<2x32xf32>
    %1443 = arith.subf %1442, %1432 : vector<2x32xf32>
    %c1_786 = arith.constant 1 : index
    %c3_787 = arith.constant 3 : index
    %1444 = arith.index_cast %1368 : i32 to index
    %c0_788 = arith.constant 0 : index
    %c0_789 = arith.constant 0 : index
    %1445 = vector.load %arg10[%c1_786, %c3_787, %1444, %c0_788, %c0_789] : memref<2x4x8x2x32xf32, #tpu.memory_space<vmem>>, vector<1x1x1x2x32xf32>
    %1446 = vector.shape_cast %1445 : vector<1x1x1x2x32xf32> to vector<2x32xf32>
    %1447 = arith.mulf %1443, %1446 : vector<2x32xf32>
    %1448 = arith.addf %1441, %1447 : vector<2x32xf32>
    %1449 = arith.index_cast %1368 : i32 to index
    %c0_790 = arith.constant 0 : index
    %c0_791 = arith.constant 0 : index
    %1450 = vector.load %arg12[%1449, %c0_790, %c0_791] : memref<8x2x32xf32, #tpu.memory_space<vmem>>, vector<1x2x32xf32>
    %1451 = vector.shape_cast %1450 : vector<1x2x32xf32> to vector<2x32xf32>
    %1452 = vector.shape_cast %1448 : vector<2x32xf32> to vector<1x2x32xf32>
    tpu.vector_store %arg12[%1449, %c0_790, %c0_791], %1452 {strides = array<i32>} : memref<8x2x32xf32, #tpu.memory_space<vmem>>, vector<1x2x32xf32>,
    %c7_i32_792 = arith.constant 7 : i32
    %c7_i32_793 = arith.constant 7 : i32
    %1453 = arith.subi %c7_i32_793, %c7_i32_792 : i32
    %c0_794 = arith.constant 0 : index
    %c1_795 = arith.constant 1 : index
    %1454 = arith.index_cast %c7_i32_792 : i32 to index
    %c0_796 = arith.constant 0 : index
    %c0_797 = arith.constant 0 : index
    %1455 = vector.load %arg10[%c0_794, %c1_795, %1454, %c0_796, %c0_797] : memref<2x4x8x2x32xf32, #tpu.memory_space<vmem>>, vector<1x1x1x2x32xf32>
    %1456 = vector.shape_cast %1455 : vector<1x1x1x2x32xf32> to vector<2x32xf32>
    %1457 = arith.mulf %841, %1398 : vector<2x32xf32>
    %1458 = arith.addf %1456, %1457 : vector<2x32xf32>
    %1459 = arith.addf %1458, %821 : vector<2x32xf32>
    %1460 = arith.negf %1459 : vector<2x32xf32>
    %1461 = math.exp %1460 : vector<2x32xf32>
    %cst_798 = arith.constant 1.000000e+00 : f32
    %1462 = vector.broadcast %cst_798 : f32 to vector<2x32xf32>
    %1463 = arith.addf %1462, %1461 : vector<2x32xf32>
    %1464 = arith.divf %1462, %1463 : vector<2x32xf32>
    %c0_799 = arith.constant 0 : index
    %c2_800 = arith.constant 2 : index
    %1465 = arith.index_cast %c7_i32_792 : i32 to index
    %c0_801 = arith.constant 0 : index
    %c0_802 = arith.constant 0 : index
    %1466 = vector.load %arg10[%c0_799, %c2_800, %1465, %c0_801, %c0_802] : memref<2x4x8x2x32xf32, #tpu.memory_space<vmem>>, vector<1x1x1x2x32xf32>
    %1467 = vector.shape_cast %1466 : vector<1x1x1x2x32xf32> to vector<2x32xf32>
    %1468 = arith.mulf %851, %1398 : vector<2x32xf32>
    %1469 = arith.addf %1467, %1468 : vector<2x32xf32>
    %1470 = arith.addf %1469, %831 : vector<2x32xf32>
    %1471 = arith.negf %1470 : vector<2x32xf32>
    %1472 = math.exp %1471 : vector<2x32xf32>
    %cst_803 = arith.constant 1.000000e+00 : f32
    %1473 = vector.broadcast %cst_803 : f32 to vector<2x32xf32>
    %1474 = arith.addf %1473, %1472 : vector<2x32xf32>
    %1475 = arith.divf %1473, %1474 : vector<2x32xf32>
    %1476 = arith.mulf %1464, %1398 : vector<2x32xf32>
    %cst_804 = arith.constant 1.000000e+00 : f32
    %1477 = vector.broadcast %cst_804 : f32 to vector<2x32xf32>
    %1478 = arith.subf %1477, %1464 : vector<2x32xf32>
    %c0_805 = arith.constant 0 : index
    %c0_806 = arith.constant 0 : index
    %1479 = arith.index_cast %c7_i32_792 : i32 to index
    %c0_807 = arith.constant 0 : index
    %c0_808 = arith.constant 0 : index
    %1480 = vector.load %arg10[%c0_805, %c0_806, %1479, %c0_807, %c0_808] : memref<2x4x8x2x32xf32, #tpu.memory_space<vmem>>, vector<1x1x1x2x32xf32>
    %1481 = vector.shape_cast %1480 : vector<1x1x1x2x32xf32> to vector<2x32xf32>
    %1482 = arith.mulf %1478, %1481 : vector<2x32xf32>
    %1483 = arith.addf %1476, %1482 : vector<2x32xf32>
    %1484 = arith.mulf %1475, %1483 : vector<2x32xf32>
    %cst_809 = arith.constant 1.000000e+00 : f32
    %1485 = vector.broadcast %cst_809 : f32 to vector<2x32xf32>
    %1486 = arith.subf %1485, %1475 : vector<2x32xf32>
    %c0_810 = arith.constant 0 : index
    %c3_811 = arith.constant 3 : index
    %1487 = arith.index_cast %c7_i32_792 : i32 to index
    %c0_812 = arith.constant 0 : index
    %c0_813 = arith.constant 0 : index
    %1488 = vector.load %arg10[%c0_810, %c3_811, %1487, %c0_812, %c0_813] : memref<2x4x8x2x32xf32, #tpu.memory_space<vmem>>, vector<1x1x1x2x32xf32>
    %1489 = vector.shape_cast %1488 : vector<1x1x1x2x32xf32> to vector<2x32xf32>
    %1490 = arith.mulf %1486, %1489 : vector<2x32xf32>
    %1491 = arith.addf %1484, %1490 : vector<2x32xf32>
    %1492 = arith.index_cast %c7_i32_792 : i32 to index
    %c0_814 = arith.constant 0 : index
    %c0_815 = arith.constant 0 : index
    %1493 = vector.load %arg11[%1492, %c0_814, %c0_815] : memref<8x2x32xf32, #tpu.memory_space<vmem>>, vector<1x2x32xf32>
    %1494 = vector.shape_cast %1493 : vector<1x2x32xf32> to vector<2x32xf32>
    %1495 = vector.shape_cast %1491 : vector<2x32xf32> to vector<1x2x32xf32>
    tpu.vector_store %arg11[%1492, %c0_814, %c0_815], %1495 {strides = array<i32>} : memref<8x2x32xf32, #tpu.memory_space<vmem>>, vector<1x2x32xf32>,
    %c1_816 = arith.constant 1 : index
    %c1_817 = arith.constant 1 : index
    %1496 = arith.index_cast %1453 : i32 to index
    %c0_818 = arith.constant 0 : index
    %c0_819 = arith.constant 0 : index
    %1497 = vector.load %arg10[%c1_816, %c1_817, %1496, %c0_818, %c0_819] : memref<2x4x8x2x32xf32, #tpu.memory_space<vmem>>, vector<1x1x1x2x32xf32>
    %1498 = vector.shape_cast %1497 : vector<1x1x1x2x32xf32> to vector<2x32xf32>
    %1499 = arith.mulf %846, %1440 : vector<2x32xf32>
    %1500 = arith.addf %1498, %1499 : vector<2x32xf32>
    %1501 = arith.addf %1500, %826 : vector<2x32xf32>
    %1502 = arith.negf %1501 : vector<2x32xf32>
    %1503 = math.exp %1502 : vector<2x32xf32>
    %cst_820 = arith.constant 1.000000e+00 : f32
    %1504 = vector.broadcast %cst_820 : f32 to vector<2x32xf32>
    %1505 = arith.addf %1504, %1503 : vector<2x32xf32>
    %1506 = arith.divf %1504, %1505 : vector<2x32xf32>
    %c1_821 = arith.constant 1 : index
    %c2_822 = arith.constant 2 : index
    %1507 = arith.index_cast %1453 : i32 to index
    %c0_823 = arith.constant 0 : index
    %c0_824 = arith.constant 0 : index
    %1508 = vector.load %arg10[%c1_821, %c2_822, %1507, %c0_823, %c0_824] : memref<2x4x8x2x32xf32, #tpu.memory_space<vmem>>, vector<1x1x1x2x32xf32>
    %1509 = vector.shape_cast %1508 : vector<1x1x1x2x32xf32> to vector<2x32xf32>
    %1510 = arith.mulf %856, %1440 : vector<2x32xf32>
    %1511 = arith.addf %1509, %1510 : vector<2x32xf32>
    %1512 = arith.addf %1511, %836 : vector<2x32xf32>
    %1513 = arith.negf %1512 : vector<2x32xf32>
    %1514 = math.exp %1513 : vector<2x32xf32>
    %cst_825 = arith.constant 1.000000e+00 : f32
    %1515 = vector.broadcast %cst_825 : f32 to vector<2x32xf32>
    %1516 = arith.addf %1515, %1514 : vector<2x32xf32>
    %1517 = arith.divf %1515, %1516 : vector<2x32xf32>
    %1518 = arith.mulf %1506, %1440 : vector<2x32xf32>
    %cst_826 = arith.constant 1.000000e+00 : f32
    %1519 = vector.broadcast %cst_826 : f32 to vector<2x32xf32>
    %1520 = arith.subf %1519, %1506 : vector<2x32xf32>
    %c1_827 = arith.constant 1 : index
    %c0_828 = arith.constant 0 : index
    %1521 = arith.index_cast %1453 : i32 to index
    %c0_829 = arith.constant 0 : index
    %c0_830 = arith.constant 0 : index
    %1522 = vector.load %arg10[%c1_827, %c0_828, %1521, %c0_829, %c0_830] : memref<2x4x8x2x32xf32, #tpu.memory_space<vmem>>, vector<1x1x1x2x32xf32>
    %1523 = vector.shape_cast %1522 : vector<1x1x1x2x32xf32> to vector<2x32xf32>
    %1524 = arith.mulf %1520, %1523 : vector<2x32xf32>
    %1525 = arith.addf %1518, %1524 : vector<2x32xf32>
    %1526 = arith.mulf %1517, %1525 : vector<2x32xf32>
    %cst_831 = arith.constant 1.000000e+00 : f32
    %1527 = vector.broadcast %cst_831 : f32 to vector<2x32xf32>
    %1528 = arith.subf %1527, %1517 : vector<2x32xf32>
    %c1_832 = arith.constant 1 : index
    %c3_833 = arith.constant 3 : index
    %1529 = arith.index_cast %1453 : i32 to index
    %c0_834 = arith.constant 0 : index
    %c0_835 = arith.constant 0 : index
    %1530 = vector.load %arg10[%c1_832, %c3_833, %1529, %c0_834, %c0_835] : memref<2x4x8x2x32xf32, #tpu.memory_space<vmem>>, vector<1x1x1x2x32xf32>
    %1531 = vector.shape_cast %1530 : vector<1x1x1x2x32xf32> to vector<2x32xf32>
    %1532 = arith.mulf %1528, %1531 : vector<2x32xf32>
    %1533 = arith.addf %1526, %1532 : vector<2x32xf32>
    %1534 = arith.index_cast %1453 : i32 to index
    %c0_836 = arith.constant 0 : index
    %c0_837 = arith.constant 0 : index
    %1535 = vector.load %arg12[%1534, %c0_836, %c0_837] : memref<8x2x32xf32, #tpu.memory_space<vmem>>, vector<1x2x32xf32>
    %1536 = vector.shape_cast %1535 : vector<1x2x32xf32> to vector<2x32xf32>
    %1537 = vector.shape_cast %1533 : vector<2x32xf32> to vector<1x2x32xf32>
    tpu.vector_store %arg12[%1534, %c0_836, %c0_837], %1537 {strides = array<i32>} : memref<8x2x32xf32, #tpu.memory_space<vmem>>, vector<1x2x32xf32>,
    %c8_i32_838 = arith.constant 8 : i32
    %c0_839 = arith.constant 0 : index
    %c0_840 = arith.constant 0 : index
    %c0_841 = arith.constant 0 : index
    %1538 = vector.load %arg11[%c0_839, %c0_840, %c0_841] : memref<8x2x32xf32, #tpu.memory_space<vmem>>, vector<8x2x32xf32>
    %c0_842 = arith.constant 0 : index
    %c0_843 = arith.constant 0 : index
    %c0_844 = arith.constant 0 : index
    %1539 = vector.load %arg12[%c0_842, %c0_843, %c0_844] : memref<8x2x32xf32, #tpu.memory_space<vmem>>, vector<8x2x32xf32>
    %1540 = tpu.concatenate %1538, %1539 in 2 : vector<8x2x32xf32>, vector<8x2x32xf32> -> vector<8x2x64xf32>
    %c0_845 = arith.constant 0 : index
    %c0_846 = arith.constant 0 : index
    %c0_847 = arith.constant 0 : index
    %1541 = vector.load %arg9[%c0_845, %c0_846, %c0_847] : memref<8x2x64xf32, #tpu.memory_space<vmem>>, vector<8x2x64xf32>
    tpu.vector_store %arg9[%c0_845, %c0_846, %c0_847], %1540 {strides = array<i32>} : memref<8x2x64xf32, #tpu.memory_space<vmem>>, vector<8x2x64xf32>,
    %c0_848 = arith.constant 0 : index
    %c0_849 = arith.constant 0 : index
    %c0_850 = arith.constant 0 : index
    %1542 = vector.load %arg9[%c0_848, %c0_849, %c0_850] : memref<8x2x64xf32, #tpu.memory_space<vmem>>, vector<8x2x64xf32>
    %c0_851 = arith.constant 0 : index
    %c0_852 = arith.constant 0 : index
    %c0_853 = arith.constant 0 : index
    %1543 = vector.load %arg8[%c0_851, %c0_852, %c0_853] : memref<8x2x64xf32, #tpu.memory_space<vmem>>, vector<8x2x64xf32>
    tpu.vector_store %arg8[%c0_851, %c0_852, %c0_853], %1542 {strides = array<i32>} : memref<8x2x64xf32, #tpu.memory_space<vmem>>, vector<8x2x64xf32>,
    return
  }
  func.func @transform_0(%arg0: i32) -> (i32, i32, i32) {
    %c0_i32 = arith.constant 0 : i32
    %c0_i32_0 = arith.constant 0 : i32
    %c0_i32_1 = arith.constant 0 : i32
    return %c0_i32, %arg0, %c0_i32_0 : i32, i32, i32
  }
  func.func @transform_1(%arg0: i32) -> (i32, i32) {
    %c0_i32 = arith.constant 0 : i32
    %c0_i32_0 = arith.constant 0 : i32
    %c0_i32_1 = arith.constant 0 : i32
    return %c0_i32, %c0_i32_0 : i32, i32
  }
  func.func @transform_2(%arg0: i32) -> (i32, i32, i32) {
    %c0_i32 = arith.constant 0 : i32
    %c0_i32_0 = arith.constant 0 : i32
    %c0_i32_1 = arith.constant 0 : i32
    %c0_i32_2 = arith.constant 0 : i32
    return %c0_i32, %c0_i32_0, %c0_i32_1 : i32, i32, i32
  }
  func.func @transform_3(%arg0: i32) -> (i32, i32, i32) {
    %c0_i32 = arith.constant 0 : i32
    %c0_i32_0 = arith.constant 0 : i32
    %c0_i32_1 = arith.constant 0 : i32
    %c0_i32_2 = arith.constant 0 : i32
    return %c0_i32, %c0_i32_0, %c0_i32_1 : i32, i32, i32
  }
  func.func @transform_4(%arg0: i32) -> (i32, i32) {
    %c0_i32 = arith.constant 0 : i32
    %c0_i32_0 = arith.constant 0 : i32
    %c0_i32_1 = arith.constant 0 : i32
    return %c0_i32, %c0_i32_0 : i32, i32
  }
  func.func @transform_5(%arg0: i32) -> (i32, i32, i32) {
    %c0_i32 = arith.constant 0 : i32
    %c0_i32_0 = arith.constant 0 : i32
    %c0_i32_1 = arith.constant 0 : i32
    %c0_i32_2 = arith.constant 0 : i32
    return %c0_i32, %c0_i32_0, %c0_i32_1 : i32, i32, i32
  }
  func.func @transform_6(%arg0: i32) -> (i32, i32, i32) {
    %c0_i32 = arith.constant 0 : i32
    %c0_i32_0 = arith.constant 0 : i32
    %c0_i32_1 = arith.constant 0 : i32
    %c0_i32_2 = arith.constant 0 : i32
    return %c0_i32, %c0_i32_0, %c0_i32_1 : i32, i32, i32
  }
  func.func @transform_7(%arg0: i32) -> (i32, i32, i32) {
    %c0_i32 = arith.constant 0 : i32
    %c0_i32_0 = arith.constant 0 : i32
    %c0_i32_1 = arith.constant 0 : i32
    return %c0_i32, %arg0, %c0_i32_0 : i32, i32, i32
  }
}

</mosaic_0001>

<llo_original>
// kernel: tpu_custom_call.1
$region0: #{tpu_custom_call.1}
  #allocation0 [shape = 'u32[]', space=smem, size = 0x4, offset = 0x4, fixed_abs, tag = 'smem constant byte address 0x4 - core index']
  #allocation1 [shape = 'u32[144,128]{1,0:T(1,128)}', space=vmem, size = 0x12000, scoped, tag = 'internal scratch']
  #allocation2 [shape = 'f32[8,2,64]{2,1,0:T(2,128)}', space=vmem, size = 0x2000, scoped, tag = 'scratch operand']
  #allocation3 [shape = 'f32[2,4,8,2,32]{4,3,2,1,0:T(2,128)}', space=vmem, size = 0x10000, scoped, tag = 'scratch operand']
  #allocation4 [shape = 'f32[8,2,32]{2,1,0:T(2,128)}', space=vmem, size = 0x2000, scoped, tag = 'scratch operand']
  #allocation5 [shape = 'f32[8,2,32]{2,1,0:T(2,128)}', space=vmem, size = 0x2000, scoped, tag = 'scratch operand']
  %s0 = inlined_call_operand.hbm [shape: f32[8,2,48], index: 0, kind: input, shape index: {}]
  %s1 = inlined_call_operand.hbm [shape: bf16[48,256], index: 1, kind: input, shape index: {}]
  %s2 = inlined_call_operand.vmem [shape: f32[2,2,32], index: 2, kind: input, shape index: {}]
  %s3 = inlined_call_operand.vmem [shape: f32[2,2,32], index: 3, kind: input, shape index: {}]
  %s4 = inlined_call_operand.hbm [shape: bf16[64,192], index: 4, kind: input, shape index: {}]
  %s5 = inlined_call_operand.vmem [shape: f32[2,2,32], index: 5, kind: input, shape index: {}]
  %s6 = inlined_call_operand.vmem [shape: f32[2,2,32], index: 6, kind: input, shape index: {}]
  %s7 = inlined_call_operand.hbm [shape: f32[8,2,64], index: 7, kind: output, shape index: {}]
  %s8 = sld [smem:[#allocation0]]
  $region50: #{tpu_custom_call.1} parent=0
    _
  %s10 = ssub.s32 1, %s8
  %s11 = scalar_select 0, %s10, %s8
  $region1: #{tpu_custom_call.1} parent=0
    #allocation6 [shape = 'u8[8192]{0}', space=vmem, size = 0x2000, scoped, tag = 'input window, operand 0, single buffered']
    #allocation7 [shape = 's32[1]{0}', space=sflag, size = 0x4, scoped, tag = 'scoped memory for tpu_custom_call.1']
    #allocation8 [shape = 's32[1]{0}', space=sflag, size = 0x4, scoped, tag = 'scoped memory for tpu_custom_call.1']
    #allocation9 [shape = 'u8[24576]{0}', space=vmem, size = 0x6000, scoped, tag = 'input window, operand 1, single buffered']
    #allocation10 [shape = 's32[1]{0}', space=sflag, size = 0x4, scoped, tag = 'scoped memory for tpu_custom_call.1']
    #allocation11 [shape = 'u8[32768]{0}', space=vmem, size = 0x8000, scoped, tag = 'input window, operand 4, single buffered']
    #allocation12 [shape = 'u8[8192]{0}', space=vmem, size = 0x2000, scoped, tag = 'output window, operand 0, single buffered']
    %12 = vsyncpa [#allocation7], 0
    %13 = vsyncpa [#allocation10], 0
    %14 = vsyncpa [#allocation8], 0
    // Predicated region
    $region2: #{tpu_custom_call.1} parent=1 // pred_check
      _
    $region3: #{tpu_custom_call.1} parent=1 // pred_check_branch
      %16 = sbr.rel (0) target = $region5
    $region4: #{tpu_custom_call.1} parent=1 // pred_region
      %s18 = ssub.s32 256, 256
      %19 = vsyncadd [#allocation7], %s18
      %s20 = sshll.u32 [#allocation6], 4
      %s21 = int_to_ptr.vmem [resolvable:$true] %s20
      %26 = dma.hbm_to_vmem [thread:$0]  %s0, 256, %s21, [#allocation7], 32, 32, 2
    $region5: #{tpu_custom_call.1} parent=1 // pred_fallthru
      _
    // Predicated region
    $region6: #{tpu_custom_call.1} parent=1 // pred_check
      _
    $region7: #{tpu_custom_call.1} parent=1 // pred_check_branch
      %28 = sbr.rel (0) target = $region9
    $region8: #{tpu_custom_call.1} parent=1 // pred_region
      %s30 = ssub.s32 768, 768
      %31 = vsyncadd [#allocation10], %s30
      %s32 = sshll.u32 [#allocation9], 4
      %s33 = int_to_ptr.vmem [resolvable:$true] %s32
      %38 = dma.hbm_to_vmem [thread:$0]  %s1, 768, %s33, [#allocation10], 128, 128, 8
    $region9: #{tpu_custom_call.1} parent=1 // pred_fallthru
      _
    // Predicated region
    $region10: #{tpu_custom_call.1} parent=1 // pred_check
      _
    $region11: #{tpu_custom_call.1} parent=1 // pred_check_branch
      %40 = sbr.rel (0) target = $region13
    $region12: #{tpu_custom_call.1} parent=1 // pred_region
      _
    $region13: #{tpu_custom_call.1} parent=1 // pred_fallthru
      _
    // Predicated region
    $region14: #{tpu_custom_call.1} parent=1 // pred_check
      _
    $region15: #{tpu_custom_call.1} parent=1 // pred_check_branch
      %42 = sbr.rel (0) target = $region17
    $region16: #{tpu_custom_call.1} parent=1 // pred_region
      _
    $region17: #{tpu_custom_call.1} parent=1 // pred_fallthru
      _
    // Predicated region
    $region18: #{tpu_custom_call.1} parent=1 // pred_check
      _
    $region19: #{tpu_custom_call.1} parent=1 // pred_check_branch
      %44 = sbr.rel (0) target = $region21
    $region20: #{tpu_custom_call.1} parent=1 // pred_region
      %s46 = ssub.s32 1024, 1024
      %47 = vsyncadd [#allocation10], %s46
      %s48 = sshll.u32 [#allocation11], 4
      %s49 = int_to_ptr.vmem [resolvable:$true] %s48
      %54 = dma.hbm_to_vmem [thread:$0]  %s4, 1024, %s49, [#allocation10], 128, 128, 8
    $region21: #{tpu_custom_call.1} parent=1 // pred_fallthru
      _
    // Predicated region
    $region22: #{tpu_custom_call.1} parent=1 // pred_check
      _
    $region23: #{tpu_custom_call.1} parent=1 // pred_check_branch
      %56 = sbr.rel (0) target = $region25
    $region24: #{tpu_custom_call.1} parent=1 // pred_region
      _
    $region25: #{tpu_custom_call.1} parent=1 // pred_fallthru
      _
    // Predicated region
    $region26: #{tpu_custom_call.1} parent=1 // pred_check
      _
    $region27: #{tpu_custom_call.1} parent=1 // pred_check_branch
      %58 = sbr.rel (0) target = $region29
    $region28: #{tpu_custom_call.1} parent=1 // pred_region
      _
    $region29: #{tpu_custom_call.1} parent=1 // pred_fallthru
      _
    // Predicated region
    $region30: #{tpu_custom_call.1} parent=1 // pred_check
      _
    $region31: #{tpu_custom_call.1} parent=1 // pred_check_branch
      %60 = sbr.rel (0) target = $region33
    $region32: #{tpu_custom_call.1} parent=1 // pred_region
      %61 = dma.done [#allocation7], 256
    $region33: #{tpu_custom_call.1} parent=1 // pred_fallthru
      _
    // Predicated region
    $region34: #{tpu_custom_call.1} parent=1 // pred_check
      _
    $region35: #{tpu_custom_call.1} parent=1 // pred_check_branch
      %63 = sbr.rel (0) target = $region37
    $region36: #{tpu_custom_call.1} parent=1 // pred_region
      %64 = dma.done [#allocation10], 768
    $region37: #{tpu_custom_call.1} parent=1 // pred_fallthru
      _
    // Predicated region
    $region38: #{tpu_custom_call.1} parent=1 // pred_check
      _
    $region39: #{tpu_custom_call.1} parent=1 // pred_check_branch
      %66 = sbr.rel (0) target = $region41
    $region40: #{tpu_custom_call.1} parent=1 // pred_region
      %67 = dma.done [#allocation10], 1024
    $region41: #{tpu_custom_call.1} parent=1 // pred_fallthru
      _
    %v69 = vld [vmem:[#allocation6] sm:$0x3]
    %v70 = vld [vmem:[#allocation6 + $0x2] sm:$0x3]
    %v71 = vld [vmem:[#allocation6 + $0x4] sm:$0x3]
    %v72 = vld [vmem:[#allocation6 + $0x6] sm:$0x3]
    %v73 = vld [vmem:[#allocation6 + $0x8] sm:$0x3]
    %v74 = vld [vmem:[#allocation6 + $0xa] sm:$0x3]
    %v75 = vld [vmem:[#allocation6 + $0xc] sm:$0x3]
    %v76 = vld [vmem:[#allocation6 + $0xe] sm:$0x3]
    %v85 = vcombine.low %v69, %v70
    %v86 = vcombine.low %v71, %v72
    %v88 = vunpack.c.l.s4 1983009808
    %v89 = vunpack.c.0.s8 %v88
    %v90 = vlaneseq
    %v91 = vshrl.u32 %v90, 7
    %v92 = vsub.s32 %v89, %v91
    %v93 = vrot.slane %v85, %v92
    %v95 = vunpack.c.l.s4 1983009808
    %v96 = vunpack.c.0.s8 %v95
    %v97 = vlaneseq
    %v98 = vshrl.u32 %v97, 7
    %v99 = vsub.s32 %v96, %v98
    %v100 = vrot.slane %v86, %v99
    %v101 = vcombine.low %v93, %v100
    %v102 = vcombine.low %v73, %v74
    %v103 = vcombine.low %v75, %v76
    %v105 = vunpack.c.l.s4 1983009808
    %v106 = vunpack.c.0.s8 %v105
    %v107 = vlaneseq
    %v108 = vshrl.u32 %v107, 7
    %v109 = vsub.s32 %v106, %v108
    %v110 = vrot.slane %v102, %v109
    %v112 = vunpack.c.l.s4 1983009808
    %v113 = vunpack.c.0.s8 %v112
    %v114 = vlaneseq
    %v115 = vshrl.u32 %v114, 7
    %v116 = vsub.s32 %v113, %v115
    %v117 = vrot.slane %v103, %v116
    %v118 = vcombine.low %v110, %v117
    %v121 = vpack.c.bf16 %v118, %v101
    %v122 = vld [vmem:[#allocation9] sm:$0xff]
    %v123 = vld [vmem:[#allocation9 + $0x8] sm:$0xff]
    %v124 = vld [vmem:[#allocation9 + $0x10] sm:$0xff]
    %v125 = vld [vmem:[#allocation9 + $0x18] sm:$0xff]
    %v126 = vld [vmem:[#allocation9 + $0x20] sm:$0xff]
    %v127 = vld [vmem:[#allocation9 + $0x28] sm:$0xff]
    %v134 = vunpack.c.l.b16 %v122
    %v135 = vunpack.c.h.b16 %v122
    %v136 = vunpack.c.l.b16 %v123
    %v137 = vunpack.c.h.b16 %v123
    %v138 = vunpack.c.l.b16 %v124
    %v139 = vunpack.c.h.b16 %v124
    %v140 = vunpack.c.l.b16 %v125
    %v141 = vunpack.c.h.b16 %v125
    %v142 = vunpack.c.l.b16 %v126
    %v143 = vunpack.c.h.b16 %v126
    %v144 = vunpack.c.l.b16 %v127
    %v145 = vunpack.c.h.b16 %v127
    %v146 = vpack.c.b16 %v136, %v134
    %v147 = vpack.c.b16 %v137, %v135
    %v148 = vpack.c.b16 %v140, %v138
    %v149 = vpack.c.b16 %v141, %v139
    %v150 = vpack.c.b16 %v144, %v142
    %v151 = vpack.c.b16 %v145, %v143
    %vm158 = vcmask 392192
    %v160 = vsel %vm158, %v121, 0
    %162 = vmatprep.subr.bf16.mxu0 %v147
    %163 = vmatpush1.bf16.msra.mxu0 %v146
    %164 = vmatprep.subr.bf16.mxu0 %v149
    %165 = vmatpush1.bf16.msra.mxu0 %v148
    %166 = vmatprep.subr.bf16.mxu0 %v151
    %167 = vmatpush1.bf16.msra.mxu0 %v150
    %168 = vmatprep.subr.bf16.mxu0 0
    %169 = vmatpush1.bf16.msra.mxu0 0
    %170 = vmatprep.subr.bf16.mxu0 0
    %171 = vmatpush1.bf16.msra.mxu0 0
    %172 = vmatprep.subr.bf16.mxu0 0
    %173 = vmatpush1.bf16.msra.mxu0 0
    %174 = vmatprep.subr.bf16.mxu0 0
    %175 = vmatpush1.bf16.msra.mxu0 0
    %176 = vmatprep.subr.bf16.mxu0 0
    %177 = vmatpush1.bf16.msra.mxu0 0
    %178 = vmatprep.subr.bf16.mxu0 0
    %179 = vmatpush1.bf16.msra.mxu0 0
    %180 = vmatprep.subr.bf16.mxu0 0
    %181 = vmatpush1.bf16.msra.mxu0 0
    %182 = vmatprep.subr.bf16.mxu0 0
    %183 = vmatpush1.bf16.msra.mxu0 0
    %184 = vmatprep.subr.bf16.mxu0 0
    %185 = vmatpush1.bf16.msra.mxu0 0
    %186 = vmatprep.subr.bf16.mxu0 0
    %187 = vmatpush1.bf16.msra.mxu0 0
    %188 = vmatprep.subr.bf16.mxu0 0
    %189 = vmatpush1.bf16.msra.mxu0 0
    %190 = vmatprep.subr.bf16.mxu0 0
    %191 = vmatpush1.bf16.msra.mxu0 0
    %192 = vmatprep.subr.bf16.mxu0 0
    %193 = vmatpush1.bf16.msra.mxu0 0
    %194 = vmatprep.mubr.bf16.mxu0 0
    %195 = vmatmul.mubr.bf16.gmra.mrb[0].mxu0 %v160
    %v196 = vpop.f32.mrb[0].mxu0
    %v197 = vadd.f32 0.0, %v196
    %v198 = vpop.f32.mrb[0].mxu0
    %v199 = vadd.f32 0.0, %v198
    %v200 = vpop.f32.mrb[0].mxu0
    %v201 = vadd.f32 0.0, %v200
    %v202 = vpop.f32.mrb[0].mxu0
    %v203 = vadd.f32 0.0, %v202
    %204 = vdwg.mxu0
    %v207 = vcombine.high %v197, %v197
    %v209 = vunpack.c.l.s4 1983009808
    %v210 = vunpack.c.0.s8 %v209
    %v211 = vlaneseq
    %v212 = vshrl.u32 %v211, 7
    %v213 = vsub.s32 %v210, %v212
    %v214 = vrot.slane %v197, %v213
    %v216 = vunpack.c.l.s4 1983009808
    %v217 = vunpack.c.0.s8 %v216
    %v218 = vlaneseq
    %v219 = vshrl.u32 %v218, 7
    %v220 = vsub.s32 %v217, %v219
    %v221 = vrot.slane %v207, %v220
    %v222 = vcombine.high %v214, %v214
    %v223 = vcombine.high %v221, %v221
    %v224 = vcombine.high %v201, %v201
    %v226 = vunpack.c.l.s4 1983009808
    %v227 = vunpack.c.0.s8 %v226
    %v228 = vlaneseq
    %v229 = vshrl.u32 %v228, 7
    %v230 = vsub.s32 %v227, %v229
    %v231 = vrot.slane %v201, %v230
    %v233 = vunpack.c.l.s4 1983009808
    %v234 = vunpack.c.0.s8 %v233
    %v235 = vlaneseq
    %v236 = vshrl.u32 %v235, 7
    %v237 = vsub.s32 %v234, %v236
    %v238 = vrot.slane %v224, %v237
    %v239 = vcombine.high %v231, %v231
    %v240 = vcombine.high %v238, %v238
    %vm249 = vcmask 254976
    %250 = vst.msk [vmem:[#allocation3] sm:$0x3] %vm249, %v214
    %251 = vst.msk [vmem:[#allocation3 + $0x2] sm:$0x3] %vm249, %v222
    %252 = vst.msk [vmem:[#allocation3 + $0x4] sm:$0x3] %vm249, %v221
    %253 = vst.msk [vmem:[#allocation3 + $0x6] sm:$0x3] %vm249, %v223
    %254 = vst.msk [vmem:[#allocation3 + $0x8] sm:$0x3] %vm249, %v231
    %255 = vst.msk [vmem:[#allocation3 + $0xa] sm:$0x3] %vm249, %v239
    %256 = vst.msk [vmem:[#allocation3 + $0xc] sm:$0x3] %vm249, %v238
    %257 = vst.msk [vmem:[#allocation3 + $0xe] sm:$0x3] %vm249, %v240
    %v259 = vunpack.c.l.s4 1983009808
    %v260 = vunpack.c.0.s8 %v259
    %v261 = vlaneseq
    %v262 = vshrl.u32 %v261, 7
    %v263 = vsub.s32 %v260, %v262
    %v264 = vrot.slane %v214, %v263
    %v266 = vunpack.c.l.s4 1983009808
    %v267 = vunpack.c.0.s8 %v266
    %v268 = vlaneseq
    %v269 = vshrl.u32 %v268, 7
    %v270 = vsub.s32 %v267, %v269
    %v271 = vrot.slane %v222, %v270
    %v273 = vunpack.c.l.s4 1983009808
    %v274 = vunpack.c.0.s8 %v273
    %v275 = vlaneseq
    %v276 = vshrl.u32 %v275, 7
    %v277 = vsub.s32 %v274, %v276
    %v278 = vrot.slane %v221, %v277
    %v280 = vunpack.c.l.s4 1983009808
    %v281 = vunpack.c.0.s8 %v280
    %v282 = vlaneseq
    %v283 = vshrl.u32 %v282, 7
    %v284 = vsub.s32 %v281, %v283
    %v285 = vrot.slane %v223, %v284
    %v287 = vunpack.c.l.s4 1983009808
    %v288 = vunpack.c.0.s8 %v287
    %v289 = vlaneseq
    %v290 = vshrl.u32 %v289, 7
    %v291 = vsub.s32 %v288, %v290
    %v292 = vrot.slane %v231, %v291
    %v294 = vunpack.c.l.s4 1983009808
    %v295 = vunpack.c.0.s8 %v294
    %v296 = vlaneseq
    %v297 = vshrl.u32 %v296, 7
    %v298 = vsub.s32 %v295, %v297
    %v299 = vrot.slane %v239, %v298
    %v301 = vunpack.c.l.s4 1983009808
    %v302 = vunpack.c.0.s8 %v301
    %v303 = vlaneseq
    %v304 = vshrl.u32 %v303, 7
    %v305 = vsub.s32 %v302, %v304
    %v306 = vrot.slane %v238, %v305
    %v308 = vunpack.c.l.s4 1983009808
    %v309 = vunpack.c.0.s8 %v308
    %v310 = vlaneseq
    %v311 = vshrl.u32 %v310, 7
    %v312 = vsub.s32 %v309, %v311
    %v313 = vrot.slane %v240, %v312
    %314 = vrot.lane.b32.xlu0 %v264, 96
    %v315 = vpop.permute.xlu0 %314
    %316 = vrot.lane.b32.xlu0 %v271, 96
    %v317 = vpop.permute.xlu0 %316
    %318 = vrot.lane.b32.xlu0 %v278, 96
    %v319 = vpop.permute.xlu0 %318
    %320 = vrot.lane.b32.xlu0 %v285, 96
    %v321 = vpop.permute.xlu0 %320
    %322 = vrot.lane.b32.xlu0 %v292, 96
    %v323 = vpop.permute.xlu0 %322
    %324 = vrot.lane.b32.xlu0 %v299, 96
    %v325 = vpop.permute.xlu0 %324
    %326 = vrot.lane.b32.xlu0 %v306, 96
    %v327 = vpop.permute.xlu0 %326
    %328 = vrot.lane.b32.xlu0 %v313, 96
    %v329 = vpop.permute.xlu0 %328
    %s338 = scalar_lea.vmem [#allocation3], 16
    %339 = vst.msk [vmem:[%s338] sm:$0x3] %vm249, %v315
    %340 = vst.msk [vmem:[%s338 + $0x2] sm:$0x3] %vm249, %v317
    %341 = vst.msk [vmem:[%s338 + $0x4] sm:$0x3] %vm249, %v319
    %342 = vst.msk [vmem:[%s338 + $0x6] sm:$0x3] %vm249, %v321
    %343 = vst.msk [vmem:[%s338 + $0x8] sm:$0x3] %vm249, %v323
    %344 = vst.msk [vmem:[%s338 + $0xa] sm:$0x3] %vm249, %v325
    %345 = vst.msk [vmem:[%s338 + $0xc] sm:$0x3] %vm249, %v327
    %346 = vst.msk [vmem:[%s338 + $0xe] sm:$0x3] %vm249, %v329
    %347 = vrot.lane.b32.xlu0 %v264, 64
    %v348 = vpop.permute.xlu0 %347
    %349 = vrot.lane.b32.xlu0 %v271, 64
    %v350 = vpop.permute.xlu0 %349
    %351 = vrot.lane.b32.xlu0 %v278, 64
    %v352 = vpop.permute.xlu0 %351
    %353 = vrot.lane.b32.xlu0 %v285, 64
    %v354 = vpop.permute.xlu0 %353
    %355 = vrot.lane.b32.xlu0 %v292, 64
    %v356 = vpop.permute.xlu0 %355
    %357 = vrot.lane.b32.xlu0 %v299, 64
    %v358 = vpop.permute.xlu0 %357
    %359 = vrot.lane.b32.xlu0 %v306, 64
    %v360 = vpop.permute.xlu0 %359
    %361 = vrot.lane.b32.xlu0 %v313, 64
    %v362 = vpop.permute.xlu0 %361
    %s371 = scalar_lea.vmem [#allocation3], 32
    %372 = vst.msk [vmem:[%s371] sm:$0x3] %vm249, %v348
    %373 = vst.msk [vmem:[%s371 + $0x2] sm:$0x3] %vm249, %v350
    %374 = vst.msk [vmem:[%s371 + $0x4] sm:$0x3] %vm249, %v352
    %375 = vst.msk [vmem:[%s371 + $0x6] sm:$0x3] %vm249, %v354
    %376 = vst.msk [vmem:[%s371 + $0x8] sm:$0x3] %vm249, %v356
    %377 = vst.msk [vmem:[%s371 + $0xa] sm:$0x3] %vm249, %v358
    %378 = vst.msk [vmem:[%s371 + $0xc] sm:$0x3] %vm249, %v360
    %379 = vst.msk [vmem:[%s371 + $0xe] sm:$0x3] %vm249, %v362
    %380 = vrot.lane.b32.xlu0 %v264, 32
    %v381 = vpop.permute.xlu0 %380
    %382 = vrot.lane.b32.xlu0 %v271, 32
    %v383 = vpop.permute.xlu0 %382
    %384 = vrot.lane.b32.xlu0 %v278, 32
    %v385 = vpop.permute.xlu0 %384
    %386 = vrot.lane.b32.xlu0 %v285, 32
    %v387 = vpop.permute.xlu0 %386
    %388 = vrot.lane.b32.xlu0 %v292, 32
    %v389 = vpop.permute.xlu0 %388
    %390 = vrot.lane.b32.xlu0 %v299, 32
    %v391 = vpop.permute.xlu0 %390
    %392 = vrot.lane.b32.xlu0 %v306, 32
    %v393 = vpop.permute.xlu0 %392
    %394 = vrot.lane.b32.xlu0 %v313, 32
    %v395 = vpop.permute.xlu0 %394
    %s404 = scalar_lea.vmem [#allocation3], 48
    %405 = vst.msk [vmem:[%s404] sm:$0x3] %vm249, %v381
    %406 = vst.msk [vmem:[%s404 + $0x2] sm:$0x3] %vm249, %v383
    %407 = vst.msk [vmem:[%s404 + $0x4] sm:$0x3] %vm249, %v385
    %408 = vst.msk [vmem:[%s404 + $0x6] sm:$0x3] %vm249, %v387
    %409 = vst.msk [vmem:[%s404 + $0x8] sm:$0x3] %vm249, %v389
    %410 = vst.msk [vmem:[%s404 + $0xa] sm:$0x3] %vm249, %v391
    %411 = vst.msk [vmem:[%s404 + $0xc] sm:$0x3] %vm249, %v393
    %412 = vst.msk [vmem:[%s404 + $0xe] sm:$0x3] %vm249, %v395
    %v415 = vcombine.high %v199, %v199
    %v417 = vunpack.c.l.s4 1983009808
    %v418 = vunpack.c.0.s8 %v417
    %v419 = vlaneseq
    %v420 = vshrl.u32 %v419, 7
    %v421 = vsub.s32 %v418, %v420
    %v422 = vrot.slane %v199, %v421
    %v424 = vunpack.c.l.s4 1983009808
    %v425 = vunpack.c.0.s8 %v424
    %v426 = vlaneseq
    %v427 = vshrl.u32 %v426, 7
    %v428 = vsub.s32 %v425, %v427
    %v429 = vrot.slane %v415, %v428
    %v430 = vcombine.high %v422, %v422
    %v431 = vcombine.high %v429, %v429
    %v432 = vcombine.high %v203, %v203
    %v434 = vunpack.c.l.s4 1983009808
    %v435 = vunpack.c.0.s8 %v434
    %v436 = vlaneseq
    %v437 = vshrl.u32 %v436, 7
    %v438 = vsub.s32 %v435, %v437
    %v439 = vrot.slane %v203, %v438
    %v441 = vunpack.c.l.s4 1983009808
    %v442 = vunpack.c.0.s8 %v441
    %v443 = vlaneseq
    %v444 = vshrl.u32 %v443, 7
    %v445 = vsub.s32 %v442, %v444
    %v446 = vrot.slane %v432, %v445
    %v447 = vcombine.high %v439, %v439
    %v448 = vcombine.high %v446, %v446
    %s457 = scalar_lea.vmem [#allocation3], 64
    %458 = vst.msk [vmem:[%s457] sm:$0x3] %vm249, %v422
    %459 = vst.msk [vmem:[%s457 + $0x2] sm:$0x3] %vm249, %v430
    %460 = vst.msk [vmem:[%s457 + $0x4] sm:$0x3] %vm249, %v429
    %461 = vst.msk [vmem:[%s457 + $0x6] sm:$0x3] %vm249, %v431
    %462 = vst.msk [vmem:[%s457 + $0x8] sm:$0x3] %vm249, %v439
    %463 = vst.msk [vmem:[%s457 + $0xa] sm:$0x3] %vm249, %v447
    %464 = vst.msk [vmem:[%s457 + $0xc] sm:$0x3] %vm249, %v446
    %465 = vst.msk [vmem:[%s457 + $0xe] sm:$0x3] %vm249, %v448
    %v467 = vunpack.c.l.s4 1983009808
    %v468 = vunpack.c.0.s8 %v467
    %v469 = vlaneseq
    %v470 = vshrl.u32 %v469, 7
    %v471 = vsub.s32 %v468, %v470
    %v472 = vrot.slane %v422, %v471
    %v474 = vunpack.c.l.s4 1983009808
    %v475 = vunpack.c.0.s8 %v474
    %v476 = vlaneseq
    %v477 = vshrl.u32 %v476, 7
    %v478 = vsub.s32 %v475, %v477
    %v479 = vrot.slane %v430, %v478
    %v481 = vunpack.c.l.s4 1983009808
    %v482 = vunpack.c.0.s8 %v481
    %v483 = vlaneseq
    %v484 = vshrl.u32 %v483, 7
    %v485 = vsub.s32 %v482, %v484
    %v486 = vrot.slane %v429, %v485
    %v488 = vunpack.c.l.s4 1983009808
    %v489 = vunpack.c.0.s8 %v488
    %v490 = vlaneseq
    %v491 = vshrl.u32 %v490, 7
    %v492 = vsub.s32 %v489, %v491
    %v493 = vrot.slane %v431, %v492
    %v495 = vunpack.c.l.s4 1983009808
    %v496 = vunpack.c.0.s8 %v495
    %v497 = vlaneseq
    %v498 = vshrl.u32 %v497, 7
    %v499 = vsub.s32 %v496, %v498
    %v500 = vrot.slane %v439, %v499
    %v502 = vunpack.c.l.s4 1983009808
    %v503 = vunpack.c.0.s8 %v502
    %v504 = vlaneseq
    %v505 = vshrl.u32 %v504, 7
    %v506 = vsub.s32 %v503, %v505
    %v507 = vrot.slane %v447, %v506
    %v509 = vunpack.c.l.s4 1983009808
    %v510 = vunpack.c.0.s8 %v509
    %v511 = vlaneseq
    %v512 = vshrl.u32 %v511, 7
    %v513 = vsub.s32 %v510, %v512
    %v514 = vrot.slane %v446, %v513
    %v516 = vunpack.c.l.s4 1983009808
    %v517 = vunpack.c.0.s8 %v516
    %v518 = vlaneseq
    %v519 = vshrl.u32 %v518, 7
    %v520 = vsub.s32 %v517, %v519
    %v521 = vrot.slane %v448, %v520
    %522 = vrot.lane.b32.xlu0 %v472, 96
    %v523 = vpop.permute.xlu0 %522
    %524 = vrot.lane.b32.xlu0 %v479, 96
    %v525 = vpop.permute.xlu0 %524
    %526 = vrot.lane.b32.xlu0 %v486, 96
    %v527 = vpop.permute.xlu0 %526
    %528 = vrot.lane.b32.xlu0 %v493, 96
    %v529 = vpop.permute.xlu0 %528
    %530 = vrot.lane.b32.xlu0 %v500, 96
    %v531 = vpop.permute.xlu0 %530
    %532 = vrot.lane.b32.xlu0 %v507, 96
    %v533 = vpop.permute.xlu0 %532
    %534 = vrot.lane.b32.xlu0 %v514, 96
    %v535 = vpop.permute.xlu0 %534
    %536 = vrot.lane.b32.xlu0 %v521, 96
    %v537 = vpop.permute.xlu0 %536
    %s546 = scalar_lea.vmem [#allocation3], 80
    %547 = vst.msk [vmem:[%s546] sm:$0x3] %vm249, %v523
    %548 = vst.msk [vmem:[%s546 + $0x2] sm:$0x3] %vm249, %v525
    %549 = vst.msk [vmem:[%s546 + $0x4] sm:$0x3] %vm249, %v527
    %550 = vst.msk [vmem:[%s546 + $0x6] sm:$0x3] %vm249, %v529
    %551 = vst.msk [vmem:[%s546 + $0x8] sm:$0x3] %vm249, %v531
    %552 = vst.msk [vmem:[%s546 + $0xa] sm:$0x3] %vm249, %v533
    %553 = vst.msk [vmem:[%s546 + $0xc] sm:$0x3] %vm249, %v535
    %554 = vst.msk [vmem:[%s546 + $0xe] sm:$0x3] %vm249, %v537
    %555 = vrot.lane.b32.xlu0 %v472, 64
    %v556 = vpop.permute.xlu0 %555
    %557 = vrot.lane.b32.xlu0 %v479, 64
    %v558 = vpop.permute.xlu0 %557
    %559 = vrot.lane.b32.xlu0 %v486, 64
    %v560 = vpop.permute.xlu0 %559
    %561 = vrot.lane.b32.xlu0 %v493, 64
    %v562 = vpop.permute.xlu0 %561
    %563 = vrot.lane.b32.xlu0 %v500, 64
    %v564 = vpop.permute.xlu0 %563
    %565 = vrot.lane.b32.xlu0 %v507, 64
    %v566 = vpop.permute.xlu0 %565
    %567 = vrot.lane.b32.xlu0 %v514, 64
    %v568 = vpop.permute.xlu0 %567
    %569 = vrot.lane.b32.xlu0 %v521, 64
    %v570 = vpop.permute.xlu0 %569
    %s579 = scalar_lea.vmem [#allocation3], 96
    %580 = vst.msk [vmem:[%s579] sm:$0x3] %vm249, %v556
    %581 = vst.msk [vmem:[%s579 + $0x2] sm:$0x3] %vm249, %v558
    %582 = vst.msk [vmem:[%s579 + $0x4] sm:$0x3] %vm249, %v560
    %583 = vst.msk [vmem:[%s579 + $0x6] sm:$0x3] %vm249, %v562
    %584 = vst.msk [vmem:[%s579 + $0x8] sm:$0x3] %vm249, %v564
    %585 = vst.msk [vmem:[%s579 + $0xa] sm:$0x3] %vm249, %v566
    %586 = vst.msk [vmem:[%s579 + $0xc] sm:$0x3] %vm249, %v568
    %587 = vst.msk [vmem:[%s579 + $0xe] sm:$0x3] %vm249, %v570
    %588 = vrot.lane.b32.xlu0 %v472, 32
    %v589 = vpop.permute.xlu0 %588
    %590 = vrot.lane.b32.xlu0 %v479, 32
    %v591 = vpop.permute.xlu0 %590
    %592 = vrot.lane.b32.xlu0 %v486, 32
    %v593 = vpop.permute.xlu0 %592
    %594 = vrot.lane.b32.xlu0 %v493, 32
    %v595 = vpop.permute.xlu0 %594
    %596 = vrot.lane.b32.xlu0 %v500, 32
    %v597 = vpop.permute.xlu0 %596
    %598 = vrot.lane.b32.xlu0 %v507, 32
    %v599 = vpop.permute.xlu0 %598
    %600 = vrot.lane.b32.xlu0 %v514, 32
    %v601 = vpop.permute.xlu0 %600
    %602 = vrot.lane.b32.xlu0 %v521, 32
    %v603 = vpop.permute.xlu0 %602
    %s612 = scalar_lea.vmem [#allocation3], 112
    %613 = vst.msk [vmem:[%s612] sm:$0x3] %vm249, %v589
    %614 = vst.msk [vmem:[%s612 + $0x2] sm:$0x3] %vm249, %v591
    %615 = vst.msk [vmem:[%s612 + $0x4] sm:$0x3] %vm249, %v593
    %616 = vst.msk [vmem:[%s612 + $0x6] sm:$0x3] %vm249, %v595
    %617 = vst.msk [vmem:[%s612 + $0x8] sm:$0x3] %vm249, %v597
    %618 = vst.msk [vmem:[%s612 + $0xa] sm:$0x3] %vm249, %v599
    %619 = vst.msk [vmem:[%s612 + $0xc] sm:$0x3] %vm249, %v601
    %620 = vst.msk [vmem:[%s612 + $0xe] sm:$0x3] %vm249, %v603
    %v621 = vld [vmem:[%s2] sm:$0x3]
    %v622 = vld [vmem:[%s2 + $0x2] sm:$0x3]
    %v623 = vld [vmem:[%s3] sm:$0x3]
    %v624 = vld [vmem:[%s3 + $0x2] sm:$0x3]
    %v625 = vlaneseq
    %v626 = vshrl.u32 %v625, 7
    %v627 = vsub.s32 0, %v626
    %v628 = vrot.slane %v621, %v627
    %v629 = vlaneseq
    %v630 = vshrl.u32 %v629, 7
    %v631 = vsub.s32 0, %v630
    %v632 = vrot.slane %v622, %v631
    %v633 = vlaneseq
    %v634 = vshrl.u32 %v633, 7
    %v635 = vsub.s32 1, %v634
    %v636 = vrot.slane %v621, %v635
    %v637 = vlaneseq
    %v638 = vshrl.u32 %v637, 7
    %v639 = vsub.s32 1, %v638
    %v640 = vrot.slane %v622, %v639
    %v641 = vlaneseq
    %v642 = vshrl.u32 %v641, 7
    %v643 = vsub.s32 0, %v642
    %v644 = vrot.slane %v623, %v643
    %v645 = vlaneseq
    %v646 = vshrl.u32 %v645, 7
    %v647 = vsub.s32 0, %v646
    %v648 = vrot.slane %v624, %v647
    %v649 = vlaneseq
    %v650 = vshrl.u32 %v649, 7
    %v651 = vsub.s32 1, %v650
    %v652 = vrot.slane %v623, %v651
    %v653 = vlaneseq
    %v654 = vshrl.u32 %v653, 7
    %v655 = vsub.s32 1, %v654
    %v656 = vrot.slane %v624, %v655
    %v657 = vld [vmem:[%s338] sm:$0x3]
    %v658 = vmul.f32 %v644, 0.0
    %v659 = vadd.f32 %v657, %v658
    %v660 = vadd.f32 %v659, %v628
    %v661 = vxor.u32 %v660, 2147483648
    %v662 = vmul.f32 %v661, 1.442695
    %v663 = vpow.pop %v662
    %v664 = vadd.f32 %v663, 1.0
    %v665 = vrcp.pop %v664
    %v666 = vmul.f32 1.0, %v665
    %v667 = vld [vmem:[%s371] sm:$0x3]
    %v668 = vmul.f32 %v652, 0.0
    %v669 = vadd.f32 %v667, %v668
    %v670 = vadd.f32 %v669, %v636
    %v671 = vxor.u32 %v670, 2147483648
    %v672 = vmul.f32 %v671, 1.442695
    %v673 = vpow.pop %v672
    %v674 = vadd.f32 %v673, 1.0
    %v675 = vrcp.pop %v674
    %v676 = vmul.f32 1.0, %v675
    %v677 = vmul.f32 %v666, 0.0
    %v678 = vsub.f32 1.0, %v666
    %v679 = vld [vmem:[#allocation3] sm:$0x3]
    %v680 = vmul.f32 %v678, %v679
    %v681 = vadd.f32 %v677, %v680
    %v682 = vmul.f32 %v676, %v681
    %v683 = vsub.f32 1.0, %v676
    %v684 = vld [vmem:[%s404] sm:$0x3]
    %v685 = vmul.f32 %v683, %v684
    %v686 = vadd.f32 %v682, %v685
    %687 = vst.msk [vmem:[#allocation4] sm:$0x3] %vm249, %v686
    %s688 = scalar_lea.vmem [#allocation3], 94
    %v689 = vld [vmem:[%s688] sm:$0x3]
    %v690 = vmul.f32 %v648, 0.0
    %v691 = vadd.f32 %v689, %v690
    %v692 = vadd.f32 %v691, %v632
    %v693 = vxor.u32 %v692, 2147483648
    %v694 = vmul.f32 %v693, 1.442695
    %v695 = vpow.pop %v694
    %v696 = vadd.f32 %v695, 1.0
    %v697 = vrcp.pop %v696
    %v698 = vmul.f32 1.0, %v697
    %s699 = scalar_lea.vmem [#allocation3], 110
    %v700 = vld [vmem:[%s699] sm:$0x3]
    %v701 = vmul.f32 %v656, 0.0
    %v702 = vadd.f32 %v700, %v701
    %v703 = vadd.f32 %v702, %v640
    %v704 = vxor.u32 %v703, 2147483648
    %v705 = vmul.f32 %v704, 1.442695
    %v706 = vpow.pop %v705
    %v707 = vadd.f32 %v706, 1.0
    %v708 = vrcp.pop %v707
    %v709 = vmul.f32 1.0, %v708
    %v710 = vmul.f32 %v698, 0.0
    %v711 = vsub.f32 1.0, %v698
    %s712 = scalar_lea.vmem [#allocation3], 78
    %v713 = vld [vmem:[%s712] sm:$0x3]
    %v714 = vmul.f32 %v711, %v713
    %v715 = vadd.f32 %v710, %v714
    %v716 = vmul.f32 %v709, %v715
    %v717 = vsub.f32 1.0, %v709
    %s718 = scalar_lea.vmem [#allocation3], 126
    %v719 = vld [vmem:[%s718] sm:$0x3]
    %v720 = vmul.f32 %v717, %v719
    %v721 = vadd.f32 %v716, %v720
    %s722 = scalar_lea.vmem [#allocation5], 14
    %723 = vst.msk [vmem:[%s722] sm:$0x3] %vm249, %v721
    %s724 = scalar_lea.vmem [#allocation3], 18
    %v725 = vld [vmem:[%s724] sm:$0x3]
    %v726 = vmul.f32 %v644, %v681
    %v727 = vadd.f32 %v725, %v726
    %v728 = vadd.f32 %v727, %v628
    %v729 = vxor.u32 %v728, 2147483648
    %v730 = vmul.f32 %v729, 1.442695
    %v731 = vpow.pop %v730
    %v732 = vadd.f32 %v731, 1.0
    %v733 = vrcp.pop %v732
    %v734 = vmul.f32 1.0, %v733
    %s735 = scalar_lea.vmem [#allocation3], 34
    %v736 = vld [vmem:[%s735] sm:$0x3]
    %v737 = vmul.f32 %v652, %v681
    %v738 = vadd.f32 %v736, %v737
    %v739 = vadd.f32 %v738, %v636
    %v740 = vxor.u32 %v739, 2147483648
    %v741 = vmul.f32 %v740, 1.442695
    %v742 = vpow.pop %v741
    %v743 = vadd.f32 %v742, 1.0
    %v744 = vrcp.pop %v743
    %v745 = vmul.f32 1.0, %v744
    %v746 = vmul.f32 %v734, %v681
    %v747 = vsub.f32 1.0, %v734
    %s748 = scalar_lea.vmem [#allocation3], 2
    %v749 = vld [vmem:[%s748] sm:$0x3]
    %v750 = vmul.f32 %v747, %v749
    %v751 = vadd.f32 %v746, %v750
    %v752 = vmul.f32 %v745, %v751
    %v753 = vsub.f32 1.0, %v745
    %s754 = scalar_lea.vmem [#allocation3], 50
    %v755 = vld [vmem:[%s754] sm:$0x3]
    %v756 = vmul.f32 %v753, %v755
    %v757 = vadd.f32 %v752, %v756
    %s758 = scalar_lea.vmem [#allocation4], 2
    %759 = vst.msk [vmem:[%s758] sm:$0x3] %vm249, %v757
    %s760 = scalar_lea.vmem [#allocation3], 92
    %v761 = vld [vmem:[%s760] sm:$0x3]
    %v762 = vmul.f32 %v648, %v715
    %v763 = vadd.f32 %v761, %v762
    %v764 = vadd.f32 %v763, %v632
    %v765 = vxor.u32 %v764, 2147483648
    %v766 = vmul.f32 %v765, 1.442695
    %v767 = vpow.pop %v766
    %v768 = vadd.f32 %v767, 1.0
    %v769 = vrcp.pop %v768
    %v770 = vmul.f32 1.0, %v769
    %s771 = scalar_lea.vmem [#allocation3], 108
    %v772 = vld [vmem:[%s771] sm:$0x3]
    %v773 = vmul.f32 %v656, %v715
    %v774 = vadd.f32 %v772, %v773
    %v775 = vadd.f32 %v774, %v640
    %v776 = vxor.u32 %v775, 2147483648
    %v777 = vmul.f32 %v776, 1.442695
    %v778 = vpow.pop %v777
    %v779 = vadd.f32 %v778, 1.0
    %v780 = vrcp.pop %v779
    %v781 = vmul.f32 1.0, %v780
    %v782 = vmul.f32 %v770, %v715
    %v783 = vsub.f32 1.0, %v770
    %s784 = scalar_lea.vmem [#allocation3], 76
    %v785 = vld [vmem:[%s784] sm:$0x3]
    %v786 = vmul.f32 %v783, %v785
    %v787 = vadd.f32 %v782, %v786
    %v788 = vmul.f32 %v781, %v787
    %v789 = vsub.f32 1.0, %v781
    %s790 = scalar_lea.vmem [#allocation3], 124
    %v791 = vld [vmem:[%s790] sm:$0x3]
    %v792 = vmul.f32 %v789, %v791
    %v793 = vadd.f32 %v788, %v792
    %s794 = scalar_lea.vmem [#allocation5], 12
    %795 = vst.msk [vmem:[%s794] sm:$0x3] %vm249, %v793
    %s796 = scalar_lea.vmem [#allocation3], 20
    %v797 = vld [vmem:[%s796] sm:$0x3]
    %v798 = vmul.f32 %v644, %v751
    %v799 = vadd.f32 %v797, %v798
    %v800 = vadd.f32 %v799, %v628
    %v801 = vxor.u32 %v800, 2147483648
    %v802 = vmul.f32 %v801, 1.442695
    %v803 = vpow.pop %v802
    %v804 = vadd.f32 %v803, 1.0
    %v805 = vrcp.pop %v804
    %v806 = vmul.f32 1.0, %v805
    %s807 = scalar_lea.vmem [#allocation3], 36
    %v808 = vld [vmem:[%s807] sm:$0x3]
    %v809 = vmul.f32 %v652, %v751
    %v810 = vadd.f32 %v808, %v809
    %v811 = vadd.f32 %v810, %v636
    %v812 = vxor.u32 %v811, 2147483648
    %v813 = vmul.f32 %v812, 1.442695
    %v814 = vpow.pop %v813
    %v815 = vadd.f32 %v814, 1.0
    %v816 = vrcp.pop %v815
    %v817 = vmul.f32 1.0, %v816
    %v818 = vmul.f32 %v806, %v751
    %v819 = vsub.f32 1.0, %v806
    %s820 = scalar_lea.vmem [#allocation3], 4
    %v821 = vld [vmem:[%s820] sm:$0x3]
    %v822 = vmul.f32 %v819, %v821
    %v823 = vadd.f32 %v818, %v822
    %v824 = vmul.f32 %v817, %v823
    %v825 = vsub.f32 1.0, %v817
    %s826 = scalar_lea.vmem [#allocation3], 52
    %v827 = vld [vmem:[%s826] sm:$0x3]
    %v828 = vmul.f32 %v825, %v827
    %v829 = vadd.f32 %v824, %v828
    %s830 = scalar_lea.vmem [#allocation4], 4
    %831 = vst.msk [vmem:[%s830] sm:$0x3] %vm249, %v829
    %s832 = scalar_lea.vmem [#allocation3], 90
    %v833 = vld [vmem:[%s832] sm:$0x3]
    %v834 = vmul.f32 %v648, %v787
    %v835 = vadd.f32 %v833, %v834
    %v836 = vadd.f32 %v835, %v632
    %v837 = vxor.u32 %v836, 2147483648
    %v838 = vmul.f32 %v837, 1.442695
    %v839 = vpow.pop %v838
    %v840 = vadd.f32 %v839, 1.0
    %v841 = vrcp.pop %v840
    %v842 = vmul.f32 1.0, %v841
    %s843 = scalar_lea.vmem [#allocation3], 106
    %v844 = vld [vmem:[%s843] sm:$0x3]
    %v845 = vmul.f32 %v656, %v787
    %v846 = vadd.f32 %v844, %v845
    %v847 = vadd.f32 %v846, %v640
    %v848 = vxor.u32 %v847, 2147483648
    %v849 = vmul.f32 %v848, 1.442695
    %v850 = vpow.pop %v849
    %v851 = vadd.f32 %v850, 1.0
    %v852 = vrcp.pop %v851
    %v853 = vmul.f32 1.0, %v852
    %v854 = vmul.f32 %v842, %v787
    %v855 = vsub.f32 1.0, %v842
    %s856 = scalar_lea.vmem [#allocation3], 74
    %v857 = vld [vmem:[%s856] sm:$0x3]
    %v858 = vmul.f32 %v855, %v857
    %v859 = vadd.f32 %v854, %v858
    %v860 = vmul.f32 %v853, %v859
    %v861 = vsub.f32 1.0, %v853
    %s862 = scalar_lea.vmem [#allocation3], 122
    %v863 = vld [vmem:[%s862] sm:$0x3]
    %v864 = vmul.f32 %v861, %v863
    %v865 = vadd.f32 %v860, %v864
    %s866 = scalar_lea.vmem [#allocation5], 10
    %867 = vst.msk [vmem:[%s866] sm:$0x3] %vm249, %v865
    %s868 = scalar_lea.vmem [#allocation3], 22
    %v869 = vld [vmem:[%s868] sm:$0x3]
    %v870 = vmul.f32 %v644, %v823
    %v871 = vadd.f32 %v869, %v870
    %v872 = vadd.f32 %v871, %v628
    %v873 = vxor.u32 %v872, 2147483648
    %v874 = vmul.f32 %v873, 1.442695
    %v875 = vpow.pop %v874
    %v876 = vadd.f32 %v875, 1.0
    %v877 = vrcp.pop %v876
    %v878 = vmul.f32 1.0, %v877
    %s879 = scalar_lea.vmem [#allocation3], 38
    %v880 = vld [vmem:[%s879] sm:$0x3]
    %v881 = vmul.f32 %v652, %v823
    %v882 = vadd.f32 %v880, %v881
    %v883 = vadd.f32 %v882, %v636
    %v884 = vxor.u32 %v883, 2147483648
    %v885 = vmul.f32 %v884, 1.442695
    %v886 = vpow.pop %v885
    %v887 = vadd.f32 %v886, 1.0
    %v888 = vrcp.pop %v887
    %v889 = vmul.f32 1.0, %v888
    %v890 = vmul.f32 %v878, %v823
    %v891 = vsub.f32 1.0, %v878
    %s892 = scalar_lea.vmem [#allocation3], 6
    %v893 = vld [vmem:[%s892] sm:$0x3]
    %v894 = vmul.f32 %v891, %v893
    %v895 = vadd.f32 %v890, %v894
    %v896 = vmul.f32 %v889, %v895
    %v897 = vsub.f32 1.0, %v889
    %s898 = scalar_lea.vmem [#allocation3], 54
    %v899 = vld [vmem:[%s898] sm:$0x3]
    %v900 = vmul.f32 %v897, %v899
    %v901 = vadd.f32 %v896, %v900
    %s902 = scalar_lea.vmem [#allocation4], 6
    %903 = vst.msk [vmem:[%s902] sm:$0x3] %vm249, %v901
    %s904 = scalar_lea.vmem [#allocation3], 88
    %v905 = vld [vmem:[%s904] sm:$0x3]
    %v906 = vmul.f32 %v648, %v859
    %v907 = vadd.f32 %v905, %v906
    %v908 = vadd.f32 %v907, %v632
    %v909 = vxor.u32 %v908, 2147483648
    %v910 = vmul.f32 %v909, 1.442695
    %v911 = vpow.pop %v910
    %v912 = vadd.f32 %v911, 1.0
    %v913 = vrcp.pop %v912
    %v914 = vmul.f32 1.0, %v913
    %s915 = scalar_lea.vmem [#allocation3], 104
    %v916 = vld [vmem:[%s915] sm:$0x3]
    %v917 = vmul.f32 %v656, %v859
    %v918 = vadd.f32 %v916, %v917
    %v919 = vadd.f32 %v918, %v640
    %v920 = vxor.u32 %v919, 2147483648
    %v921 = vmul.f32 %v920, 1.442695
    %v922 = vpow.pop %v921
    %v923 = vadd.f32 %v922, 1.0
    %v924 = vrcp.pop %v923
    %v925 = vmul.f32 1.0, %v924
    %v926 = vmul.f32 %v914, %v859
    %v927 = vsub.f32 1.0, %v914
    %s928 = scalar_lea.vmem [#allocation3], 72
    %v929 = vld [vmem:[%s928] sm:$0x3]
    %v930 = vmul.f32 %v927, %v929
    %v931 = vadd.f32 %v926, %v930
    %v932 = vmul.f32 %v925, %v931
    %v933 = vsub.f32 1.0, %v925
    %s934 = scalar_lea.vmem [#allocation3], 120
    %v935 = vld [vmem:[%s934] sm:$0x3]
    %v936 = vmul.f32 %v933, %v935
    %v937 = vadd.f32 %v932, %v936
    %s938 = scalar_lea.vmem [#allocation5], 8
    %939 = vst.msk [vmem:[%s938] sm:$0x3] %vm249, %v937
    %s940 = scalar_lea.vmem [#allocation3], 24
    %v941 = vld [vmem:[%s940] sm:$0x3]
    %v942 = vmul.f32 %v644, %v895
    %v943 = vadd.f32 %v941, %v942
    %v944 = vadd.f32 %v943, %v628
    %v945 = vxor.u32 %v944, 2147483648
    %v946 = vmul.f32 %v945, 1.442695
    %v947 = vpow.pop %v946
    %v948 = vadd.f32 %v947, 1.0
    %v949 = vrcp.pop %v948
    %v950 = vmul.f32 1.0, %v949
    %s951 = scalar_lea.vmem [#allocation3], 40
    %v952 = vld [vmem:[%s951] sm:$0x3]
    %v953 = vmul.f32 %v652, %v895
    %v954 = vadd.f32 %v952, %v953
    %v955 = vadd.f32 %v954, %v636
    %v956 = vxor.u32 %v955, 2147483648
    %v957 = vmul.f32 %v956, 1.442695
    %v958 = vpow.pop %v957
    %v959 = vadd.f32 %v958, 1.0
    %v960 = vrcp.pop %v959
    %v961 = vmul.f32 1.0, %v960
    %v962 = vmul.f32 %v950, %v895
    %v963 = vsub.f32 1.0, %v950
    %s964 = scalar_lea.vmem [#allocation3], 8
    %v965 = vld [vmem:[%s964] sm:$0x3]
    %v966 = vmul.f32 %v963, %v965
    %v967 = vadd.f32 %v962, %v966
    %v968 = vmul.f32 %v961, %v967
    %v969 = vsub.f32 1.0, %v961
    %s970 = scalar_lea.vmem [#allocation3], 56
    %v971 = vld [vmem:[%s970] sm:$0x3]
    %v972 = vmul.f32 %v969, %v971
    %v973 = vadd.f32 %v968, %v972
    %s974 = scalar_lea.vmem [#allocation4], 8
    %975 = vst.msk [vmem:[%s974] sm:$0x3] %vm249, %v973
    %s976 = scalar_lea.vmem [#allocation3], 86
    %v977 = vld [vmem:[%s976] sm:$0x3]
    %v978 = vmul.f32 %v648, %v931
    %v979 = vadd.f32 %v977, %v978
    %v980 = vadd.f32 %v979, %v632
    %v981 = vxor.u32 %v980, 2147483648
    %v982 = vmul.f32 %v981, 1.442695
    %v983 = vpow.pop %v982
    %v984 = vadd.f32 %v983, 1.0
    %v985 = vrcp.pop %v984
    %v986 = vmul.f32 1.0, %v985
    %s987 = scalar_lea.vmem [#allocation3], 102
    %v988 = vld [vmem:[%s987] sm:$0x3]
    %v989 = vmul.f32 %v656, %v931
    %v990 = vadd.f32 %v988, %v989
    %v991 = vadd.f32 %v990, %v640
    %v992 = vxor.u32 %v991, 2147483648
    %v993 = vmul.f32 %v992, 1.442695
    %v994 = vpow.pop %v993
    %v995 = vadd.f32 %v994, 1.0
    %v996 = vrcp.pop %v995
    %v997 = vmul.f32 1.0, %v996
    %v998 = vmul.f32 %v986, %v931
    %v999 = vsub.f32 1.0, %v986
    %s1000 = scalar_lea.vmem [#allocation3], 70
    %v1001 = vld [vmem:[%s1000] sm:$0x3]
    %v1002 = vmul.f32 %v999, %v1001
    %v1003 = vadd.f32 %v998, %v1002
    %v1004 = vmul.f32 %v997, %v1003
    %v1005 = vsub.f32 1.0, %v997
    %s1006 = scalar_lea.vmem [#allocation3], 118
    %v1007 = vld [vmem:[%s1006] sm:$0x3]
    %v1008 = vmul.f32 %v1005, %v1007
    %v1009 = vadd.f32 %v1004, %v1008
    %s1010 = scalar_lea.vmem [#allocation5], 6
    %1011 = vst.msk [vmem:[%s1010] sm:$0x3] %vm249, %v1009
    %s1012 = scalar_lea.vmem [#allocation3], 26
    %v1013 = vld [vmem:[%s1012] sm:$0x3]
    %v1014 = vmul.f32 %v644, %v967
    %v1015 = vadd.f32 %v1013, %v1014
    %v1016 = vadd.f32 %v1015, %v628
    %v1017 = vxor.u32 %v1016, 2147483648
    %v1018 = vmul.f32 %v1017, 1.442695
    %v1019 = vpow.pop %v1018
    %v1020 = vadd.f32 %v1019, 1.0
    %v1021 = vrcp.pop %v1020
    %v1022 = vmul.f32 1.0, %v1021
    %s1023 = scalar_lea.vmem [#allocation3], 42
    %v1024 = vld [vmem:[%s1023] sm:$0x3]
    %v1025 = vmul.f32 %v652, %v967
    %v1026 = vadd.f32 %v1024, %v1025
    %v1027 = vadd.f32 %v1026, %v636
    %v1028 = vxor.u32 %v1027, 2147483648
    %v1029 = vmul.f32 %v1028, 1.442695
    %v1030 = vpow.pop %v1029
    %v1031 = vadd.f32 %v1030, 1.0
    %v1032 = vrcp.pop %v1031
    %v1033 = vmul.f32 1.0, %v1032
    %v1034 = vmul.f32 %v1022, %v967
    %v1035 = vsub.f32 1.0, %v1022
    %s1036 = scalar_lea.vmem [#allocation3], 10
    %v1037 = vld [vmem:[%s1036] sm:$0x3]
    %v1038 = vmul.f32 %v1035, %v1037
    %v1039 = vadd.f32 %v1034, %v1038
    %v1040 = vmul.f32 %v1033, %v1039
    %v1041 = vsub.f32 1.0, %v1033
    %s1042 = scalar_lea.vmem [#allocation3], 58
    %v1043 = vld [vmem:[%s1042] sm:$0x3]
    %v1044 = vmul.f32 %v1041, %v1043
    %v1045 = vadd.f32 %v1040, %v1044
    %s1046 = scalar_lea.vmem [#allocation4], 10
    %1047 = vst.msk [vmem:[%s1046] sm:$0x3] %vm249, %v1045
    %s1048 = scalar_lea.vmem [#allocation3], 84
    %v1049 = vld [vmem:[%s1048] sm:$0x3]
    %v1050 = vmul.f32 %v648, %v1003
    %v1051 = vadd.f32 %v1049, %v1050
    %v1052 = vadd.f32 %v1051, %v632
    %v1053 = vxor.u32 %v1052, 2147483648
    %v1054 = vmul.f32 %v1053, 1.442695
    %v1055 = vpow.pop %v1054
    %v1056 = vadd.f32 %v1055, 1.0
    %v1057 = vrcp.pop %v1056
    %v1058 = vmul.f32 1.0, %v1057
    %s1059 = scalar_lea.vmem [#allocation3], 100
    %v1060 = vld [vmem:[%s1059] sm:$0x3]
    %v1061 = vmul.f32 %v656, %v1003
    %v1062 = vadd.f32 %v1060, %v1061
    %v1063 = vadd.f32 %v1062, %v640
    %v1064 = vxor.u32 %v1063, 2147483648
    %v1065 = vmul.f32 %v1064, 1.442695
    %v1066 = vpow.pop %v1065
    %v1067 = vadd.f32 %v1066, 1.0
    %v1068 = vrcp.pop %v1067
    %v1069 = vmul.f32 1.0, %v1068
    %v1070 = vmul.f32 %v1058, %v1003
    %v1071 = vsub.f32 1.0, %v1058
    %s1072 = scalar_lea.vmem [#allocation3], 68
    %v1073 = vld [vmem:[%s1072] sm:$0x3]
    %v1074 = vmul.f32 %v1071, %v1073
    %v1075 = vadd.f32 %v1070, %v1074
    %v1076 = vmul.f32 %v1069, %v1075
    %v1077 = vsub.f32 1.0, %v1069
    %s1078 = scalar_lea.vmem [#allocation3], 116
    %v1079 = vld [vmem:[%s1078] sm:$0x3]
    %v1080 = vmul.f32 %v1077, %v1079
    %v1081 = vadd.f32 %v1076, %v1080
    %s1082 = scalar_lea.vmem [#allocation5], 4
    %1083 = vst.msk [vmem:[%s1082] sm:$0x3] %vm249, %v1081
    %s1084 = scalar_lea.vmem [#allocation3], 28
    %v1085 = vld [vmem:[%s1084] sm:$0x3]
    %v1086 = vmul.f32 %v644, %v1039
    %v1087 = vadd.f32 %v1085, %v1086
    %v1088 = vadd.f32 %v1087, %v628
    %v1089 = vxor.u32 %v1088, 2147483648
    %v1090 = vmul.f32 %v1089, 1.442695
    %v1091 = vpow.pop %v1090
    %v1092 = vadd.f32 %v1091, 1.0
    %v1093 = vrcp.pop %v1092
    %v1094 = vmul.f32 1.0, %v1093
    %s1095 = scalar_lea.vmem [#allocation3], 44
    %v1096 = vld [vmem:[%s1095] sm:$0x3]
    %v1097 = vmul.f32 %v652, %v1039
    %v1098 = vadd.f32 %v1096, %v1097
    %v1099 = vadd.f32 %v1098, %v636
    %v1100 = vxor.u32 %v1099, 2147483648
    %v1101 = vmul.f32 %v1100, 1.442695
    %v1102 = vpow.pop %v1101
    %v1103 = vadd.f32 %v1102, 1.0
    %v1104 = vrcp.pop %v1103
    %v1105 = vmul.f32 1.0, %v1104
    %v1106 = vmul.f32 %v1094, %v1039
    %v1107 = vsub.f32 1.0, %v1094
    %s1108 = scalar_lea.vmem [#allocation3], 12
    %v1109 = vld [vmem:[%s1108] sm:$0x3]
    %v1110 = vmul.f32 %v1107, %v1109
    %v1111 = vadd.f32 %v1106, %v1110
    %v1112 = vmul.f32 %v1105, %v1111
    %v1113 = vsub.f32 1.0, %v1105
    %s1114 = scalar_lea.vmem [#allocation3], 60
    %v1115 = vld [vmem:[%s1114] sm:$0x3]
    %v1116 = vmul.f32 %v1113, %v1115
    %v1117 = vadd.f32 %v1112, %v1116
    %s1118 = scalar_lea.vmem [#allocation4], 12
    %1119 = vst.msk [vmem:[%s1118] sm:$0x3] %vm249, %v1117
    %s1120 = scalar_lea.vmem [#allocation3], 82
    %v1121 = vld [vmem:[%s1120] sm:$0x3]
    %v1122 = vmul.f32 %v648, %v1075
    %v1123 = vadd.f32 %v1121, %v1122
    %v1124 = vadd.f32 %v1123, %v632
    %v1125 = vxor.u32 %v1124, 2147483648
    %v1126 = vmul.f32 %v1125, 1.442695
    %v1127 = vpow.pop %v1126
    %v1128 = vadd.f32 %v1127, 1.0
    %v1129 = vrcp.pop %v1128
    %v1130 = vmul.f32 1.0, %v1129
    %s1131 = scalar_lea.vmem [#allocation3], 98
    %v1132 = vld [vmem:[%s1131] sm:$0x3]
    %v1133 = vmul.f32 %v656, %v1075
    %v1134 = vadd.f32 %v1132, %v1133
    %v1135 = vadd.f32 %v1134, %v640
    %v1136 = vxor.u32 %v1135, 2147483648
    %v1137 = vmul.f32 %v1136, 1.442695
    %v1138 = vpow.pop %v1137
    %v1139 = vadd.f32 %v1138, 1.0
    %v1140 = vrcp.pop %v1139
    %v1141 = vmul.f32 1.0, %v1140
    %v1142 = vmul.f32 %v1130, %v1075
    %v1143 = vsub.f32 1.0, %v1130
    %s1144 = scalar_lea.vmem [#allocation3], 66
    %v1145 = vld [vmem:[%s1144] sm:$0x3]
    %v1146 = vmul.f32 %v1143, %v1145
    %v1147 = vadd.f32 %v1142, %v1146
    %v1148 = vmul.f32 %v1141, %v1147
    %v1149 = vsub.f32 1.0, %v1141
    %s1150 = scalar_lea.vmem [#allocation3], 114
    %v1151 = vld [vmem:[%s1150] sm:$0x3]
    %v1152 = vmul.f32 %v1149, %v1151
    %v1153 = vadd.f32 %v1148, %v1152
    %s1154 = scalar_lea.vmem [#allocation5], 2
    %1155 = vst.msk [vmem:[%s1154] sm:$0x3] %vm249, %v1153
    %s1156 = scalar_lea.vmem [#allocation3], 30
    %v1157 = vld [vmem:[%s1156] sm:$0x3]
    %v1158 = vmul.f32 %v644, %v1111
    %v1159 = vadd.f32 %v1157, %v1158
    %v1160 = vadd.f32 %v1159, %v628
    %v1161 = vxor.u32 %v1160, 2147483648
    %v1162 = vmul.f32 %v1161, 1.442695
    %v1163 = vpow.pop %v1162
    %v1164 = vadd.f32 %v1163, 1.0
    %v1165 = vrcp.pop %v1164
    %v1166 = vmul.f32 1.0, %v1165
    %s1167 = scalar_lea.vmem [#allocation3], 46
    %v1168 = vld [vmem:[%s1167] sm:$0x3]
    %v1169 = vmul.f32 %v652, %v1111
    %v1170 = vadd.f32 %v1168, %v1169
    %v1171 = vadd.f32 %v1170, %v636
    %v1172 = vxor.u32 %v1171, 2147483648
    %v1173 = vmul.f32 %v1172, 1.442695
    %v1174 = vpow.pop %v1173
    %v1175 = vadd.f32 %v1174, 1.0
    %v1176 = vrcp.pop %v1175
    %v1177 = vmul.f32 1.0, %v1176
    %v1178 = vmul.f32 %v1166, %v1111
    %v1179 = vsub.f32 1.0, %v1166
    %s1180 = scalar_lea.vmem [#allocation3], 14
    %v1181 = vld [vmem:[%s1180] sm:$0x3]
    %v1182 = vmul.f32 %v1179, %v1181
    %v1183 = vadd.f32 %v1178, %v1182
    %v1184 = vmul.f32 %v1177, %v1183
    %v1185 = vsub.f32 1.0, %v1177
    %s1186 = scalar_lea.vmem [#allocation3], 62
    %v1187 = vld [vmem:[%s1186] sm:$0x3]
    %v1188 = vmul.f32 %v1185, %v1187
    %v1189 = vadd.f32 %v1184, %v1188
    %s1190 = scalar_lea.vmem [#allocation4], 14
    %1191 = vst.msk [vmem:[%s1190] sm:$0x3] %vm249, %v1189
    %v1192 = vld [vmem:[%s546] sm:$0x3]
    %v1193 = vmul.f32 %v648, %v1147
    %v1194 = vadd.f32 %v1192, %v1193
    %v1195 = vadd.f32 %v1194, %v632
    %v1196 = vxor.u32 %v1195, 2147483648
    %v1197 = vmul.f32 %v1196, 1.442695
    %v1198 = vpow.pop %v1197
    %v1199 = vadd.f32 %v1198, 1.0
    %v1200 = vrcp.pop %v1199
    %v1201 = vmul.f32 1.0, %v1200
    %v1202 = vld [vmem:[%s579] sm:$0x3]
    %v1203 = vmul.f32 %v656, %v1147
    %v1204 = vadd.f32 %v1202, %v1203
    %v1205 = vadd.f32 %v1204, %v640
    %v1206 = vxor.u32 %v1205, 2147483648
    %v1207 = vmul.f32 %v1206, 1.442695
    %v1208 = vpow.pop %v1207
    %v1209 = vadd.f32 %v1208, 1.0
    %v1210 = vrcp.pop %v1209
    %v1211 = vmul.f32 1.0, %v1210
    %v1212 = vmul.f32 %v1201, %v1147
    %v1213 = vsub.f32 1.0, %v1201
    %v1214 = vld [vmem:[%s457] sm:$0x3]
    %v1215 = vmul.f32 %v1213, %v1214
    %v1216 = vadd.f32 %v1212, %v1215
    %v1217 = vmul.f32 %v1211, %v1216
    %v1218 = vsub.f32 1.0, %v1211
    %v1219 = vld [vmem:[%s612] sm:$0x3]
    %v1220 = vmul.f32 %v1218, %v1219
    %v1221 = vadd.f32 %v1217, %v1220
    %1222 = vst.msk [vmem:[#allocation5] sm:$0x3] %vm249, %v1221
    %v1223 = vld [vmem:[#allocation4] sm:$0x3]
    %v1224 = vld [vmem:[#allocation4 + $0x2] sm:$0x3]
    %v1225 = vld [vmem:[#allocation4 + $0x4] sm:$0x3]
    %v1226 = vld [vmem:[#allocation4 + $0x6] sm:$0x3]
    %v1227 = vld [vmem:[#allocation4 + $0x8] sm:$0x3]
    %v1228 = vld [vmem:[#allocation4 + $0xa] sm:$0x3]
    %v1229 = vld [vmem:[#allocation4 + $0xc] sm:$0x3]
    %v1230 = vld [vmem:[#allocation4 + $0xe] sm:$0x3]
    %v1231 = vld [vmem:[#allocation5] sm:$0x3]
    %v1232 = vld [vmem:[#allocation5 + $0x2] sm:$0x3]
    %v1233 = vld [vmem:[#allocation5 + $0x4] sm:$0x3]
    %v1234 = vld [vmem:[#allocation5 + $0x6] sm:$0x3]
    %v1235 = vld [vmem:[#allocation5 + $0x8] sm:$0x3]
    %v1236 = vld [vmem:[#allocation5 + $0xa] sm:$0x3]
    %v1237 = vld [vmem:[#allocation5 + $0xc] sm:$0x3]
    %v1238 = vld [vmem:[#allocation5 + $0xe] sm:$0x3]
    %1247 = vrot.lane.b32.xlu0 %v1231, 32
    %v1248 = vpop.permute.xlu0 %1247
    %1249 = vrot.lane.b32.xlu0 %v1232, 32
    %v1250 = vpop.permute.xlu0 %1249
    %1251 = vrot.lane.b32.xlu0 %v1233, 32
    %v1252 = vpop.permute.xlu0 %1251
    %1253 = vrot.lane.b32.xlu0 %v1234, 32
    %v1254 = vpop.permute.xlu0 %1253
    %1255 = vrot.lane.b32.xlu0 %v1235, 32
    %v1256 = vpop.permute.xlu0 %1255
    %1257 = vrot.lane.b32.xlu0 %v1236, 32
    %v1258 = vpop.permute.xlu0 %1257
    %1259 = vrot.lane.b32.xlu0 %v1237, 32
    %v1260 = vpop.permute.xlu0 %1259
    %1261 = vrot.lane.b32.xlu0 %v1238, 32
    %v1262 = vpop.permute.xlu0 %1261
    %vm1271 = vcmask 261120
    %v1272 = vsel %vm1271, %v1223, %v1248
    %v1273 = vsel %vm1271, %v1224, %v1250
    %v1274 = vsel %vm1271, %v1225, %v1252
    %v1275 = vsel %vm1271, %v1226, %v1254
    %v1276 = vsel %vm1271, %v1227, %v1256
    %v1277 = vsel %vm1271, %v1228, %v1258
    %v1278 = vsel %vm1271, %v1229, %v1260
    %v1279 = vsel %vm1271, %v1230, %v1262
    %vm1280 = vcmask 517120
    %1281 = vst.msk [vmem:[#allocation2] sm:$0x3] %vm1280, %v1272
    %1282 = vst.msk [vmem:[#allocation2 + $0x2] sm:$0x3] %vm1280, %v1273
    %1283 = vst.msk [vmem:[#allocation2 + $0x4] sm:$0x3] %vm1280, %v1274
    %1284 = vst.msk [vmem:[#allocation2 + $0x6] sm:$0x3] %vm1280, %v1275
    %1285 = vst.msk [vmem:[#allocation2 + $0x8] sm:$0x3] %vm1280, %v1276
    %1286 = vst.msk [vmem:[#allocation2 + $0xa] sm:$0x3] %vm1280, %v1277
    %1287 = vst.msk [vmem:[#allocation2 + $0xc] sm:$0x3] %vm1280, %v1278
    %1288 = vst.msk [vmem:[#allocation2 + $0xe] sm:$0x3] %vm1280, %v1279
    %v1289 = vld [vmem:[#allocation2] sm:$0x3]
    %v1290 = vld [vmem:[#allocation2 + $0x2] sm:$0x3]
    %v1291 = vld [vmem:[#allocation2 + $0x4] sm:$0x3]
    %v1292 = vld [vmem:[#allocation2 + $0x6] sm:$0x3]
    %v1293 = vld [vmem:[#allocation2 + $0x8] sm:$0x3]
    %v1294 = vld [vmem:[#allocation2 + $0xa] sm:$0x3]
    %v1295 = vld [vmem:[#allocation2 + $0xc] sm:$0x3]
    %v1296 = vld [vmem:[#allocation2 + $0xe] sm:$0x3]
    %v1305 = vcombine.low %v1289, %v1290
    %v1306 = vcombine.low %v1291, %v1292
    %v1308 = vunpack.c.l.s4 1983009808
    %v1309 = vunpack.c.0.s8 %v1308
    %v1310 = vlaneseq
    %v1311 = vshrl.u32 %v1310, 7
    %v1312 = vsub.s32 %v1309, %v1311
    %v1313 = vrot.slane %v1305, %v1312
    %v1315 = vunpack.c.l.s4 1983009808
    %v1316 = vunpack.c.0.s8 %v1315
    %v1317 = vlaneseq
    %v1318 = vshrl.u32 %v1317, 7
    %v1319 = vsub.s32 %v1316, %v1318
    %v1320 = vrot.slane %v1306, %v1319
    %v1321 = vcombine.low %v1313, %v1320
    %v1322 = vcombine.low %v1293, %v1294
    %v1323 = vcombine.low %v1295, %v1296
    %v1325 = vunpack.c.l.s4 1983009808
    %v1326 = vunpack.c.0.s8 %v1325
    %v1327 = vlaneseq
    %v1328 = vshrl.u32 %v1327, 7
    %v1329 = vsub.s32 %v1326, %v1328
    %v1330 = vrot.slane %v1322, %v1329
    %v1332 = vunpack.c.l.s4 1983009808
    %v1333 = vunpack.c.0.s8 %v1332
    %v1334 = vlaneseq
    %v1335 = vshrl.u32 %v1334, 7
    %v1336 = vsub.s32 %v1333, %v1335
    %v1337 = vrot.slane %v1323, %v1336
    %v1338 = vcombine.low %v1330, %v1337
    %v1341 = vpack.c.bf16 %v1338, %v1321
    %v1342 = vld [vmem:[#allocation11] sm:$0xff]
    %v1343 = vld [vmem:[#allocation11 + $0x8] sm:$0xff]
    %v1344 = vld [vmem:[#allocation11 + $0x10] sm:$0xff]
    %v1345 = vld [vmem:[#allocation11 + $0x18] sm:$0xff]
    %v1346 = vld [vmem:[#allocation11 + $0x20] sm:$0xff]
    %v1347 = vld [vmem:[#allocation11 + $0x28] sm:$0xff]
    %v1348 = vld [vmem:[#allocation11 + $0x30] sm:$0xff]
    %v1349 = vld [vmem:[#allocation11 + $0x38] sm:$0xff]
    %v1358 = vunpack.c.l.b16 %v1342
    %v1359 = vunpack.c.h.b16 %v1342
    %v1360 = vunpack.c.l.b16 %v1343
    %v1361 = vunpack.c.h.b16 %v1343
    %v1362 = vunpack.c.l.b16 %v1344
    %v1363 = vunpack.c.h.b16 %v1344
    %v1364 = vunpack.c.l.b16 %v1345
    %v1365 = vunpack.c.h.b16 %v1345
    %v1366 = vunpack.c.l.b16 %v1346
    %v1367 = vunpack.c.h.b16 %v1346
    %v1368 = vunpack.c.l.b16 %v1347
    %v1369 = vunpack.c.h.b16 %v1347
    %v1370 = vunpack.c.l.b16 %v1348
    %v1371 = vunpack.c.h.b16 %v1348
    %v1372 = vunpack.c.l.b16 %v1349
    %v1373 = vunpack.c.h.b16 %v1349
    %v1374 = vpack.c.b16 %v1360, %v1358
    %v1375 = vpack.c.b16 %v1361, %v1359
    %v1376 = vpack.c.b16 %v1364, %v1362
    %v1377 = vpack.c.b16 %v1365, %v1363
    %v1378 = vpack.c.b16 %v1368, %v1366
    %v1379 = vpack.c.b16 %v1369, %v1367
    %v1380 = vpack.c.b16 %v1372, %v1370
    %v1381 = vpack.c.b16 %v1373, %v1371
    %vm1390 = vcmask 523264
    %v1392 = vsel %vm1390, %v1341, 0
    %1394 = vmatprep.subr.bf16.mxu0 %v1375
    %1395 = vmatpush1.bf16.msra.mxu0 %v1374
    %1396 = vmatprep.subr.bf16.mxu0 %v1377
    %1397 = vmatpush1.bf16.msra.mxu0 %v1376
    %1398 = vmatprep.subr.bf16.mxu0 %v1379
    %1399 = vmatpush1.bf16.msra.mxu0 %v1378
    %1400 = vmatprep.subr.bf16.mxu0 %v1381
    %1401 = vmatpush1.bf16.msra.mxu0 %v1380
    %1402 = vmatprep.subr.bf16.mxu0 0
    %1403 = vmatpush1.bf16.msra.mxu0 0
    %1404 = vmatprep.subr.bf16.mxu0 0
    %1405 = vmatpush1.bf16.msra.mxu0 0
    %1406 = vmatprep.subr.bf16.mxu0 0
    %1407 = vmatpush1.bf16.msra.mxu0 0
    %1408 = vmatprep.subr.bf16.mxu0 0
    %1409 = vmatpush1.bf16.msra.mxu0 0
    %1410 = vmatprep.subr.bf16.mxu0 0
    %1411 = vmatpush1.bf16.msra.mxu0 0
    %1412 = vmatprep.subr.bf16.mxu0 0
    %1413 = vmatpush1.bf16.msra.mxu0 0
    %1414 = vmatprep.subr.bf16.mxu0 0
    %1415 = vmatpush1.bf16.msra.mxu0 0
    %1416 = vmatprep.subr.bf16.mxu0 0
    %1417 = vmatpush1.bf16.msra.mxu0 0
    %1418 = vmatprep.subr.bf16.mxu0 0
    %1419 = vmatpush1.bf16.msra.mxu0 0
    %1420 = vmatprep.subr.bf16.mxu0 0
    %1421 = vmatpush1.bf16.msra.mxu0 0
    %1422 = vmatprep.subr.bf16.mxu0 0
    %1423 = vmatpush1.bf16.msra.mxu0 0
    %1424 = vmatprep.subr.bf16.mxu0 0
    %1425 = vmatpush1.bf16.msra.mxu0 0
    %1426 = vmatprep.mubr.bf16.mxu0 0
    %1427 = vmatmul.mubr.bf16.gmra.mrb[0].mxu0 %v1392
    %v1428 = vpop.f32.mrb[0].mxu0
    %v1429 = vadd.f32 0.0, %v1428
    %v1430 = vpop.f32.mrb[0].mxu0
    %v1431 = vadd.f32 0.0, %v1430
    %v1432 = vpop.f32.mrb[0].mxu0
    %v1433 = vadd.f32 0.0, %v1432
    %v1434 = vpop.f32.mrb[0].mxu0
    %v1435 = vadd.f32 0.0, %v1434
    %1436 = vdwg.mxu0
    %v1439 = vcombine.high %v1429, %v1429
    %v1441 = vunpack.c.l.s4 1983009808
    %v1442 = vunpack.c.0.s8 %v1441
    %v1443 = vlaneseq
    %v1444 = vshrl.u32 %v1443, 7
    %v1445 = vsub.s32 %v1442, %v1444
    %v1446 = vrot.slane %v1429, %v1445
    %v1448 = vunpack.c.l.s4 1983009808
    %v1449 = vunpack.c.0.s8 %v1448
    %v1450 = vlaneseq
    %v1451 = vshrl.u32 %v1450, 7
    %v1452 = vsub.s32 %v1449, %v1451
    %v1453 = vrot.slane %v1439, %v1452
    %v1454 = vcombine.high %v1446, %v1446
    %v1455 = vcombine.high %v1453, %v1453
    %v1456 = vcombine.high %v1433, %v1433
    %v1458 = vunpack.c.l.s4 1983009808
    %v1459 = vunpack.c.0.s8 %v1458
    %v1460 = vlaneseq
    %v1461 = vshrl.u32 %v1460, 7
    %v1462 = vsub.s32 %v1459, %v1461
    %v1463 = vrot.slane %v1433, %v1462
    %v1465 = vunpack.c.l.s4 1983009808
    %v1466 = vunpack.c.0.s8 %v1465
    %v1467 = vlaneseq
    %v1468 = vshrl.u32 %v1467, 7
    %v1469 = vsub.s32 %v1466, %v1468
    %v1470 = vrot.slane %v1456, %v1469
    %v1471 = vcombine.high %v1463, %v1463
    %v1472 = vcombine.high %v1470, %v1470
    %1481 = vst.msk [vmem:[#allocation3] sm:$0x3] %vm249, %v1446
    %1482 = vst.msk [vmem:[#allocation3 + $0x2] sm:$0x3] %vm249, %v1454
    %1483 = vst.msk [vmem:[#allocation3 + $0x4] sm:$0x3] %vm249, %v1453
    %1484 = vst.msk [vmem:[#allocation3 + $0x6] sm:$0x3] %vm249, %v1455
    %1485 = vst.msk [vmem:[#allocation3 + $0x8] sm:$0x3] %vm249, %v1463
    %1486 = vst.msk [vmem:[#allocation3 + $0xa] sm:$0x3] %vm249, %v1471
    %1487 = vst.msk [vmem:[#allocation3 + $0xc] sm:$0x3] %vm249, %v1470
    %1488 = vst.msk [vmem:[#allocation3 + $0xe] sm:$0x3] %vm249, %v1472
    %v1490 = vunpack.c.l.s4 1983009808
    %v1491 = vunpack.c.0.s8 %v1490
    %v1492 = vlaneseq
    %v1493 = vshrl.u32 %v1492, 7
    %v1494 = vsub.s32 %v1491, %v1493
    %v1495 = vrot.slane %v1446, %v1494
    %v1497 = vunpack.c.l.s4 1983009808
    %v1498 = vunpack.c.0.s8 %v1497
    %v1499 = vlaneseq
    %v1500 = vshrl.u32 %v1499, 7
    %v1501 = vsub.s32 %v1498, %v1500
    %v1502 = vrot.slane %v1454, %v1501
    %v1504 = vunpack.c.l.s4 1983009808
    %v1505 = vunpack.c.0.s8 %v1504
    %v1506 = vlaneseq
    %v1507 = vshrl.u32 %v1506, 7
    %v1508 = vsub.s32 %v1505, %v1507
    %v1509 = vrot.slane %v1453, %v1508
    %v1511 = vunpack.c.l.s4 1983009808
    %v1512 = vunpack.c.0.s8 %v1511
    %v1513 = vlaneseq
    %v1514 = vshrl.u32 %v1513, 7
    %v1515 = vsub.s32 %v1512, %v1514
    %v1516 = vrot.slane %v1455, %v1515
    %v1518 = vunpack.c.l.s4 1983009808
    %v1519 = vunpack.c.0.s8 %v1518
    %v1520 = vlaneseq
    %v1521 = vshrl.u32 %v1520, 7
    %v1522 = vsub.s32 %v1519, %v1521
    %v1523 = vrot.slane %v1463, %v1522
    %v1525 = vunpack.c.l.s4 1983009808
    %v1526 = vunpack.c.0.s8 %v1525
    %v1527 = vlaneseq
    %v1528 = vshrl.u32 %v1527, 7
    %v1529 = vsub.s32 %v1526, %v1528
    %v1530 = vrot.slane %v1471, %v1529
    %v1532 = vunpack.c.l.s4 1983009808
    %v1533 = vunpack.c.0.s8 %v1532
    %v1534 = vlaneseq
    %v1535 = vshrl.u32 %v1534, 7
    %v1536 = vsub.s32 %v1533, %v1535
    %v1537 = vrot.slane %v1470, %v1536
    %v1539 = vunpack.c.l.s4 1983009808
    %v1540 = vunpack.c.0.s8 %v1539
    %v1541 = vlaneseq
    %v1542 = vshrl.u32 %v1541, 7
    %v1543 = vsub.s32 %v1540, %v1542
    %v1544 = vrot.slane %v1472, %v1543
    %1545 = vrot.lane.b32.xlu0 %v1495, 96
    %v1546 = vpop.permute.xlu0 %1545
    %1547 = vrot.lane.b32.xlu0 %v1502, 96
    %v1548 = vpop.permute.xlu0 %1547
    %1549 = vrot.lane.b32.xlu0 %v1509, 96
    %v1550 = vpop.permute.xlu0 %1549
    %1551 = vrot.lane.b32.xlu0 %v1516, 96
    %v1552 = vpop.permute.xlu0 %1551
    %1553 = vrot.lane.b32.xlu0 %v1523, 96
    %v1554 = vpop.permute.xlu0 %1553
    %1555 = vrot.lane.b32.xlu0 %v1530, 96
    %v1556 = vpop.permute.xlu0 %1555
    %1557 = vrot.lane.b32.xlu0 %v1537, 96
    %v1558 = vpop.permute.xlu0 %1557
    %1559 = vrot.lane.b32.xlu0 %v1544, 96
    %v1560 = vpop.permute.xlu0 %1559
    %1569 = vst.msk [vmem:[%s338] sm:$0x3] %vm249, %v1546
    %1570 = vst.msk [vmem:[%s338 + $0x2] sm:$0x3] %vm249, %v1548
    %1571 = vst.msk [vmem:[%s338 + $0x4] sm:$0x3] %vm249, %v1550
    %1572 = vst.msk [vmem:[%s338 + $0x6] sm:$0x3] %vm249, %v1552
    %1573 = vst.msk [vmem:[%s338 + $0x8] sm:$0x3] %vm249, %v1554
    %1574 = vst.msk [vmem:[%s338 + $0xa] sm:$0x3] %vm249, %v1556
    %1575 = vst.msk [vmem:[%s338 + $0xc] sm:$0x3] %vm249, %v1558
    %1576 = vst.msk [vmem:[%s338 + $0xe] sm:$0x3] %vm249, %v1560
    %1577 = vrot.lane.b32.xlu0 %v1495, 64
    %v1578 = vpop.permute.xlu0 %1577
    %1579 = vrot.lane.b32.xlu0 %v1502, 64
    %v1580 = vpop.permute.xlu0 %1579
    %1581 = vrot.lane.b32.xlu0 %v1509, 64
    %v1582 = vpop.permute.xlu0 %1581
    %1583 = vrot.lane.b32.xlu0 %v1516, 64
    %v1584 = vpop.permute.xlu0 %1583
    %1585 = vrot.lane.b32.xlu0 %v1523, 64
    %v1586 = vpop.permute.xlu0 %1585
    %1587 = vrot.lane.b32.xlu0 %v1530, 64
    %v1588 = vpop.permute.xlu0 %1587
    %1589 = vrot.lane.b32.xlu0 %v1537, 64
    %v1590 = vpop.permute.xlu0 %1589
    %1591 = vrot.lane.b32.xlu0 %v1544, 64
    %v1592 = vpop.permute.xlu0 %1591
    %1601 = vst.msk [vmem:[%s371] sm:$0x3] %vm249, %v1578
    %1602 = vst.msk [vmem:[%s371 + $0x2] sm:$0x3] %vm249, %v1580
    %1603 = vst.msk [vmem:[%s371 + $0x4] sm:$0x3] %vm249, %v1582
    %1604 = vst.msk [vmem:[%s371 + $0x6] sm:$0x3] %vm249, %v1584
    %1605 = vst.msk [vmem:[%s371 + $0x8] sm:$0x3] %vm249, %v1586
    %1606 = vst.msk [vmem:[%s371 + $0xa] sm:$0x3] %vm249, %v1588
    %1607 = vst.msk [vmem:[%s371 + $0xc] sm:$0x3] %vm249, %v1590
    %1608 = vst.msk [vmem:[%s371 + $0xe] sm:$0x3] %vm249, %v1592
    %1609 = vst.msk [vmem:[%s404] sm:$0x3] %vm249, %v1289
    %1610 = vst.msk [vmem:[%s404 + $0x2] sm:$0x3] %vm249, %v1290
    %1611 = vst.msk [vmem:[%s404 + $0x4] sm:$0x3] %vm249, %v1291
    %1612 = vst.msk [vmem:[%s404 + $0x6] sm:$0x3] %vm249, %v1292
    %1613 = vst.msk [vmem:[%s404 + $0x8] sm:$0x3] %vm249, %v1293
    %1614 = vst.msk [vmem:[%s404 + $0xa] sm:$0x3] %vm249, %v1294
    %1615 = vst.msk [vmem:[%s404 + $0xc] sm:$0x3] %vm249, %v1295
    %1616 = vst.msk [vmem:[%s404 + $0xe] sm:$0x3] %vm249, %v1296
    %1617 = vrot.lane.b32.xlu0 %v1495, 32
    %v1618 = vpop.permute.xlu0 %1617
    %1619 = vrot.lane.b32.xlu0 %v1502, 32
    %v1620 = vpop.permute.xlu0 %1619
    %1621 = vrot.lane.b32.xlu0 %v1509, 32
    %v1622 = vpop.permute.xlu0 %1621
    %1623 = vrot.lane.b32.xlu0 %v1516, 32
    %v1624 = vpop.permute.xlu0 %1623
    %1625 = vrot.lane.b32.xlu0 %v1523, 32
    %v1626 = vpop.permute.xlu0 %1625
    %1627 = vrot.lane.b32.xlu0 %v1530, 32
    %v1628 = vpop.permute.xlu0 %1627
    %1629 = vrot.lane.b32.xlu0 %v1537, 32
    %v1630 = vpop.permute.xlu0 %1629
    %1631 = vrot.lane.b32.xlu0 %v1544, 32
    %v1632 = vpop.permute.xlu0 %1631
    %1641 = vst.msk [vmem:[%s457] sm:$0x3] %vm249, %v1618
    %1642 = vst.msk [vmem:[%s457 + $0x2] sm:$0x3] %vm249, %v1620
    %1643 = vst.msk [vmem:[%s457 + $0x4] sm:$0x3] %vm249, %v1622
    %1644 = vst.msk [vmem:[%s457 + $0x6] sm:$0x3] %vm249, %v1624
    %1645 = vst.msk [vmem:[%s457 + $0x8] sm:$0x3] %vm249, %v1626
    %1646 = vst.msk [vmem:[%s457 + $0xa] sm:$0x3] %vm249, %v1628
    %1647 = vst.msk [vmem:[%s457 + $0xc] sm:$0x3] %vm249, %v1630
    %1648 = vst.msk [vmem:[%s457 + $0xe] sm:$0x3] %vm249, %v1632
    %v1651 = vcombine.high %v1431, %v1431
    %v1653 = vunpack.c.l.s4 1983009808
    %v1654 = vunpack.c.0.s8 %v1653
    %v1655 = vlaneseq
    %v1656 = vshrl.u32 %v1655, 7
    %v1657 = vsub.s32 %v1654, %v1656
    %v1658 = vrot.slane %v1431, %v1657
    %v1660 = vunpack.c.l.s4 1983009808
    %v1661 = vunpack.c.0.s8 %v1660
    %v1662 = vlaneseq
    %v1663 = vshrl.u32 %v1662, 7
    %v1664 = vsub.s32 %v1661, %v1663
    %v1665 = vrot.slane %v1651, %v1664
    %v1666 = vcombine.high %v1658, %v1658
    %v1667 = vcombine.high %v1665, %v1665
    %v1668 = vcombine.high %v1435, %v1435
    %v1670 = vunpack.c.l.s4 1983009808
    %v1671 = vunpack.c.0.s8 %v1670
    %v1672 = vlaneseq
    %v1673 = vshrl.u32 %v1672, 7
    %v1674 = vsub.s32 %v1671, %v1673
    %v1675 = vrot.slane %v1435, %v1674
    %v1677 = vunpack.c.l.s4 1983009808
    %v1678 = vunpack.c.0.s8 %v1677
    %v1679 = vlaneseq
    %v1680 = vshrl.u32 %v1679, 7
    %v1681 = vsub.s32 %v1678, %v1680
    %v1682 = vrot.slane %v1668, %v1681
    %v1683 = vcombine.high %v1675, %v1675
    %v1684 = vcombine.high %v1682, %v1682
    %1693 = vst.msk [vmem:[%s546] sm:$0x3] %vm249, %v1658
    %1694 = vst.msk [vmem:[%s546 + $0x2] sm:$0x3] %vm249, %v1666
    %1695 = vst.msk [vmem:[%s546 + $0x4] sm:$0x3] %vm249, %v1665
    %1696 = vst.msk [vmem:[%s546 + $0x6] sm:$0x3] %vm249, %v1667
    %1697 = vst.msk [vmem:[%s546 + $0x8] sm:$0x3] %vm249, %v1675
    %1698 = vst.msk [vmem:[%s546 + $0xa] sm:$0x3] %vm249, %v1683
    %1699 = vst.msk [vmem:[%s546 + $0xc] sm:$0x3] %vm249, %v1682
    %1700 = vst.msk [vmem:[%s546 + $0xe] sm:$0x3] %vm249, %v1684
    %v1702 = vunpack.c.l.s4 1983009808
    %v1703 = vunpack.c.0.s8 %v1702
    %v1704 = vlaneseq
    %v1705 = vshrl.u32 %v1704, 7
    %v1706 = vsub.s32 %v1703, %v1705
    %v1707 = vrot.slane %v1658, %v1706
    %v1709 = vunpack.c.l.s4 1983009808
    %v1710 = vunpack.c.0.s8 %v1709
    %v1711 = vlaneseq
    %v1712 = vshrl.u32 %v1711, 7
    %v1713 = vsub.s32 %v1710, %v1712
    %v1714 = vrot.slane %v1666, %v1713
    %v1716 = vunpack.c.l.s4 1983009808
    %v1717 = vunpack.c.0.s8 %v1716
    %v1718 = vlaneseq
    %v1719 = vshrl.u32 %v1718, 7
    %v1720 = vsub.s32 %v1717, %v1719
    %v1721 = vrot.slane %v1665, %v1720
    %v1723 = vunpack.c.l.s4 1983009808
    %v1724 = vunpack.c.0.s8 %v1723
    %v1725 = vlaneseq
    %v1726 = vshrl.u32 %v1725, 7
    %v1727 = vsub.s32 %v1724, %v1726
    %v1728 = vrot.slane %v1667, %v1727
    %v1730 = vunpack.c.l.s4 1983009808
    %v1731 = vunpack.c.0.s8 %v1730
    %v1732 = vlaneseq
    %v1733 = vshrl.u32 %v1732, 7
    %v1734 = vsub.s32 %v1731, %v1733
    %v1735 = vrot.slane %v1675, %v1734
    %v1737 = vunpack.c.l.s4 1983009808
    %v1738 = vunpack.c.0.s8 %v1737
    %v1739 = vlaneseq
    %v1740 = vshrl.u32 %v1739, 7
    %v1741 = vsub.s32 %v1738, %v1740
    %v1742 = vrot.slane %v1683, %v1741
    %v1744 = vunpack.c.l.s4 1983009808
    %v1745 = vunpack.c.0.s8 %v1744
    %v1746 = vlaneseq
    %v1747 = vshrl.u32 %v1746, 7
    %v1748 = vsub.s32 %v1745, %v1747
    %v1749 = vrot.slane %v1682, %v1748
    %v1751 = vunpack.c.l.s4 1983009808
    %v1752 = vunpack.c.0.s8 %v1751
    %v1753 = vlaneseq
    %v1754 = vshrl.u32 %v1753, 7
    %v1755 = vsub.s32 %v1752, %v1754
    %v1756 = vrot.slane %v1684, %v1755
    %1757 = vrot.lane.b32.xlu0 %v1707, 96
    %v1758 = vpop.permute.xlu0 %1757
    %1759 = vrot.lane.b32.xlu0 %v1714, 96
    %v1760 = vpop.permute.xlu0 %1759
    %1761 = vrot.lane.b32.xlu0 %v1721, 96
    %v1762 = vpop.permute.xlu0 %1761
    %1763 = vrot.lane.b32.xlu0 %v1728, 96
    %v1764 = vpop.permute.xlu0 %1763
    %1765 = vrot.lane.b32.xlu0 %v1735, 96
    %v1766 = vpop.permute.xlu0 %1765
    %1767 = vrot.lane.b32.xlu0 %v1742, 96
    %v1768 = vpop.permute.xlu0 %1767
    %1769 = vrot.lane.b32.xlu0 %v1749, 96
    %v1770 = vpop.permute.xlu0 %1769
    %1771 = vrot.lane.b32.xlu0 %v1756, 96
    %v1772 = vpop.permute.xlu0 %1771
    %1781 = vst.msk [vmem:[%s579] sm:$0x3] %vm249, %v1758
    %1782 = vst.msk [vmem:[%s579 + $0x2] sm:$0x3] %vm249, %v1760
    %1783 = vst.msk [vmem:[%s579 + $0x4] sm:$0x3] %vm249, %v1762
    %1784 = vst.msk [vmem:[%s579 + $0x6] sm:$0x3] %vm249, %v1764
    %1785 = vst.msk [vmem:[%s579 + $0x8] sm:$0x3] %vm249, %v1766
    %1786 = vst.msk [vmem:[%s579 + $0xa] sm:$0x3] %vm249, %v1768
    %1787 = vst.msk [vmem:[%s579 + $0xc] sm:$0x3] %vm249, %v1770
    %1788 = vst.msk [vmem:[%s579 + $0xe] sm:$0x3] %vm249, %v1772
    %1789 = vrot.lane.b32.xlu0 %v1289, 96
    %v1790 = vpop.permute.xlu0 %1789
    %1791 = vrot.lane.b32.xlu0 %v1290, 96
    %v1792 = vpop.permute.xlu0 %1791
    %1793 = vrot.lane.b32.xlu0 %v1291, 96
    %v1794 = vpop.permute.xlu0 %1793
    %1795 = vrot.lane.b32.xlu0 %v1292, 96
    %v1796 = vpop.permute.xlu0 %1795
    %1797 = vrot.lane.b32.xlu0 %v1293, 96
    %v1798 = vpop.permute.xlu0 %1797
    %1799 = vrot.lane.b32.xlu0 %v1294, 96
    %v1800 = vpop.permute.xlu0 %1799
    %1801 = vrot.lane.b32.xlu0 %v1295, 96
    %v1802 = vpop.permute.xlu0 %1801
    %1803 = vrot.lane.b32.xlu0 %v1296, 96
    %v1804 = vpop.permute.xlu0 %1803
    %1813 = vst.msk [vmem:[%s612] sm:$0x3] %vm249, %v1790
    %1814 = vst.msk [vmem:[%s612 + $0x2] sm:$0x3] %vm249, %v1792
    %1815 = vst.msk [vmem:[%s612 + $0x4] sm:$0x3] %vm249, %v1794
    %1816 = vst.msk [vmem:[%s612 + $0x6] sm:$0x3] %vm249, %v1796
    %1817 = vst.msk [vmem:[%s612 + $0x8] sm:$0x3] %vm249, %v1798
    %1818 = vst.msk [vmem:[%s612 + $0xa] sm:$0x3] %vm249, %v1800
    %1819 = vst.msk [vmem:[%s612 + $0xc] sm:$0x3] %vm249, %v1802
    %1820 = vst.msk [vmem:[%s612 + $0xe] sm:$0x3] %vm249, %v1804
    %v1821 = vld [vmem:[%s5] sm:$0x3]
    %v1822 = vld [vmem:[%s5 + $0x2] sm:$0x3]
    %v1823 = vld [vmem:[%s6] sm:$0x3]
    %v1824 = vld [vmem:[%s6 + $0x2] sm:$0x3]
    %v1825 = vlaneseq
    %v1826 = vshrl.u32 %v1825, 7
    %v1827 = vsub.s32 0, %v1826
    %v1828 = vrot.slane %v1821, %v1827
    %v1829 = vlaneseq
    %v1830 = vshrl.u32 %v1829, 7
    %v1831 = vsub.s32 0, %v1830
    %v1832 = vrot.slane %v1822, %v1831
    %v1833 = vlaneseq
    %v1834 = vshrl.u32 %v1833, 7
    %v1835 = vsub.s32 1, %v1834
    %v1836 = vrot.slane %v1821, %v1835
    %v1837 = vlaneseq
    %v1838 = vshrl.u32 %v1837, 7
    %v1839 = vsub.s32 1, %v1838
    %v1840 = vrot.slane %v1822, %v1839
    %v1841 = vlaneseq
    %v1842 = vshrl.u32 %v1841, 7
    %v1843 = vsub.s32 0, %v1842
    %v1844 = vrot.slane %v1823, %v1843
    %v1845 = vlaneseq
    %v1846 = vshrl.u32 %v1845, 7
    %v1847 = vsub.s32 0, %v1846
    %v1848 = vrot.slane %v1824, %v1847
    %v1849 = vlaneseq
    %v1850 = vshrl.u32 %v1849, 7
    %v1851 = vsub.s32 1, %v1850
    %v1852 = vrot.slane %v1823, %v1851
    %v1853 = vlaneseq
    %v1854 = vshrl.u32 %v1853, 7
    %v1855 = vsub.s32 1, %v1854
    %v1856 = vrot.slane %v1824, %v1855
    %v1857 = vld [vmem:[%s338] sm:$0x3]
    %v1858 = vmul.f32 %v1844, 0.0
    %v1859 = vadd.f32 %v1857, %v1858
    %v1860 = vadd.f32 %v1859, %v1828
    %v1861 = vxor.u32 %v1860, 2147483648
    %v1862 = vmul.f32 %v1861, 1.442695
    %v1863 = vpow.pop %v1862
    %v1864 = vadd.f32 %v1863, 1.0
    %v1865 = vrcp.pop %v1864
    %v1866 = vmul.f32 1.0, %v1865
    %v1867 = vld [vmem:[%s371] sm:$0x3]
    %v1868 = vmul.f32 %v1852, 0.0
    %v1869 = vadd.f32 %v1867, %v1868
    %v1870 = vadd.f32 %v1869, %v1836
    %v1871 = vxor.u32 %v1870, 2147483648
    %v1872 = vmul.f32 %v1871, 1.442695
    %v1873 = vpow.pop %v1872
    %v1874 = vadd.f32 %v1873, 1.0
    %v1875 = vrcp.pop %v1874
    %v1876 = vmul.f32 1.0, %v1875
    %v1877 = vmul.f32 %v1866, 0.0
    %v1878 = vsub.f32 1.0, %v1866
    %v1879 = vld [vmem:[#allocation3] sm:$0x3]
    %v1880 = vmul.f32 %v1878, %v1879
    %v1881 = vadd.f32 %v1877, %v1880
    %v1882 = vmul.f32 %v1876, %v1881
    %v1883 = vsub.f32 1.0, %v1876
    %v1884 = vld [vmem:[%s404] sm:$0x3]
    %v1885 = vmul.f32 %v1883, %v1884
    %v1886 = vadd.f32 %v1882, %v1885
    %1887 = vst.msk [vmem:[#allocation4] sm:$0x3] %vm249, %v1886
    %v1888 = vld [vmem:[%s688] sm:$0x3]
    %v1889 = vmul.f32 %v1848, 0.0
    %v1890 = vadd.f32 %v1888, %v1889
    %v1891 = vadd.f32 %v1890, %v1832
    %v1892 = vxor.u32 %v1891, 2147483648
    %v1893 = vmul.f32 %v1892, 1.442695
    %v1894 = vpow.pop %v1893
    %v1895 = vadd.f32 %v1894, 1.0
    %v1896 = vrcp.pop %v1895
    %v1897 = vmul.f32 1.0, %v1896
    %v1898 = vld [vmem:[%s699] sm:$0x3]
    %v1899 = vmul.f32 %v1856, 0.0
    %v1900 = vadd.f32 %v1898, %v1899
    %v1901 = vadd.f32 %v1900, %v1840
    %v1902 = vxor.u32 %v1901, 2147483648
    %v1903 = vmul.f32 %v1902, 1.442695
    %v1904 = vpow.pop %v1903
    %v1905 = vadd.f32 %v1904, 1.0
    %v1906 = vrcp.pop %v1905
    %v1907 = vmul.f32 1.0, %v1906
    %v1908 = vmul.f32 %v1897, 0.0
    %v1909 = vsub.f32 1.0, %v1897
    %v1910 = vld [vmem:[%s712] sm:$0x3]
    %v1911 = vmul.f32 %v1909, %v1910
    %v1912 = vadd.f32 %v1908, %v1911
    %v1913 = vmul.f32 %v1907, %v1912
    %v1914 = vsub.f32 1.0, %v1907
    %v1915 = vld [vmem:[%s718] sm:$0x3]
    %v1916 = vmul.f32 %v1914, %v1915
    %v1917 = vadd.f32 %v1913, %v1916
    %1918 = vst.msk [vmem:[%s722] sm:$0x3] %vm249, %v1917
    %v1919 = vld [vmem:[%s724] sm:$0x3]
    %v1920 = vmul.f32 %v1844, %v1881
    %v1921 = vadd.f32 %v1919, %v1920
    %v1922 = vadd.f32 %v1921, %v1828
    %v1923 = vxor.u32 %v1922, 2147483648
    %v1924 = vmul.f32 %v1923, 1.442695
    %v1925 = vpow.pop %v1924
    %v1926 = vadd.f32 %v1925, 1.0
    %v1927 = vrcp.pop %v1926
    %v1928 = vmul.f32 1.0, %v1927
    %v1929 = vld [vmem:[%s735] sm:$0x3]
    %v1930 = vmul.f32 %v1852, %v1881
    %v1931 = vadd.f32 %v1929, %v1930
    %v1932 = vadd.f32 %v1931, %v1836
    %v1933 = vxor.u32 %v1932, 2147483648
    %v1934 = vmul.f32 %v1933, 1.442695
    %v1935 = vpow.pop %v1934
    %v1936 = vadd.f32 %v1935, 1.0
    %v1937 = vrcp.pop %v1936
    %v1938 = vmul.f32 1.0, %v1937
    %v1939 = vmul.f32 %v1928, %v1881
    %v1940 = vsub.f32 1.0, %v1928
    %v1941 = vld [vmem:[%s748] sm:$0x3]
    %v1942 = vmul.f32 %v1940, %v1941
    %v1943 = vadd.f32 %v1939, %v1942
    %v1944 = vmul.f32 %v1938, %v1943
    %v1945 = vsub.f32 1.0, %v1938
    %v1946 = vld [vmem:[%s754] sm:$0x3]
    %v1947 = vmul.f32 %v1945, %v1946
    %v1948 = vadd.f32 %v1944, %v1947
    %1949 = vst.msk [vmem:[%s758] sm:$0x3] %vm249, %v1948
    %v1950 = vld [vmem:[%s760] sm:$0x3]
    %v1951 = vmul.f32 %v1848, %v1912
    %v1952 = vadd.f32 %v1950, %v1951
    %v1953 = vadd.f32 %v1952, %v1832
    %v1954 = vxor.u32 %v1953, 2147483648
    %v1955 = vmul.f32 %v1954, 1.442695
    %v1956 = vpow.pop %v1955
    %v1957 = vadd.f32 %v1956, 1.0
    %v1958 = vrcp.pop %v1957
    %v1959 = vmul.f32 1.0, %v1958
    %v1960 = vld [vmem:[%s771] sm:$0x3]
    %v1961 = vmul.f32 %v1856, %v1912
    %v1962 = vadd.f32 %v1960, %v1961
    %v1963 = vadd.f32 %v1962, %v1840
    %v1964 = vxor.u32 %v1963, 2147483648
    %v1965 = vmul.f32 %v1964, 1.442695
    %v1966 = vpow.pop %v1965
    %v1967 = vadd.f32 %v1966, 1.0
    %v1968 = vrcp.pop %v1967
    %v1969 = vmul.f32 1.0, %v1968
    %v1970 = vmul.f32 %v1959, %v1912
    %v1971 = vsub.f32 1.0, %v1959
    %v1972 = vld [vmem:[%s784] sm:$0x3]
    %v1973 = vmul.f32 %v1971, %v1972
    %v1974 = vadd.f32 %v1970, %v1973
    %v1975 = vmul.f32 %v1969, %v1974
    %v1976 = vsub.f32 1.0, %v1969
    %v1977 = vld [vmem:[%s790] sm:$0x3]
    %v1978 = vmul.f32 %v1976, %v1977
    %v1979 = vadd.f32 %v1975, %v1978
    %1980 = vst.msk [vmem:[%s794] sm:$0x3] %vm249, %v1979
    %v1981 = vld [vmem:[%s796] sm:$0x3]
    %v1982 = vmul.f32 %v1844, %v1943
    %v1983 = vadd.f32 %v1981, %v1982
    %v1984 = vadd.f32 %v1983, %v1828
    %v1985 = vxor.u32 %v1984, 2147483648
    %v1986 = vmul.f32 %v1985, 1.442695
    %v1987 = vpow.pop %v1986
    %v1988 = vadd.f32 %v1987, 1.0
    %v1989 = vrcp.pop %v1988
    %v1990 = vmul.f32 1.0, %v1989
    %v1991 = vld [vmem:[%s807] sm:$0x3]
    %v1992 = vmul.f32 %v1852, %v1943
    %v1993 = vadd.f32 %v1991, %v1992
    %v1994 = vadd.f32 %v1993, %v1836
    %v1995 = vxor.u32 %v1994, 2147483648
    %v1996 = vmul.f32 %v1995, 1.442695
    %v1997 = vpow.pop %v1996
    %v1998 = vadd.f32 %v1997, 1.0
    %v1999 = vrcp.pop %v1998
    %v2000 = vmul.f32 1.0, %v1999
    %v2001 = vmul.f32 %v1990, %v1943
    %v2002 = vsub.f32 1.0, %v1990
    %v2003 = vld [vmem:[%s820] sm:$0x3]
    %v2004 = vmul.f32 %v2002, %v2003
    %v2005 = vadd.f32 %v2001, %v2004
    %v2006 = vmul.f32 %v2000, %v2005
    %v2007 = vsub.f32 1.0, %v2000
    %v2008 = vld [vmem:[%s826] sm:$0x3]
    %v2009 = vmul.f32 %v2007, %v2008
    %v2010 = vadd.f32 %v2006, %v2009
    %2011 = vst.msk [vmem:[%s830] sm:$0x3] %vm249, %v2010
    %v2012 = vld [vmem:[%s832] sm:$0x3]
    %v2013 = vmul.f32 %v1848, %v1974
    %v2014 = vadd.f32 %v2012, %v2013
    %v2015 = vadd.f32 %v2014, %v1832
    %v2016 = vxor.u32 %v2015, 2147483648
    %v2017 = vmul.f32 %v2016, 1.442695
    %v2018 = vpow.pop %v2017
    %v2019 = vadd.f32 %v2018, 1.0
    %v2020 = vrcp.pop %v2019
    %v2021 = vmul.f32 1.0, %v2020
    %v2022 = vld [vmem:[%s843] sm:$0x3]
    %v2023 = vmul.f32 %v1856, %v1974
    %v2024 = vadd.f32 %v2022, %v2023
    %v2025 = vadd.f32 %v2024, %v1840
    %v2026 = vxor.u32 %v2025, 2147483648
    %v2027 = vmul.f32 %v2026, 1.442695
    %v2028 = vpow.pop %v2027
    %v2029 = vadd.f32 %v2028, 1.0
    %v2030 = vrcp.pop %v2029
    %v2031 = vmul.f32 1.0, %v2030
    %v2032 = vmul.f32 %v2021, %v1974
    %v2033 = vsub.f32 1.0, %v2021
    %v2034 = vld [vmem:[%s856] sm:$0x3]
    %v2035 = vmul.f32 %v2033, %v2034
    %v2036 = vadd.f32 %v2032, %v2035
    %v2037 = vmul.f32 %v2031, %v2036
    %v2038 = vsub.f32 1.0, %v2031
    %v2039 = vld [vmem:[%s862] sm:$0x3]
    %v2040 = vmul.f32 %v2038, %v2039
    %v2041 = vadd.f32 %v2037, %v2040
    %2042 = vst.msk [vmem:[%s866] sm:$0x3] %vm249, %v2041
    %v2043 = vld [vmem:[%s868] sm:$0x3]
    %v2044 = vmul.f32 %v1844, %v2005
    %v2045 = vadd.f32 %v2043, %v2044
    %v2046 = vadd.f32 %v2045, %v1828
    %v2047 = vxor.u32 %v2046, 2147483648
    %v2048 = vmul.f32 %v2047, 1.442695
    %v2049 = vpow.pop %v2048
    %v2050 = vadd.f32 %v2049, 1.0
    %v2051 = vrcp.pop %v2050
    %v2052 = vmul.f32 1.0, %v2051
    %v2053 = vld [vmem:[%s879] sm:$0x3]
    %v2054 = vmul.f32 %v1852, %v2005
    %v2055 = vadd.f32 %v2053, %v2054
    %v2056 = vadd.f32 %v2055, %v1836
    %v2057 = vxor.u32 %v2056, 2147483648
    %v2058 = vmul.f32 %v2057, 1.442695
    %v2059 = vpow.pop %v2058
    %v2060 = vadd.f32 %v2059, 1.0
    %v2061 = vrcp.pop %v2060
    %v2062 = vmul.f32 1.0, %v2061
    %v2063 = vmul.f32 %v2052, %v2005
    %v2064 = vsub.f32 1.0, %v2052
    %v2065 = vld [vmem:[%s892] sm:$0x3]
    %v2066 = vmul.f32 %v2064, %v2065
    %v2067 = vadd.f32 %v2063, %v2066
    %v2068 = vmul.f32 %v2062, %v2067
    %v2069 = vsub.f32 1.0, %v2062
    %v2070 = vld [vmem:[%s898] sm:$0x3]
    %v2071 = vmul.f32 %v2069, %v2070
    %v2072 = vadd.f32 %v2068, %v2071
    %2073 = vst.msk [vmem:[%s902] sm:$0x3] %vm249, %v2072
    %v2074 = vld [vmem:[%s904] sm:$0x3]
    %v2075 = vmul.f32 %v1848, %v2036
    %v2076 = vadd.f32 %v2074, %v2075
    %v2077 = vadd.f32 %v2076, %v1832
    %v2078 = vxor.u32 %v2077, 2147483648
    %v2079 = vmul.f32 %v2078, 1.442695
    %v2080 = vpow.pop %v2079
    %v2081 = vadd.f32 %v2080, 1.0
    %v2082 = vrcp.pop %v2081
    %v2083 = vmul.f32 1.0, %v2082
    %v2084 = vld [vmem:[%s915] sm:$0x3]
    %v2085 = vmul.f32 %v1856, %v2036
    %v2086 = vadd.f32 %v2084, %v2085
    %v2087 = vadd.f32 %v2086, %v1840
    %v2088 = vxor.u32 %v2087, 2147483648
    %v2089 = vmul.f32 %v2088, 1.442695
    %v2090 = vpow.pop %v2089
    %v2091 = vadd.f32 %v2090, 1.0
    %v2092 = vrcp.pop %v2091
    %v2093 = vmul.f32 1.0, %v2092
    %v2094 = vmul.f32 %v2083, %v2036
    %v2095 = vsub.f32 1.0, %v2083
    %v2096 = vld [vmem:[%s928] sm:$0x3]
    %v2097 = vmul.f32 %v2095, %v2096
    %v2098 = vadd.f32 %v2094, %v2097
    %v2099 = vmul.f32 %v2093, %v2098
    %v2100 = vsub.f32 1.0, %v2093
    %v2101 = vld [vmem:[%s934] sm:$0x3]
    %v2102 = vmul.f32 %v2100, %v2101
    %v2103 = vadd.f32 %v2099, %v2102
    %2104 = vst.msk [vmem:[%s938] sm:$0x3] %vm249, %v2103
    %v2105 = vld [vmem:[%s940] sm:$0x3]
    %v2106 = vmul.f32 %v1844, %v2067
    %v2107 = vadd.f32 %v2105, %v2106
    %v2108 = vadd.f32 %v2107, %v1828
    %v2109 = vxor.u32 %v2108, 2147483648
    %v2110 = vmul.f32 %v2109, 1.442695
    %v2111 = vpow.pop %v2110
    %v2112 = vadd.f32 %v2111, 1.0
    %v2113 = vrcp.pop %v2112
    %v2114 = vmul.f32 1.0, %v2113
    %v2115 = vld [vmem:[%s951] sm:$0x3]
    %v2116 = vmul.f32 %v1852, %v2067
    %v2117 = vadd.f32 %v2115, %v2116
    %v2118 = vadd.f32 %v2117, %v1836
    %v2119 = vxor.u32 %v2118, 2147483648
    %v2120 = vmul.f32 %v2119, 1.442695
    %v2121 = vpow.pop %v2120
    %v2122 = vadd.f32 %v2121, 1.0
    %v2123 = vrcp.pop %v2122
    %v2124 = vmul.f32 1.0, %v2123
    %v2125 = vmul.f32 %v2114, %v2067
    %v2126 = vsub.f32 1.0, %v2114
    %v2127 = vld [vmem:[%s964] sm:$0x3]
    %v2128 = vmul.f32 %v2126, %v2127
    %v2129 = vadd.f32 %v2125, %v2128
    %v2130 = vmul.f32 %v2124, %v2129
    %v2131 = vsub.f32 1.0, %v2124
    %v2132 = vld [vmem:[%s970] sm:$0x3]
    %v2133 = vmul.f32 %v2131, %v2132
    %v2134 = vadd.f32 %v2130, %v2133
    %2135 = vst.msk [vmem:[%s974] sm:$0x3] %vm249, %v2134
    %v2136 = vld [vmem:[%s976] sm:$0x3]
    %v2137 = vmul.f32 %v1848, %v2098
    %v2138 = vadd.f32 %v2136, %v2137
    %v2139 = vadd.f32 %v2138, %v1832
    %v2140 = vxor.u32 %v2139, 2147483648
    %v2141 = vmul.f32 %v2140, 1.442695
    %v2142 = vpow.pop %v2141
    %v2143 = vadd.f32 %v2142, 1.0
    %v2144 = vrcp.pop %v2143
    %v2145 = vmul.f32 1.0, %v2144
    %v2146 = vld [vmem:[%s987] sm:$0x3]
    %v2147 = vmul.f32 %v1856, %v2098
    %v2148 = vadd.f32 %v2146, %v2147
    %v2149 = vadd.f32 %v2148, %v1840
    %v2150 = vxor.u32 %v2149, 2147483648
    %v2151 = vmul.f32 %v2150, 1.442695
    %v2152 = vpow.pop %v2151
    %v2153 = vadd.f32 %v2152, 1.0
    %v2154 = vrcp.pop %v2153
    %v2155 = vmul.f32 1.0, %v2154
    %v2156 = vmul.f32 %v2145, %v2098
    %v2157 = vsub.f32 1.0, %v2145
    %v2158 = vld [vmem:[%s1000] sm:$0x3]
    %v2159 = vmul.f32 %v2157, %v2158
    %v2160 = vadd.f32 %v2156, %v2159
    %v2161 = vmul.f32 %v2155, %v2160
    %v2162 = vsub.f32 1.0, %v2155
    %v2163 = vld [vmem:[%s1006] sm:$0x3]
    %v2164 = vmul.f32 %v2162, %v2163
    %v2165 = vadd.f32 %v2161, %v2164
    %2166 = vst.msk [vmem:[%s1010] sm:$0x3] %vm249, %v2165
    %v2167 = vld [vmem:[%s1012] sm:$0x3]
    %v2168 = vmul.f32 %v1844, %v2129
    %v2169 = vadd.f32 %v2167, %v2168
    %v2170 = vadd.f32 %v2169, %v1828
    %v2171 = vxor.u32 %v2170, 2147483648
    %v2172 = vmul.f32 %v2171, 1.442695
    %v2173 = vpow.pop %v2172
    %v2174 = vadd.f32 %v2173, 1.0
    %v2175 = vrcp.pop %v2174
    %v2176 = vmul.f32 1.0, %v2175
    %v2177 = vld [vmem:[%s1023] sm:$0x3]
    %v2178 = vmul.f32 %v1852, %v2129
    %v2179 = vadd.f32 %v2177, %v2178
    %v2180 = vadd.f32 %v2179, %v1836
    %v2181 = vxor.u32 %v2180, 2147483648
    %v2182 = vmul.f32 %v2181, 1.442695
    %v2183 = vpow.pop %v2182
    %v2184 = vadd.f32 %v2183, 1.0
    %v2185 = vrcp.pop %v2184
    %v2186 = vmul.f32 1.0, %v2185
    %v2187 = vmul.f32 %v2176, %v2129
    %v2188 = vsub.f32 1.0, %v2176
    %v2189 = vld [vmem:[%s1036] sm:$0x3]
    %v2190 = vmul.f32 %v2188, %v2189
    %v2191 = vadd.f32 %v2187, %v2190
    %v2192 = vmul.f32 %v2186, %v2191
    %v2193 = vsub.f32 1.0, %v2186
    %v2194 = vld [vmem:[%s1042] sm:$0x3]
    %v2195 = vmul.f32 %v2193, %v2194
    %v2196 = vadd.f32 %v2192, %v2195
    %2197 = vst.msk [vmem:[%s1046] sm:$0x3] %vm249, %v2196
    %v2198 = vld [vmem:[%s1048] sm:$0x3]
    %v2199 = vmul.f32 %v1848, %v2160
    %v2200 = vadd.f32 %v2198, %v2199
    %v2201 = vadd.f32 %v2200, %v1832
    %v2202 = vxor.u32 %v2201, 2147483648
    %v2203 = vmul.f32 %v2202, 1.442695
    %v2204 = vpow.pop %v2203
    %v2205 = vadd.f32 %v2204, 1.0
    %v2206 = vrcp.pop %v2205
    %v2207 = vmul.f32 1.0, %v2206
    %v2208 = vld [vmem:[%s1059] sm:$0x3]
    %v2209 = vmul.f32 %v1856, %v2160
    %v2210 = vadd.f32 %v2208, %v2209
    %v2211 = vadd.f32 %v2210, %v1840
    %v2212 = vxor.u32 %v2211, 2147483648
    %v2213 = vmul.f32 %v2212, 1.442695
    %v2214 = vpow.pop %v2213
    %v2215 = vadd.f32 %v2214, 1.0
    %v2216 = vrcp.pop %v2215
    %v2217 = vmul.f32 1.0, %v2216
    %v2218 = vmul.f32 %v2207, %v2160
    %v2219 = vsub.f32 1.0, %v2207
    %v2220 = vld [vmem:[%s1072] sm:$0x3]
    %v2221 = vmul.f32 %v2219, %v2220
    %v2222 = vadd.f32 %v2218, %v2221
    %v2223 = vmul.f32 %v2217, %v2222
    %v2224 = vsub.f32 1.0, %v2217
    %v2225 = vld [vmem:[%s1078] sm:$0x3]
    %v2226 = vmul.f32 %v2224, %v2225
    %v2227 = vadd.f32 %v2223, %v2226
    %2228 = vst.msk [vmem:[%s1082] sm:$0x3] %vm249, %v2227
    %v2229 = vld [vmem:[%s1084] sm:$0x3]
    %v2230 = vmul.f32 %v1844, %v2191
    %v2231 = vadd.f32 %v2229, %v2230
    %v2232 = vadd.f32 %v2231, %v1828
    %v2233 = vxor.u32 %v2232, 2147483648
    %v2234 = vmul.f32 %v2233, 1.442695
    %v2235 = vpow.pop %v2234
    %v2236 = vadd.f32 %v2235, 1.0
    %v2237 = vrcp.pop %v2236
    %v2238 = vmul.f32 1.0, %v2237
    %v2239 = vld [vmem:[%s1095] sm:$0x3]
    %v2240 = vmul.f32 %v1852, %v2191
    %v2241 = vadd.f32 %v2239, %v2240
    %v2242 = vadd.f32 %v2241, %v1836
    %v2243 = vxor.u32 %v2242, 2147483648
    %v2244 = vmul.f32 %v2243, 1.442695
    %v2245 = vpow.pop %v2244
    %v2246 = vadd.f32 %v2245, 1.0
    %v2247 = vrcp.pop %v2246
    %v2248 = vmul.f32 1.0, %v2247
    %v2249 = vmul.f32 %v2238, %v2191
    %v2250 = vsub.f32 1.0, %v2238
    %v2251 = vld [vmem:[%s1108] sm:$0x3]
    %v2252 = vmul.f32 %v2250, %v2251
    %v2253 = vadd.f32 %v2249, %v2252
    %v2254 = vmul.f32 %v2248, %v2253
    %v2255 = vsub.f32 1.0, %v2248
    %v2256 = vld [vmem:[%s1114] sm:$0x3]
    %v2257 = vmul.f32 %v2255, %v2256
    %v2258 = vadd.f32 %v2254, %v2257
    %2259 = vst.msk [vmem:[%s1118] sm:$0x3] %vm249, %v2258
    %v2260 = vld [vmem:[%s1120] sm:$0x3]
    %v2261 = vmul.f32 %v1848, %v2222
    %v2262 = vadd.f32 %v2260, %v2261
    %v2263 = vadd.f32 %v2262, %v1832
    %v2264 = vxor.u32 %v2263, 2147483648
    %v2265 = vmul.f32 %v2264, 1.442695
    %v2266 = vpow.pop %v2265
    %v2267 = vadd.f32 %v2266, 1.0
    %v2268 = vrcp.pop %v2267
    %v2269 = vmul.f32 1.0, %v2268
    %v2270 = vld [vmem:[%s1131] sm:$0x3]
    %v2271 = vmul.f32 %v1856, %v2222
    %v2272 = vadd.f32 %v2270, %v2271
    %v2273 = vadd.f32 %v2272, %v1840
    %v2274 = vxor.u32 %v2273, 2147483648
    %v2275 = vmul.f32 %v2274, 1.442695
    %v2276 = vpow.pop %v2275
    %v2277 = vadd.f32 %v2276, 1.0
    %v2278 = vrcp.pop %v2277
    %v2279 = vmul.f32 1.0, %v2278
    %v2280 = vmul.f32 %v2269, %v2222
    %v2281 = vsub.f32 1.0, %v2269
    %v2282 = vld [vmem:[%s1144] sm:$0x3]
    %v2283 = vmul.f32 %v2281, %v2282
    %v2284 = vadd.f32 %v2280, %v2283
    %v2285 = vmul.f32 %v2279, %v2284
    %v2286 = vsub.f32 1.0, %v2279
    %v2287 = vld [vmem:[%s1150] sm:$0x3]
    %v2288 = vmul.f32 %v2286, %v2287
    %v2289 = vadd.f32 %v2285, %v2288
    %2290 = vst.msk [vmem:[%s1154] sm:$0x3] %vm249, %v2289
    %v2291 = vld [vmem:[%s1156] sm:$0x3]
    %v2292 = vmul.f32 %v1844, %v2253
    %v2293 = vadd.f32 %v2291, %v2292
    %v2294 = vadd.f32 %v2293, %v1828
    %v2295 = vxor.u32 %v2294, 2147483648
    %v2296 = vmul.f32 %v2295, 1.442695
    %v2297 = vpow.pop %v2296
    %v2298 = vadd.f32 %v2297, 1.0
    %v2299 = vrcp.pop %v2298
    %v2300 = vmul.f32 1.0, %v2299
    %v2301 = vld [vmem:[%s1167] sm:$0x3]
    %v2302 = vmul.f32 %v1852, %v2253
    %v2303 = vadd.f32 %v2301, %v2302
    %v2304 = vadd.f32 %v2303, %v1836
    %v2305 = vxor.u32 %v2304, 2147483648
    %v2306 = vmul.f32 %v2305, 1.442695
    %v2307 = vpow.pop %v2306
    %v2308 = vadd.f32 %v2307, 1.0
    %v2309 = vrcp.pop %v2308
    %v2310 = vmul.f32 1.0, %v2309
    %v2311 = vmul.f32 %v2300, %v2253
    %v2312 = vsub.f32 1.0, %v2300
    %v2313 = vld [vmem:[%s1180] sm:$0x3]
    %v2314 = vmul.f32 %v2312, %v2313
    %v2315 = vadd.f32 %v2311, %v2314
    %v2316 = vmul.f32 %v2310, %v2315
    %v2317 = vsub.f32 1.0, %v2310
    %v2318 = vld [vmem:[%s1186] sm:$0x3]
    %v2319 = vmul.f32 %v2317, %v2318
    %v2320 = vadd.f32 %v2316, %v2319
    %2321 = vst.msk [vmem:[%s1190] sm:$0x3] %vm249, %v2320
    %v2322 = vld [vmem:[%s546] sm:$0x3]
    %v2323 = vmul.f32 %v1848, %v2284
    %v2324 = vadd.f32 %v2322, %v2323
    %v2325 = vadd.f32 %v2324, %v1832
    %v2326 = vxor.u32 %v2325, 2147483648
    %v2327 = vmul.f32 %v2326, 1.442695
    %v2328 = vpow.pop %v2327
    %v2329 = vadd.f32 %v2328, 1.0
    %v2330 = vrcp.pop %v2329
    %v2331 = vmul.f32 1.0, %v2330
    %v2332 = vld [vmem:[%s579] sm:$0x3]
    %v2333 = vmul.f32 %v1856, %v2284
    %v2334 = vadd.f32 %v2332, %v2333
    %v2335 = vadd.f32 %v2334, %v1840
    %v2336 = vxor.u32 %v2335, 2147483648
    %v2337 = vmul.f32 %v2336, 1.442695
    %v2338 = vpow.pop %v2337
    %v2339 = vadd.f32 %v2338, 1.0
    %v2340 = vrcp.pop %v2339
    %v2341 = vmul.f32 1.0, %v2340
    %v2342 = vmul.f32 %v2331, %v2284
    %v2343 = vsub.f32 1.0, %v2331
    %v2344 = vld [vmem:[%s457] sm:$0x3]
    %v2345 = vmul.f32 %v2343, %v2344
    %v2346 = vadd.f32 %v2342, %v2345
    %v2347 = vmul.f32 %v2341, %v2346
    %v2348 = vsub.f32 1.0, %v2341
    %v2349 = vld [vmem:[%s612] sm:$0x3]
    %v2350 = vmul.f32 %v2348, %v2349
    %v2351 = vadd.f32 %v2347, %v2350
    %2352 = vst.msk [vmem:[#allocation5] sm:$0x3] %vm249, %v2351
    %v2353 = vld [vmem:[#allocation4] sm:$0x3]
    %v2354 = vld [vmem:[#allocation4 + $0x2] sm:$0x3]
    %v2355 = vld [vmem:[#allocation4 + $0x4] sm:$0x3]
    %v2356 = vld [vmem:[#allocation4 + $0x6] sm:$0x3]
    %v2357 = vld [vmem:[#allocation4 + $0x8] sm:$0x3]
    %v2358 = vld [vmem:[#allocation4 + $0xa] sm:$0x3]
    %v2359 = vld [vmem:[#allocation4 + $0xc] sm:$0x3]
    %v2360 = vld [vmem:[#allocation4 + $0xe] sm:$0x3]
    %v2361 = vld [vmem:[#allocation5] sm:$0x3]
    %v2362 = vld [vmem:[#allocation5 + $0x2] sm:$0x3]
    %v2363 = vld [vmem:[#allocation5 + $0x4] sm:$0x3]
    %v2364 = vld [vmem:[#allocation5 + $0x6] sm:$0x3]
    %v2365 = vld [vmem:[#allocation5 + $0x8] sm:$0x3]
    %v2366 = vld [vmem:[#allocation5 + $0xa] sm:$0x3]
    %v2367 = vld [vmem:[#allocation5 + $0xc] sm:$0x3]
    %v2368 = vld [vmem:[#allocation5 + $0xe] sm:$0x3]
    %2377 = vrot.lane.b32.xlu0 %v2361, 32
    %v2378 = vpop.permute.xlu0 %2377
    %2379 = vrot.lane.b32.xlu0 %v2362, 32
    %v2380 = vpop.permute.xlu0 %2379
    %2381 = vrot.lane.b32.xlu0 %v2363, 32
    %v2382 = vpop.permute.xlu0 %2381
    %2383 = vrot.lane.b32.xlu0 %v2364, 32
    %v2384 = vpop.permute.xlu0 %2383
    %2385 = vrot.lane.b32.xlu0 %v2365, 32
    %v2386 = vpop.permute.xlu0 %2385
    %2387 = vrot.lane.b32.xlu0 %v2366, 32
    %v2388 = vpop.permute.xlu0 %2387
    %2389 = vrot.lane.b32.xlu0 %v2367, 32
    %v2390 = vpop.permute.xlu0 %2389
    %2391 = vrot.lane.b32.xlu0 %v2368, 32
    %v2392 = vpop.permute.xlu0 %2391
    %v2401 = vsel %vm1271, %v2353, %v2378
    %v2402 = vsel %vm1271, %v2354, %v2380
    %v2403 = vsel %vm1271, %v2355, %v2382
    %v2404 = vsel %vm1271, %v2356, %v2384
    %v2405 = vsel %vm1271, %v2357, %v2386
    %v2406 = vsel %vm1271, %v2358, %v2388
    %v2407 = vsel %vm1271, %v2359, %v2390
    %v2408 = vsel %vm1271, %v2360, %v2392
    %2409 = vst.msk [vmem:[#allocation2] sm:$0x3] %vm1280, %v2401
    %2410 = vst.msk [vmem:[#allocation2 + $0x2] sm:$0x3] %vm1280, %v2402
    %2411 = vst.msk [vmem:[#allocation2 + $0x4] sm:$0x3] %vm1280, %v2403
    %2412 = vst.msk [vmem:[#allocation2 + $0x6] sm:$0x3] %vm1280, %v2404
    %2413 = vst.msk [vmem:[#allocation2 + $0x8] sm:$0x3] %vm1280, %v2405
    %2414 = vst.msk [vmem:[#allocation2 + $0xa] sm:$0x3] %vm1280, %v2406
    %2415 = vst.msk [vmem:[#allocation2 + $0xc] sm:$0x3] %vm1280, %v2407
    %2416 = vst.msk [vmem:[#allocation2 + $0xe] sm:$0x3] %vm1280, %v2408
    %v2417 = vld [vmem:[#allocation2] sm:$0x3]
    %v2418 = vld [vmem:[#allocation2 + $0x2] sm:$0x3]
    %v2419 = vld [vmem:[#allocation2 + $0x4] sm:$0x3]
    %v2420 = vld [vmem:[#allocation2 + $0x6] sm:$0x3]
    %v2421 = vld [vmem:[#allocation2 + $0x8] sm:$0x3]
    %v2422 = vld [vmem:[#allocation2 + $0xa] sm:$0x3]
    %v2423 = vld [vmem:[#allocation2 + $0xc] sm:$0x3]
    %v2424 = vld [vmem:[#allocation2 + $0xe] sm:$0x3]
    %2425 = vst.msk [vmem:[#allocation12] sm:$0x3] %vm1280, %v2417
    %2426 = vst.msk [vmem:[#allocation12 + $0x2] sm:$0x3] %vm1280, %v2418
    %2427 = vst.msk [vmem:[#allocation12 + $0x4] sm:$0x3] %vm1280, %v2419
    %2428 = vst.msk [vmem:[#allocation12 + $0x6] sm:$0x3] %vm1280, %v2420
    %2429 = vst.msk [vmem:[#allocation12 + $0x8] sm:$0x3] %vm1280, %v2421
    %2430 = vst.msk [vmem:[#allocation12 + $0xa] sm:$0x3] %vm1280, %v2422
    %2431 = vst.msk [vmem:[#allocation12 + $0xc] sm:$0x3] %vm1280, %v2423
    %2432 = vst.msk [vmem:[#allocation12 + $0xe] sm:$0x3] %vm1280, %v2424
    // Predicated region
    $region42: #{tpu_custom_call.1} parent=1 // pred_check
      _
    $region43: #{tpu_custom_call.1} parent=1 // pred_check_branch
      %2434 = sbr.rel (0) target = $region45
    $region44: #{tpu_custom_call.1} parent=1 // pred_region
      %s2436 = ssub.s32 256, 256
      %2437 = vsyncadd [#allocation8], %s2436
      %s2438 = sshll.u32 [#allocation12], 4
      %s2439 = int_to_ptr.vmem [resolvable:$true] %s2438
      %2444 = dma.vmem_to_hbm [thread:$0]  %s2439, 256, %s7, [#allocation8], 32, 32, 2
    $region45: #{tpu_custom_call.1} parent=1 // pred_fallthru
      _
    // Predicated region
    $region46: #{tpu_custom_call.1} parent=1 // pred_check
      _
    $region47: #{tpu_custom_call.1} parent=1 // pred_check_branch
      %2446 = sbr.rel (0) target = $region49
    $region48: #{tpu_custom_call.1} parent=1 // pred_region
      %2447 = dma.done [#allocation8], 256
    $region49: #{tpu_custom_call.1} parent=1 // pred_fallthru
      _
    %2448 = vsyncpa [#allocation7], 1
    %2449 = vsyncpa [#allocation10], 1
    %2450 = vsyncpa [#allocation8], 1

</llo_original>
